<compile_context>
chip_gen: v6e
topology: v6e:2x2x1
jax: 0.10.0
libtpu: 0.0.40
codegen_flags: <defaults>
</compile_context>

<pallas_src>
import functools

import jax
import jax.numpy as jnp
from jax import lax
from jax.experimental import pallas as pl
from jax.experimental.pallas import tpu as pltpu

EPS = 1e-5
LANE = 128


# ----------------------------- small helpers ---------------------------------
def _round_up(x, m):
    return ((x + m - 1) // m) * m


def _pad_to(a, shape, value=0.0):
    pads = [(0, t - s) for s, t in zip(a.shape, shape)]
    if all(p == (0, 0) for p in pads):
        return a
    return jnp.pad(a, pads, constant_values=value)


@functools.lru_cache(maxsize=1)
def _tpu_budget():
    """(vmem_limit_bytes, default row-tile) sized for the attached TPU generation."""
    try:
        cap = int(pltpu.get_tpu_info().vmem_capacity_bytes)
    except Exception:
        cap = None
    if cap is None:
        # Unknown part: 48 MiB is above every default scoped limit and below
        # v7x's 64 MiB physical.
        return 48 << 20, 256
    limit = int(min((cap * 3) // 4, 100 << 20))   # headroom for compiler scratch
    tile = 256 if cap <= (64 << 20) else 512      # v7x: 64 MiB; v5e/v6e: 128 MiB
    return limit, tile


def _pick_tile_m(m, target):
    """Row tile: multiple of 8, <= target.  M is padded UP to a multiple of the
    tile (never a single giant block), so pipelining / megacore sharding is
    preserved for any N*H*W."""
    m8 = _round_up(max(m, 8), 8)
    t = min(target, m8)
    if m8 > 8 and t >= m8:            # keep >= 2 grid steps when possible
        t = _round_up((m8 + 1) // 2, 8)
    return max(8, (t // 8) * 8)


def _const_spec(shape, index_map):
    """BlockSpec for operands whose index_map is constant across the grid
    (weights / BN affines): single-buffer them, the second pipeline buffer is
    pure VMEM waste."""
    try:
        return pl.BlockSpec(shape, index_map, pipeline_mode=pl.Buffered(1))
    except Exception:  # older jax without pipeline_mode / pl.Buffered
        return pl.BlockSpec(shape, index_map)


# ----------------------------- kernels ----------------------------------------
def _stage1_kernel(x_ref, w1_ref, y_ref, st_ref):
    # 1x1 conv as a matmul (bf16 operands, f32 accumulation) + partial BN stats.
    y = jnp.dot(x_ref[...], w1_ref[...], preferred_element_type=jnp.float32)
    y_ref[...] = y.astype(y_ref.dtype)                 # bf16 intermediate to HBM
    st_ref[0] = jnp.concatenate(                       # single (2, C) store
        [jnp.sum(y, axis=0, keepdims=True),
         jnp.sum(y * y, axis=0, keepdims=True)], axis=0)


def _stage2_kernel(y1_ref, scale_ref, shift_ref, w2_ref, y2_ref, st_ref, *, H, W):
    # Fused: BN1 affine + ReLU, then 3x3 conv (pad=1, stride=1) on the flattened
    # (H*W, C) view.  Taps are merged along the contraction dim: per dh, one
    # (hw, 3C) operand x (3C, C) matmul (fills the 256-deep MXU on v6e/v7x).
    hw = H * W
    y1 = jnp.maximum(y1_ref[0] * scale_ref[...] + shift_ref[...], 0.0)
    y1 = y1.astype(jnp.bfloat16)

    # w-boundary masking hoisted out of the tap loop: two pre-masked copies.
    col = lax.broadcasted_iota(jnp.int32, (hw, 1), 0) % W
    zl = jnp.where(col == 0, jnp.zeros_like(y1), y1)       # feeds all dw=+1 taps
    zr = jnp.where(col == W - 1, jnp.zeros_like(y1), y1)   # feeds all dw=-1 taps

    # TODO(synk): the row shift could use pltpu.roll (XLU slot) + a wrap mask
    # instead of concatenate-with-zeros copies.
    def shift_rows(a, s):
        if s > 0:
            return jnp.concatenate(
                [a[s:, :], jnp.zeros((s, a.shape[1]), a.dtype)], axis=0)
        if s < 0:
            return jnp.concatenate(
                [jnp.zeros((-s, a.shape[1]), a.dtype), a[:s, :]], axis=0)
        return a

    acc = None
    for dh in (-1, 0, 1):
        base = dh * W
        # operand order [dw=-1, dw=0, dw=+1] matches w2_ref[dh+1] row blocks.
        op = jnp.concatenate([shift_rows(zr, base - 1),
                              shift_rows(y1, base),
                              shift_rows(zl, base + 1)], axis=-1)
        t = jnp.dot(op, w2_ref[dh + 1], preferred_element_type=jnp.float32)
        acc = t if acc is None else acc + t

    y2_ref[0] = acc.astype(y2_ref.dtype)               # bf16 intermediate to HBM
    st_ref[0] = jnp.concatenate(                        # stats from f32 accumulator
        [jnp.sum(acc, axis=0, keepdims=True),
         jnp.sum(acc * acc, axis=0, keepdims=True)], axis=0)


def _stage3_kernel(y2_ref, scale_ref, shift_ref, w3_ref, y_ref, st_ref,
                   *, tm, m_real, mask_pad):
    # Fused: BN2 affine + ReLU, then 1x1 conv (w3) + partial BN stats.
    y2 = jnp.maximum(y2_ref[...] * scale_ref[...] + shift_ref[...], 0.0)
    if mask_pad:
        # Rows beyond the real M (padding added to keep a real grid) must not
        # contribute to the output / BN3 stats: the affine shift made them != 0.
        row = pl.program_id(0) * tm + lax.broadcasted_iota(jnp.int32, y2.shape, 0)
        y2 = jnp.where(row < m_real, y2, 0.0)
    y = jnp.dot(y2.astype(jnp.bfloat16), w3_ref[...],
                preferred_element_type=jnp.float32)
    y_ref[...] = y.astype(y_ref.dtype)                  # bf16 intermediate to HBM
    st_ref[0] = jnp.concatenate(
        [jnp.sum(y, axis=0, keepdims=True),
         jnp.sum(y * y, axis=0, keepdims=True)], axis=0)


def _stage4_kernel(y3_ref, scale_ref, shift_ref, x_ref, weq_ref, beq_ref, out_ref):
    # Fused: BN3 affine + ReLU + residual 1x1 conv (dim_equalizer / downsample).
    y = jnp.maximum(y3_ref[...] * scale_ref[...] + shift_ref[...], 0.0)
    br = jnp.dot(x_ref[...], weq_ref[...],
                 preferred_element_type=jnp.float32) + beq_ref[...]
    out_ref[...] = y + br


# ----------------------------- wrapper ----------------------------------------
def _bn_affine(partial_stats, gamma, beta, m_total):
    """Fold training-mode BN into a per-channel affine: y*scale + shift."""
    tot = jnp.sum(partial_stats, axis=0)                 # (2, C), f32
    mean = tot[0:1] / m_total
    var = jnp.maximum(tot[1:2] / m_total - mean * mean, 0.0)
    scale = gamma * lax.rsqrt(var + EPS)
    shift = beta - scale * mean
    return scale, shift


def _bottleneck_impl(x_nchw, params, down, tile_m, vmem_limit):
    # TODO(synk): fold the NCHW->NHWC transpose and the stride-2 subsample into
    # K1's input DMA (strided index_map) instead of materializing them in XLA.
    x = jnp.transpose(x_nchw, (0, 2, 3, 1)).astype(jnp.float32)   # -> NHWC
    if down:
        # 1x1 conv with stride 2 == 1x1 conv with stride 1 on the subsampled grid
        x = x[:, ::2, ::2, :]
    n, h, w, cin = x.shape
    cmid = params["w1"].shape[1]
    cout = params["w3"].shape[1]
    cinp = _round_up(cin, LANE)
    cmidp = _round_up(cmid, LANE)
    coutp = _round_up(cout, LANE)
    hw = h * w
    m = n * hw
    tm = _pick_tile_m(m, tile_m)
    mp = _round_up(m, tm)           # pad rows keep a real grid for any N*H*W
    gm = mp // tm
    padded_m = mp != m

    # Lane-dense, bf16 matmul operands. Zero padding keeps real channels exact
    # and makes every padded output channel identically 0 (sliced off at the end).
    xf = _pad_to(x.reshape(m, cin), (mp, cinp)).astype(jnp.bfloat16)
    w1 = _pad_to(params["w1"], (cinp, cmidp)).astype(jnp.bfloat16)
    w2 = _pad_to(params["w2"], (3, 3, cmidp, cmidp)).astype(jnp.bfloat16)
    w2r = w2.reshape(3, 3 * cmidp, cmidp)      # taps merged along contraction dim
    w3 = _pad_to(params["w3"], (cmidp, coutp)).astype(jnp.bfloat16)
    weq = _pad_to(params["weq"], (cinp, coutp)).astype(jnp.bfloat16)
    beq = _pad_to(params["beq"], (1, coutp))
    g1 = _pad_to(params["g1"], (1, cmidp), 1.0)
    be1 = _pad_to(params["be1"], (1, cmidp))
    g2 = _pad_to(params["g2"], (1, cmidp), 1.0)
    be2 = _pad_to(params["be2"], (1, cmidp))
    g3 = _pad_to(params["g3"], (1, coutp), 1.0)
    be3 = _pad_to(params["be3"], (1, coutp))
    # NOTE: b1/b2/b3 are cancelled by the following training-mode BN -> unused.

    par = pltpu.CompilerParams(dimension_semantics=("parallel",),
                               vmem_limit_bytes=int(vmem_limit))

    def row_spec(t, c):
        return pl.BlockSpec((t, c), lambda i: (i, 0))

    def stat_spec(c):
        return pl.BlockSpec((1, 2, c), lambda i: (i, 0, 0))

    # ---- K1: 1x1 conv (w1) + stats -------------------------------------------
    y1raw, st1 = pl.pallas_call(
        _stage1_kernel,
        grid=(gm,),
        in_specs=[row_spec(tm, cinp),
                  _const_spec((cinp, cmidp), lambda i: (0, 0))],
        out_specs=(row_spec(tm, cmidp), stat_spec(cmidp)),
        out_shape=(jax.ShapeDtypeStruct((mp, cmidp), jnp.bfloat16),
                   jax.ShapeDtypeStruct((gm, 2, cmidp), jnp.float32)),
        compiler_params=par,
    )(xf, w1)
    scale1, shift1 = _bn_affine(st1, g1, be1, m)

    # ---- K2: BN1+ReLU fused with 3x3 conv (per image) + stats -----------------
    # TODO(synk): give K2 a 2-D (image, row-chunk+halo) grid so tiny batches
    # still pipeline / shard across both v7x TensorCores.
    y1_img = (y1raw[:m] if padded_m else y1raw).reshape(n, hw, cmidp)
    y2raw, st2 = pl.pallas_call(
        functools.partial(_stage2_kernel, H=h, W=w),
        grid=(n,),
        in_specs=[pl.BlockSpec((1, hw, cmidp), lambda i: (i, 0, 0)),
                  _const_spec((1, cmidp), lambda i: (0, 0)),
                  _const_spec((1, cmidp), lambda i: (0, 0)),
                  _const_spec((3, 3 * cmidp, cmidp), lambda i: (0, 0, 0))],
        out_specs=(pl.BlockSpec((1, hw, cmidp), lambda i: (i, 0, 0)),
                   stat_spec(cmidp)),
        out_shape=(jax.ShapeDtypeStruct((n, hw, cmidp), jnp.bfloat16),
                   jax.ShapeDtypeStruct((n, 2, cmidp), jnp.float32)),
        compiler_params=par,
    )(y1_img, scale1, shift1, w2r)
    scale2, shift2 = _bn_affine(st2, g2, be2, m)

    # ---- K3: BN2+ReLU fused with 1x1 conv (w3) + stats -------------------------
    y2flat = y2raw.reshape(m, cmidp)
    if padded_m:
        y2flat = _pad_to(y2flat, (mp, cmidp))
    y3raw, st3 = pl.pallas_call(
        functools.partial(_stage3_kernel, tm=tm, m_real=m, mask_pad=padded_m),
        grid=(gm,),
        in_specs=[row_spec(tm, cmidp),
                  _const_spec((1, cmidp), lambda i: (0, 0)),
                  _const_spec((1, cmidp), lambda i: (0, 0)),
                  _const_spec((cmidp, coutp), lambda i: (0, 0))],
        out_specs=(row_spec(tm, coutp), stat_spec(coutp)),
        out_shape=(jax.ShapeDtypeStruct((mp, coutp), jnp.bfloat16),
                   jax.ShapeDtypeStruct((gm, 2, coutp), jnp.float32)),
        compiler_params=par,
    )(y2flat, scale2, shift2, w3)
    scale3, shift3 = _bn_affine(st3, g3, be3, m)

    # ---- K4: BN3+ReLU + residual 1x1 conv (weq) + add --------------------------
    out_flat = pl.pallas_call(
        _stage4_kernel,
        grid=(gm,),
        in_specs=[row_spec(tm, coutp),
                  _const_spec((1, coutp), lambda i: (0, 0)),
                  _const_spec((1, coutp), lambda i: (0, 0)),
                  row_spec(tm, cinp),
                  _const_spec((cinp, coutp), lambda i: (0, 0)),
                  _const_spec((1, coutp), lambda i: (0, 0))],
        out_specs=row_spec(tm, coutp),
        out_shape=jax.ShapeDtypeStruct((mp, coutp), jnp.float32),
        compiler_params=par,
    )(y3raw, scale3, shift3, xf, weq, beq)

    out = out_flat[:m].reshape(n, h, w, coutp)[..., :cout]
    return jnp.transpose(out, (0, 3, 1, 2))   # -> NCHW


@functools.partial(jax.jit, static_argnames=("down", "tile_m", "vmem_limit"))
def _bottleneck_jit(x_nchw, params, down, tile_m, vmem_limit):
    return _bottleneck_impl(x_nchw, params, down, tile_m, vmem_limit)


def bottleneck_forward(x_nchw, params, down=False, tile_m=None):
    """Pallas BottleNeck forward. x_nchw: (N, Cin, H, W) float32."""
    vmem_limit, tile_default = _tpu_budget()
    if tile_m is None:
        tile_m = tile_default
    return _bottleneck_jit(x_nchw, params, down, tile_m, vmem_limit)


# ----------------------------- reference (pure JAX, f32) -----------------------
def _conv_nhwc(x, w_hwio, b, stride, pad):
    y = lax.conv_general_dilated(
        x, w_hwio, (stride, stride), [(pad, pad), (pad, pad)],
        dimension_numbers=("NHWC", "HWIO", "NHWC"))
    return y + b.reshape(1, 1, 1, -1)


def _bn_relu_ref(y, gamma, beta):
    mean = jnp.mean(y, axis=(0, 1, 2), keepdims=True)
    var = jnp.mean(jnp.square(y - mean), axis=(0, 1, 2), keepdims=True)
    yn = (y - mean) * lax.rsqrt(var + EPS)
    return jnp.maximum(yn * gamma.reshape(1, 1, 1, -1) + beta.reshape(1, 1, 1, -1), 0.0)


def bottleneck_ref(x_nchw, p, down=False):
    x = jnp.transpose(x_nchw, (0, 2, 3, 1)).astype(jnp.float32)
    cin, cmid = p["w1"].shape
    cout = p["w3"].shape[1]
    s = 2 if down else 1
    y = _conv_nhwc(x, p["w1"].reshape(1, 1, cin, cmid), p["b1"][0], s, 0)
    y = _bn_relu_ref(y, p["g1"][0], p["be1"][0])
    y = _conv_nhwc(y, p["w2"], p["b2"][0], 1, 1)
    y = _bn_relu_ref(y, p["g2"][0], p["be2"][0])
    y = _conv_nhwc(y, p["w3"].reshape(1, 1, cmid, cout), p["b3"][0], 1, 0)
    y = _bn_relu_ref(y, p["g3"][0], p["be3"][0])
    br = _conv_nhwc(x, p["weq"].reshape(1, 1, cin, cout), p["beq"][0], s, 0)
    return jnp.transpose(y + br, (0, 3, 1, 2))


# ----------------------------- deterministic params ----------------------------
def make_params(key, cin, cmid, cout):
    ks = jax.random.split(key, 14)
    s = 0.1
    nrm = lambda k, shp: (jax.random.normal(k, shp, jnp.float32) * s)
    return {
        "w1": nrm(ks[0], (cin, cmid)),   "b1": nrm(ks[1], (1, cmid)),
        "g1": 1.0 + nrm(ks[2], (1, cmid)), "be1": nrm(ks[3], (1, cmid)),
        "w2": nrm(ks[4], (3, 3, cmid, cmid)), "b2": nrm(ks[5], (1, cmid)),
        "g2": 1.0 + nrm(ks[6], (1, cmid)), "be2": nrm(ks[7], (1, cmid)),
        "w3": nrm(ks[8], (cmid, cout)),  "b3": nrm(ks[9], (1, cout)),
        "g3": 1.0 + nrm(ks[10], (1, cout)), "be3": nrm(ks[11], (1, cout)),
        "weq": nrm(ks[12], (cin, cout)), "beq": nrm(ks[13], (1, cout)),
    }


if __name__ == "__main__":
    key = jax.random.PRNGKey(0)
    kx, kp = jax.random.split(key)

    N, Cin, H, W = 2, 8, 16, 16
    Cmid, Cout = 8, 32
    x = jax.random.normal(kx, (N, Cin, H, W), jnp.float32)   # NCHW, like PyTorch
    params = make_params(kp, Cin, Cmid, Cout)

    # down=False path (dim_equalizer residual; exercises a multi-tile grid over M).
    out = jax.block_until_ready(bottleneck_forward(x, params, down=False))
    ref = bottleneck_ref(x, params, down=False)
    assert out.shape == (N, Cout, H, W)
    assert jnp.allclose(out, ref, atol=1e-1, rtol=5e-2), (
        "down=False mismatch, max_abs_err=%e"
        % float(jnp.max(jnp.abs(out - ref))))

    # down=True path (stride-2 first conv + stride-2 downsample branch).
    out_d = jax.block_until_ready(bottleneck_forward(x, params, down=True))
    ref_d = bottleneck_ref(x, params, down=True)
    assert out_d.shape == (N, Cout, H // 2, W // 2)
    assert jnp.allclose(out_d, ref_d, atol=1e-1, rtol=5e-2), (
        "down=True mismatch, max_abs_err=%e"
        % float(jnp.max(jnp.abs(out_d - ref_d))))

    print("KERNEL_OK")
</pallas_src>

<mosaic_0001>
module attributes {stable_mosaic.version = 11 : i64} {
  func.func @_stage1_kernel(%arg0: i32, %arg1: memref<256x128xbf16, #tpu.memory_space<vmem>>, %arg2: memref<128x128xbf16, #tpu.memory_space<vmem>>, %arg3: memref<256x128xbf16, #tpu.memory_space<vmem>>, %arg4: memref<1x2x128xf32, #tpu.memory_space<vmem>>) attributes {dimension_semantics = [#tpu.dimension_semantics<parallel>], iteration_bounds = array<i64: 2>, scalar_prefetch = 0 : i64, scratch_operands = 0 : i64, tpu.core_type = #tpu.core_type<tc>, window_params = [{transform_indices = @transform_0, window_bounds = array<i64: 256, 128>}, {pipeline_mode = #tpu.pipeline_mode<synchronous>, transform_indices = @transform_1, window_bounds = array<i64: 128, 128>}, {transform_indices = @transform_2, window_bounds = array<i64: 256, 128>}, {transform_indices = @transform_3, window_bounds = array<i64: 1, 2, 128>}]} {
    %c0 = arith.constant 0 : index
    %c0_0 = arith.constant 0 : index
    %0 = vector.load %arg1[%c0, %c0_0] : memref<256x128xbf16, #tpu.memory_space<vmem>>, vector<256x128xbf16>
    %c0_1 = arith.constant 0 : index
    %c0_2 = arith.constant 0 : index
    %1 = vector.load %arg2[%c0_1, %c0_2] : memref<128x128xbf16, #tpu.memory_space<vmem>>, vector<128x128xbf16>
    %cst = arith.constant dense<0.000000e+00> : vector<256x128xf32>
    %2 = tpu.matmul %0, %1, %cst {dimension_numbers = #tpu.dot_dimension_numbers<[1], [0], [0], [1], [0, 0, 1, 1], [], []>} : vector<256x128xbf16>, vector<128x128xbf16>, vector<256x128xf32> -> vector<256x128xf32>
    %3 = arith.truncf %2 : vector<256x128xf32> to vector<256x128xbf16>
    %c0_3 = arith.constant 0 : index
    %c0_4 = arith.constant 0 : index
    %4 = vector.load %arg3[%c0_3, %c0_4] : memref<256x128xbf16, #tpu.memory_space<vmem>>, vector<256x128xbf16>
    tpu.vector_store %arg3[%c0_3, %c0_4], %3 {strides = array<i32>} : memref<256x128xbf16, #tpu.memory_space<vmem>>, vector<256x128xbf16>,
    %cst_5 = arith.constant dense<0.000000e+00> : vector<128xf32>
    %5 = vector.multi_reduction <add>, %2, %cst_5 [0] : vector<256x128xf32> to vector<128xf32>
    %6 = vector.shape_cast %5 : vector<128xf32> to vector<1x128xf32>
    %7 = arith.mulf %2, %2 : vector<256x128xf32>
    %cst_6 = arith.constant dense<0.000000e+00> : vector<128xf32>
    %8 = vector.multi_reduction <add>, %7, %cst_6 [0] : vector<256x128xf32> to vector<128xf32>
    %9 = vector.shape_cast %8 : vector<128xf32> to vector<1x128xf32>
    %10 = tpu.concatenate %6, %9 in 0 : vector<1x128xf32>, vector<1x128xf32> -> vector<2x128xf32>
    %c0_7 = arith.constant 0 : index
    %c0_8 = arith.constant 0 : index
    %c0_9 = arith.constant 0 : index
    %11 = vector.load %arg4[%c0_7, %c0_8, %c0_9] : memref<1x2x128xf32, #tpu.memory_space<vmem>>, vector<1x2x128xf32>
    %12 = vector.shape_cast %11 : vector<1x2x128xf32> to vector<2x128xf32>
    %13 = vector.shape_cast %10 : vector<2x128xf32> to vector<1x2x128xf32>
    tpu.vector_store %arg4[%c0_7, %c0_8, %c0_9], %13 {strides = array<i32>} : memref<1x2x128xf32, #tpu.memory_space<vmem>>, vector<1x2x128xf32>,
    return
  }
  func.func @transform_0(%arg0: i32) -> (i32, i32) {
    %c0_i32 = arith.constant 0 : i32
    %c0_i32_0 = arith.constant 0 : i32
    return %arg0, %c0_i32 : i32, i32
  }
  func.func @transform_1(%arg0: i32) -> (i32, i32) {
    %c0_i32 = arith.constant 0 : i32
    %c0_i32_0 = arith.constant 0 : i32
    %c0_i32_1 = arith.constant 0 : i32
    return %c0_i32, %c0_i32_0 : i32, i32
  }
  func.func @transform_2(%arg0: i32) -> (i32, i32) {
    %c0_i32 = arith.constant 0 : i32
    %c0_i32_0 = arith.constant 0 : i32
    return %arg0, %c0_i32 : i32, i32
  }
  func.func @transform_3(%arg0: i32) -> (i32, i32, i32) {
    %c0_i32 = arith.constant 0 : i32
    %c0_i32_0 = arith.constant 0 : i32
    %c0_i32_1 = arith.constant 0 : i32
    return %arg0, %c0_i32, %c0_i32_0 : i32, i32, i32
  }
}

module attributes {stable_mosaic.version = 11 : i64} {
  func.func @_stage4_kernel(%arg0: i32, %arg1: memref<256x128xbf16, #tpu.memory_space<vmem>>, %arg2: memref<1x128xf32, #tpu.memory_space<vmem>>, %arg3: memref<1x128xf32, #tpu.memory_space<vmem>>, %arg4: memref<256x128xbf16, #tpu.memory_space<vmem>>, %arg5: memref<128x128xbf16, #tpu.memory_space<vmem>>, %arg6: memref<1x128xf32, #tpu.memory_space<vmem>>, %arg7: memref<256x128xf32, #tpu.memory_space<vmem>>) attributes {dimension_semantics = [#tpu.dimension_semantics<parallel>], iteration_bounds = array<i64: 2>, scalar_prefetch = 0 : i64, scratch_operands = 0 : i64, tpu.core_type = #tpu.core_type<tc>, window_params = [{transform_indices = @transform_0, window_bounds = array<i64: 256, 128>}, {pipeline_mode = #tpu.pipeline_mode<synchronous>, transform_indices = @transform_1, window_bounds = array<i64: 1, 128>}, {pipeline_mode = #tpu.pipeline_mode<synchronous>, transform_indices = @transform_2, window_bounds = array<i64: 1, 128>}, {transform_indices = @transform_3, window_bounds = array<i64: 256, 128>}, {pipeline_mode = #tpu.pipeline_mode<synchronous>, transform_indices = @transform_4, window_bounds = array<i64: 128, 128>}, {pipeline_mode = #tpu.pipeline_mode<synchronous>, transform_indices = @transform_5, window_bounds = array<i64: 1, 128>}, {transform_indices = @transform_6, window_bounds = array<i64: 256, 128>}]} {
    %c0 = arith.constant 0 : index
    %c0_0 = arith.constant 0 : index
    %0 = vector.load %arg1[%c0, %c0_0] : memref<256x128xbf16, #tpu.memory_space<vmem>>, vector<256x128xbf16>
    %c0_1 = arith.constant 0 : index
    %c0_2 = arith.constant 0 : index
    %1 = vector.load %arg2[%c0_1, %c0_2] : memref<1x128xf32, #tpu.memory_space<vmem>>, vector<1x128xf32>
    %2 = arith.extf %0 : vector<256x128xbf16> to vector<256x128xf32>
    %3 = vector.broadcast %1 : vector<1x128xf32> to vector<256x128xf32>
    %4 = arith.mulf %2, %3 : vector<256x128xf32>
    %c0_3 = arith.constant 0 : index
    %c0_4 = arith.constant 0 : index
    %5 = vector.load %arg3[%c0_3, %c0_4] : memref<1x128xf32, #tpu.memory_space<vmem>>, vector<1x128xf32>
    %6 = vector.broadcast %5 : vector<1x128xf32> to vector<256x128xf32>
    %7 = arith.addf %4, %6 : vector<256x128xf32>
    %cst = arith.constant 0.000000e+00 : f32
    %8 = vector.broadcast %cst : f32 to vector<256x128xf32>
    %9 = arith.maximumf %7, %8 : vector<256x128xf32>
    %c0_5 = arith.constant 0 : index
    %c0_6 = arith.constant 0 : index
    %10 = vector.load %arg4[%c0_5, %c0_6] : memref<256x128xbf16, #tpu.memory_space<vmem>>, vector<256x128xbf16>
    %c0_7 = arith.constant 0 : index
    %c0_8 = arith.constant 0 : index
    %11 = vector.load %arg5[%c0_7, %c0_8] : memref<128x128xbf16, #tpu.memory_space<vmem>>, vector<128x128xbf16>
    %cst_9 = arith.constant dense<0.000000e+00> : vector<256x128xf32>
    %12 = tpu.matmul %10, %11, %cst_9 {dimension_numbers = #tpu.dot_dimension_numbers<[1], [0], [0], [1], [0, 0, 1, 1], [], []>} : vector<256x128xbf16>, vector<128x128xbf16>, vector<256x128xf32> -> vector<256x128xf32>
    %c0_10 = arith.constant 0 : index
    %c0_11 = arith.constant 0 : index
    %13 = vector.load %arg6[%c0_10, %c0_11] : memref<1x128xf32, #tpu.memory_space<vmem>>, vector<1x128xf32>
    %14 = vector.broadcast %13 : vector<1x128xf32> to vector<256x128xf32>
    %15 = arith.addf %12, %14 : vector<256x128xf32>
    %16 = arith.addf %9, %15 : vector<256x128xf32>
    %c0_12 = arith.constant 0 : index
    %c0_13 = arith.constant 0 : index
    %17 = vector.load %arg7[%c0_12, %c0_13] : memref<256x128xf32, #tpu.memory_space<vmem>>, vector<256x128xf32>
    tpu.vector_store %arg7[%c0_12, %c0_13], %16 {strides = array<i32>} : memref<256x128xf32, #tpu.memory_space<vmem>>, vector<256x128xf32>,
    return
  }
  func.func @transform_0(%arg0: i32) -> (i32, i32) {
    %c0_i32 = arith.constant 0 : i32
    %c0_i32_0 = arith.constant 0 : i32
    return %arg0, %c0_i32 : i32, i32
  }
  func.func @transform_1(%arg0: i32) -> (i32, i32) {
    %c0_i32 = arith.constant 0 : i32
    %c0_i32_0 = arith.constant 0 : i32
    %c0_i32_1 = arith.constant 0 : i32
    return %c0_i32, %c0_i32_0 : i32, i32
  }
  func.func @transform_2(%arg0: i32) -> (i32, i32) {
    %c0_i32 = arith.constant 0 : i32
    %c0_i32_0 = arith.constant 0 : i32
    %c0_i32_1 = arith.constant 0 : i32
    return %c0_i32, %c0_i32_0 : i32, i32
  }
  func.func @transform_3(%arg0: i32) -> (i32, i32) {
    %c0_i32 = arith.constant 0 : i32
    %c0_i32_0 = arith.constant 0 : i32
    return %arg0, %c0_i32 : i32, i32
  }
  func.func @transform_4(%arg0: i32) -> (i32, i32) {
    %c0_i32 = arith.constant 0 : i32
    %c0_i32_0 = arith.constant 0 : i32
    %c0_i32_1 = arith.constant 0 : i32
    return %c0_i32, %c0_i32_0 : i32, i32
  }
  func.func @transform_5(%arg0: i32) -> (i32, i32) {
    %c0_i32 = arith.constant 0 : i32
    %c0_i32_0 = arith.constant 0 : i32
    %c0_i32_1 = arith.constant 0 : i32
    return %c0_i32, %c0_i32_0 : i32, i32
  }
  func.func @transform_6(%arg0: i32) -> (i32, i32) {
    %c0_i32 = arith.constant 0 : i32
    %c0_i32_0 = arith.constant 0 : i32
    return %arg0, %c0_i32 : i32, i32
  }
}

module attributes {stable_mosaic.version = 11 : i64} {
  func.func @_stage3_kernel(%arg0: i32, %arg1: memref<256x128xbf16, #tpu.memory_space<vmem>>, %arg2: memref<1x128xf32, #tpu.memory_space<vmem>>, %arg3: memref<1x128xf32, #tpu.memory_space<vmem>>, %arg4: memref<128x128xbf16, #tpu.memory_space<vmem>>, %arg5: memref<256x128xbf16, #tpu.memory_space<vmem>>, %arg6: memref<1x2x128xf32, #tpu.memory_space<vmem>>) attributes {dimension_semantics = [#tpu.dimension_semantics<parallel>], iteration_bounds = array<i64: 2>, scalar_prefetch = 0 : i64, scratch_operands = 0 : i64, tpu.core_type = #tpu.core_type<tc>, window_params = [{transform_indices = @transform_0, window_bounds = array<i64: 256, 128>}, {pipeline_mode = #tpu.pipeline_mode<synchronous>, transform_indices = @transform_1, window_bounds = array<i64: 1, 128>}, {pipeline_mode = #tpu.pipeline_mode<synchronous>, transform_indices = @transform_2, window_bounds = array<i64: 1, 128>}, {pipeline_mode = #tpu.pipeline_mode<synchronous>, transform_indices = @transform_3, window_bounds = array<i64: 128, 128>}, {transform_indices = @transform_4, window_bounds = array<i64: 256, 128>}, {transform_indices = @transform_5, window_bounds = array<i64: 1, 2, 128>}]} {
    %c0 = arith.constant 0 : index
    %c0_0 = arith.constant 0 : index
    %0 = vector.load %arg1[%c0, %c0_0] : memref<256x128xbf16, #tpu.memory_space<vmem>>, vector<256x128xbf16>
    %c0_1 = arith.constant 0 : index
    %c0_2 = arith.constant 0 : index
    %1 = vector.load %arg2[%c0_1, %c0_2] : memref<1x128xf32, #tpu.memory_space<vmem>>, vector<1x128xf32>
    %2 = arith.extf %0 : vector<256x128xbf16> to vector<256x128xf32>
    %3 = vector.broadcast %1 : vector<1x128xf32> to vector<256x128xf32>
    %4 = arith.mulf %2, %3 : vector<256x128xf32>
    %c0_3 = arith.constant 0 : index
    %c0_4 = arith.constant 0 : index
    %5 = vector.load %arg3[%c0_3, %c0_4] : memref<1x128xf32, #tpu.memory_space<vmem>>, vector<1x128xf32>
    %6 = vector.broadcast %5 : vector<1x128xf32> to vector<256x128xf32>
    %7 = arith.addf %4, %6 : vector<256x128xf32>
    %cst = arith.constant 0.000000e+00 : f32
    %8 = vector.broadcast %cst : f32 to vector<256x128xf32>
    %9 = arith.maximumf %7, %8 : vector<256x128xf32>
    %10 = arith.truncf %9 : vector<256x128xf32> to vector<256x128xbf16>
    %c0_5 = arith.constant 0 : index
    %c0_6 = arith.constant 0 : index
    %11 = vector.load %arg4[%c0_5, %c0_6] : memref<128x128xbf16, #tpu.memory_space<vmem>>, vector<128x128xbf16>
    %cst_7 = arith.constant dense<0.000000e+00> : vector<256x128xf32>
    %12 = tpu.matmul %10, %11, %cst_7 {dimension_numbers = #tpu.dot_dimension_numbers<[1], [0], [0], [1], [0, 0, 1, 1], [], []>} : vector<256x128xbf16>, vector<128x128xbf16>, vector<256x128xf32> -> vector<256x128xf32>
    %13 = arith.truncf %12 : vector<256x128xf32> to vector<256x128xbf16>
    %c0_8 = arith.constant 0 : index
    %c0_9 = arith.constant 0 : index
    %14 = vector.load %arg5[%c0_8, %c0_9] : memref<256x128xbf16, #tpu.memory_space<vmem>>, vector<256x128xbf16>
    tpu.vector_store %arg5[%c0_8, %c0_9], %13 {strides = array<i32>} : memref<256x128xbf16, #tpu.memory_space<vmem>>, vector<256x128xbf16>,
    %cst_10 = arith.constant dense<0.000000e+00> : vector<128xf32>
    %15 = vector.multi_reduction <add>, %12, %cst_10 [0] : vector<256x128xf32> to vector<128xf32>
    %16 = vector.shape_cast %15 : vector<128xf32> to vector<1x128xf32>
    %17 = arith.mulf %12, %12 : vector<256x128xf32>
    %cst_11 = arith.constant dense<0.000000e+00> : vector<128xf32>
    %18 = vector.multi_reduction <add>, %17, %cst_11 [0] : vector<256x128xf32> to vector<128xf32>
    %19 = vector.shape_cast %18 : vector<128xf32> to vector<1x128xf32>
    %20 = tpu.concatenate %16, %19 in 0 : vector<1x128xf32>, vector<1x128xf32> -> vector<2x128xf32>
    %c0_12 = arith.constant 0 : index
    %c0_13 = arith.constant 0 : index
    %c0_14 = arith.constant 0 : index
    %21 = vector.load %arg6[%c0_12, %c0_13, %c0_14] : memref<1x2x128xf32, #tpu.memory_space<vmem>>, vector<1x2x128xf32>
    %22 = vector.shape_cast %21 : vector<1x2x128xf32> to vector<2x128xf32>
    %23 = vector.shape_cast %20 : vector<2x128xf32> to vector<1x2x128xf32>
    tpu.vector_store %arg6[%c0_12, %c0_13, %c0_14], %23 {strides = array<i32>} : memref<1x2x128xf32, #tpu.memory_space<vmem>>, vector<1x2x128xf32>,
    return
  }
  func.func @transform_0(%arg0: i32) -> (i32, i32) {
    %c0_i32 = arith.constant 0 : i32
    %c0_i32_0 = arith.constant 0 : i32
    return %arg0, %c0_i32 : i32, i32
  }
  func.func @transform_1(%arg0: i32) -> (i32, i32) {
    %c0_i32 = arith.constant 0 : i32
    %c0_i32_0 = arith.constant 0 : i32
    %c0_i32_1 = arith.constant 0 : i32
    return %c0_i32, %c0_i32_0 : i32, i32
  }
  func.func @transform_2(%arg0: i32) -> (i32, i32) {
    %c0_i32 = arith.constant 0 : i32
    %c0_i32_0 = arith.constant 0 : i32
    %c0_i32_1 = arith.constant 0 : i32
    return %c0_i32, %c0_i32_0 : i32, i32
  }
  func.func @transform_3(%arg0: i32) -> (i32, i32) {
    %c0_i32 = arith.constant 0 : i32
    %c0_i32_0 = arith.constant 0 : i32
    %c0_i32_1 = arith.constant 0 : i32
    return %c0_i32, %c0_i32_0 : i32, i32
  }
  func.func @transform_4(%arg0: i32) -> (i32, i32) {
    %c0_i32 = arith.constant 0 : i32
    %c0_i32_0 = arith.constant 0 : i32
    return %arg0, %c0_i32 : i32, i32
  }
  func.func @transform_5(%arg0: i32) -> (i32, i32, i32) {
    %c0_i32 = arith.constant 0 : i32
    %c0_i32_0 = arith.constant 0 : i32
    %c0_i32_1 = arith.constant 0 : i32
    return %arg0, %c0_i32, %c0_i32_0 : i32, i32, i32
  }
}

module attributes {stable_mosaic.version = 11 : i64} {
  func.func @_stage2_kernel(%arg0: i32, %arg1: memref<1x256x128xbf16, #tpu.memory_space<vmem>>, %arg2: memref<1x128xf32, #tpu.memory_space<vmem>>, %arg3: memref<1x128xf32, #tpu.memory_space<vmem>>, %arg4: memref<3x384x128xbf16, #tpu.memory_space<vmem>>, %arg5: memref<1x256x128xbf16, #tpu.memory_space<vmem>>, %arg6: memref<1x2x128xf32, #tpu.memory_space<vmem>>) attributes {dimension_semantics = [#tpu.dimension_semantics<parallel>], iteration_bounds = array<i64: 2>, scalar_prefetch = 0 : i64, scratch_operands = 0 : i64, tpu.core_type = #tpu.core_type<tc>, window_params = [{transform_indices = @transform_0, window_bounds = array<i64: 1, 256, 128>}, {pipeline_mode = #tpu.pipeline_mode<synchronous>, transform_indices = @transform_1, window_bounds = array<i64: 1, 128>}, {pipeline_mode = #tpu.pipeline_mode<synchronous>, transform_indices = @transform_2, window_bounds = array<i64: 1, 128>}, {pipeline_mode = #tpu.pipeline_mode<synchronous>, transform_indices = @transform_3, window_bounds = array<i64: 3, 384, 128>}, {transform_indices = @transform_4, window_bounds = array<i64: 1, 256, 128>}, {transform_indices = @transform_5, window_bounds = array<i64: 1, 2, 128>}]} {
    %c0 = arith.constant 0 : index
    %c0_0 = arith.constant 0 : index
    %c0_1 = arith.constant 0 : index
    %0 = vector.load %arg1[%c0, %c0_0, %c0_1] : memref<1x256x128xbf16, #tpu.memory_space<vmem>>, vector<1x256x128xbf16>
    %1 = vector.shape_cast %0 : vector<1x256x128xbf16> to vector<256x128xbf16>
    %c0_2 = arith.constant 0 : index
    %c0_3 = arith.constant 0 : index
    %2 = vector.load %arg2[%c0_2, %c0_3] : memref<1x128xf32, #tpu.memory_space<vmem>>, vector<1x128xf32>
    %3 = arith.extf %1 : vector<256x128xbf16> to vector<256x128xf32>
    %4 = vector.broadcast %2 : vector<1x128xf32> to vector<256x128xf32>
    %5 = arith.mulf %3, %4 : vector<256x128xf32>
    %c0_4 = arith.constant 0 : index
    %c0_5 = arith.constant 0 : index
    %6 = vector.load %arg3[%c0_4, %c0_5] : memref<1x128xf32, #tpu.memory_space<vmem>>, vector<1x128xf32>
    %7 = vector.broadcast %6 : vector<1x128xf32> to vector<256x128xf32>
    %8 = arith.addf %5, %7 : vector<256x128xf32>
    %cst = arith.constant 0.000000e+00 : f32
    %9 = vector.broadcast %cst : f32 to vector<256x128xf32>
    %10 = arith.maximumf %8, %9 : vector<256x128xf32>
    %11 = arith.truncf %10 : vector<256x128xf32> to vector<256x128xbf16>
    %12 = tpu.iota {dimensions = array<i32: 0>} : vector<256x1xi32>
    %c16_i32 = arith.constant 16 : i32
    %c0_i32 = arith.constant 0 : i32
    %13 = arith.cmpi eq, %c16_i32, %c0_i32 : i32
    %c1_i32 = arith.constant 1 : i32
    %14 = arith.select %13, %c1_i32, %c16_i32 : i32
    %15 = vector.broadcast %14 : i32 to vector<256x1xi32>
    %16 = arith.remsi %12, %15 : vector<256x1xi32>
    %c0_i32_6 = arith.constant 0 : i32
    %17 = vector.broadcast %c0_i32_6 : i32 to vector<256x1xi32>
    %18 = arith.cmpi ne, %16, %17 : vector<256x1xi32>
    %c0_i32_7 = arith.constant 0 : i32
    %19 = vector.broadcast %c0_i32_7 : i32 to vector<256x1xi32>
    %20 = arith.cmpi slt, %16, %19 : vector<256x1xi32>
    %c0_i32_8 = arith.constant 0 : i32
    %21 = arith.cmpi slt, %14, %c0_i32_8 : i32
    %22 = vector.broadcast %21 : i1 to vector<256x1xi1>
    %23 = vector.broadcast %22 : vector<256x1xi1> to vector<256x1xi1>
    %24 = arith.xori %20, %23 : vector<256x1xi1>
    %25 = arith.andi %24, %18 : vector<256x1xi1>
    %26 = vector.broadcast %14 : i32 to vector<256x1xi32>
    %27 = arith.addi %16, %26 : vector<256x1xi32>
    %28 = arith.select %25, %27, %16 : vector<256x1xi1>, vector<256x1xi32>
    %c0_i32_9 = arith.constant 0 : i32
    %29 = vector.broadcast %c0_i32_9 : i32 to vector<256x1xi32>
    %30 = arith.cmpi eq, %28, %29 : vector<256x1xi32>
    %cst_10 = arith.constant 0.000000e+00 : bf16
    %31 = vector.broadcast %cst_10 : bf16 to vector<256x128xbf16>
    %32 = vector.shape_cast %30 : vector<256x1xi1> to vector<256x1xi1>
    %33 = vector.broadcast %32 : vector<256x1xi1> to vector<256x128xi1>
    %34 = arith.select %33, %31, %11 : vector<256x128xi1>, vector<256x128xbf16>
    %c15_i32 = arith.constant 15 : i32
    %35 = vector.broadcast %c15_i32 : i32 to vector<256x1xi32>
    %36 = arith.cmpi eq, %28, %35 : vector<256x1xi32>
    %cst_11 = arith.constant 0.000000e+00 : bf16
    %37 = vector.broadcast %cst_11 : bf16 to vector<256x128xbf16>
    %38 = vector.shape_cast %36 : vector<256x1xi1> to vector<256x1xi1>
    %39 = vector.broadcast %38 : vector<256x1xi1> to vector<256x128xi1>
    %40 = arith.select %39, %37, %11 : vector<256x128xi1>, vector<256x128xbf16>
    %cst_12 = arith.constant 0.000000e+00 : bf16
    %41 = vector.broadcast %cst_12 : bf16 to vector<17x128xbf16>
    %42 = vector.extract_strided_slice %40 {offsets = [0, 0], sizes = [239, 128], strides = [1, 1]} : vector<256x128xbf16> to vector<239x128xbf16>
    %43 = tpu.concatenate %41, %42 in 0 : vector<17x128xbf16>, vector<239x128xbf16> -> vector<256x128xbf16>
    %cst_13 = arith.constant 0.000000e+00 : bf16
    %44 = vector.broadcast %cst_13 : bf16 to vector<16x128xbf16>
    %45 = vector.extract_strided_slice %11 {offsets = [0, 0], sizes = [240, 128], strides = [1, 1]} : vector<256x128xbf16> to vector<240x128xbf16>
    %46 = tpu.concatenate %44, %45 in 0 : vector<16x128xbf16>, vector<240x128xbf16> -> vector<256x128xbf16>
    %cst_14 = arith.constant 0.000000e+00 : bf16
    %47 = vector.broadcast %cst_14 : bf16 to vector<15x128xbf16>
    %48 = vector.extract_strided_slice %34 {offsets = [0, 0], sizes = [241, 128], strides = [1, 1]} : vector<256x128xbf16> to vector<241x128xbf16>
    %49 = tpu.concatenate %47, %48 in 0 : vector<15x128xbf16>, vector<241x128xbf16> -> vector<256x128xbf16>
    %50 = tpu.concatenate %43, %46, %49 in 1 : vector<256x128xbf16>, vector<256x128xbf16>, vector<256x128xbf16> -> vector<256x384xbf16>
    %c0_15 = arith.constant 0 : index
    %c0_16 = arith.constant 0 : index
    %c0_17 = arith.constant 0 : index
    %51 = vector.load %arg4[%c0_15, %c0_16, %c0_17] : memref<3x384x128xbf16, #tpu.memory_space<vmem>>, vector<1x384x128xbf16>
    %52 = vector.shape_cast %51 : vector<1x384x128xbf16> to vector<384x128xbf16>
    %cst_18 = arith.constant dense<0.000000e+00> : vector<256x128xf32>
    %53 = tpu.matmul %50, %52, %cst_18 {dimension_numbers = #tpu.dot_dimension_numbers<[1], [0], [0], [1], [0, 0, 1, 1], [], []>} : vector<256x384xbf16>, vector<384x128xbf16>, vector<256x128xf32> -> vector<256x128xf32>
    %cst_19 = arith.constant 0.000000e+00 : bf16
    %54 = vector.broadcast %cst_19 : bf16 to vector<1x128xbf16>
    %55 = vector.extract_strided_slice %40 {offsets = [0, 0], sizes = [255, 128], strides = [1, 1]} : vector<256x128xbf16> to vector<255x128xbf16>
    %56 = tpu.concatenate %54, %55 in 0 : vector<1x128xbf16>, vector<255x128xbf16> -> vector<256x128xbf16>
    %57 = vector.extract_strided_slice %34 {offsets = [1, 0], sizes = [255, 128], strides = [1, 1]} : vector<256x128xbf16> to vector<255x128xbf16>
    %cst_20 = arith.constant 0.000000e+00 : bf16
    %58 = vector.broadcast %cst_20 : bf16 to vector<1x128xbf16>
    %59 = tpu.concatenate %57, %58 in 0 : vector<255x128xbf16>, vector<1x128xbf16> -> vector<256x128xbf16>
    %60 = tpu.concatenate %56, %11, %59 in 1 : vector<256x128xbf16>, vector<256x128xbf16>, vector<256x128xbf16> -> vector<256x384xbf16>
    %c1 = arith.constant 1 : index
    %c0_21 = arith.constant 0 : index
    %c0_22 = arith.constant 0 : index
    %61 = vector.load %arg4[%c1, %c0_21, %c0_22] : memref<3x384x128xbf16, #tpu.memory_space<vmem>>, vector<1x384x128xbf16>
    %62 = vector.shape_cast %61 : vector<1x384x128xbf16> to vector<384x128xbf16>
    %cst_23 = arith.constant dense<0.000000e+00> : vector<256x128xf32>
    %63 = tpu.matmul %60, %62, %cst_23 {dimension_numbers = #tpu.dot_dimension_numbers<[1], [0], [0], [1], [0, 0, 1, 1], [], []>} : vector<256x384xbf16>, vector<384x128xbf16>, vector<256x128xf32> -> vector<256x128xf32>
    %64 = arith.addf %53, %63 : vector<256x128xf32>
    %65 = vector.extract_strided_slice %40 {offsets = [15, 0], sizes = [241, 128], strides = [1, 1]} : vector<256x128xbf16> to vector<241x128xbf16>
    %cst_24 = arith.constant 0.000000e+00 : bf16
    %66 = vector.broadcast %cst_24 : bf16 to vector<15x128xbf16>
    %67 = tpu.concatenate %65, %66 in 0 : vector<241x128xbf16>, vector<15x128xbf16> -> vector<256x128xbf16>
    %68 = vector.extract_strided_slice %11 {offsets = [16, 0], sizes = [240, 128], strides = [1, 1]} : vector<256x128xbf16> to vector<240x128xbf16>
    %cst_25 = arith.constant 0.000000e+00 : bf16
    %69 = vector.broadcast %cst_25 : bf16 to vector<16x128xbf16>
    %70 = tpu.concatenate %68, %69 in 0 : vector<240x128xbf16>, vector<16x128xbf16> -> vector<256x128xbf16>
    %71 = vector.extract_strided_slice %34 {offsets = [17, 0], sizes = [239, 128], strides = [1, 1]} : vector<256x128xbf16> to vector<239x128xbf16>
    %cst_26 = arith.constant 0.000000e+00 : bf16
    %72 = vector.broadcast %cst_26 : bf16 to vector<17x128xbf16>
    %73 = tpu.concatenate %71, %72 in 0 : vector<239x128xbf16>, vector<17x128xbf16> -> vector<256x128xbf16>
    %74 = tpu.concatenate %67, %70, %73 in 1 : vector<256x128xbf16>, vector<256x128xbf16>, vector<256x128xbf16> -> vector<256x384xbf16>
    %c2 = arith.constant 2 : index
    %c0_27 = arith.constant 0 : index
    %c0_28 = arith.constant 0 : index
    %75 = vector.load %arg4[%c2, %c0_27, %c0_28] : memref<3x384x128xbf16, #tpu.memory_space<vmem>>, vector<1x384x128xbf16>
    %76 = vector.shape_cast %75 : vector<1x384x128xbf16> to vector<384x128xbf16>
    %cst_29 = arith.constant dense<0.000000e+00> : vector<256x128xf32>
    %77 = tpu.matmul %74, %76, %cst_29 {dimension_numbers = #tpu.dot_dimension_numbers<[1], [0], [0], [1], [0, 0, 1, 1], [], []>} : vector<256x384xbf16>, vector<384x128xbf16>, vector<256x128xf32> -> vector<256x128xf32>
    %78 = arith.addf %64, %77 : vector<256x128xf32>
    %79 = arith.truncf %78 : vector<256x128xf32> to vector<256x128xbf16>
    %c0_30 = arith.constant 0 : index
    %c0_31 = arith.constant 0 : index
    %c0_32 = arith.constant 0 : index
    %80 = vector.load %arg5[%c0_30, %c0_31, %c0_32] : memref<1x256x128xbf16, #tpu.memory_space<vmem>>, vector<1x256x128xbf16>
    %81 = vector.shape_cast %80 : vector<1x256x128xbf16> to vector<256x128xbf16>
    %82 = vector.shape_cast %79 : vector<256x128xbf16> to vector<1x256x128xbf16>
    tpu.vector_store %arg5[%c0_30, %c0_31, %c0_32], %82 {strides = array<i32>} : memref<1x256x128xbf16, #tpu.memory_space<vmem>>, vector<1x256x128xbf16>,
    %cst_33 = arith.constant dense<0.000000e+00> : vector<128xf32>
    %83 = vector.multi_reduction <add>, %78, %cst_33 [0] : vector<256x128xf32> to vector<128xf32>
    %84 = vector.shape_cast %83 : vector<128xf32> to vector<1x128xf32>
    %85 = arith.mulf %78, %78 : vector<256x128xf32>
    %cst_34 = arith.constant dense<0.000000e+00> : vector<128xf32>
    %86 = vector.multi_reduction <add>, %85, %cst_34 [0] : vector<256x128xf32> to vector<128xf32>
    %87 = vector.shape_cast %86 : vector<128xf32> to vector<1x128xf32>
    %88 = tpu.concatenate %84, %87 in 0 : vector<1x128xf32>, vector<1x128xf32> -> vector<2x128xf32>
    %c0_35 = arith.constant 0 : index
    %c0_36 = arith.constant 0 : index
    %c0_37 = arith.constant 0 : index
    %89 = vector.load %arg6[%c0_35, %c0_36, %c0_37] : memref<1x2x128xf32, #tpu.memory_space<vmem>>, vector<1x2x128xf32>
    %90 = vector.shape_cast %89 : vector<1x2x128xf32> to vector<2x128xf32>
    %91 = vector.shape_cast %88 : vector<2x128xf32> to vector<1x2x128xf32>
    tpu.vector_store %arg6[%c0_35, %c0_36, %c0_37], %91 {strides = array<i32>} : memref<1x2x128xf32, #tpu.memory_space<vmem>>, vector<1x2x128xf32>,
    return
  }
  func.func @transform_0(%arg0: i32) -> (i32, i32, i32) {
    %c0_i32 = arith.constant 0 : i32
    %c0_i32_0 = arith.constant 0 : i32
    %c0_i32_1 = arith.constant 0 : i32
    return %arg0, %c0_i32, %c0_i32_0 : i32, i32, i32
  }
  func.func @transform_1(%arg0: i32) -> (i32, i32) {
    %c0_i32 = arith.constant 0 : i32
    %c0_i32_0 = arith.constant 0 : i32
    %c0_i32_1 = arith.constant 0 : i32
    return %c0_i32, %c0_i32_0 : i32, i32
  }
  func.func @transform_2(%arg0: i32) -> (i32, i32) {
    %c0_i32 = arith.constant 0 : i32
    %c0_i32_0 = arith.constant 0 : i32
    %c0_i32_1 = arith.constant 0 : i32
    return %c0_i32, %c0_i32_0 : i32, i32
  }
  func.func @transform_3(%arg0: i32) -> (i32, i32, i32) {
    %c0_i32 = arith.constant 0 : i32
    %c0_i32_0 = arith.constant 0 : i32
    %c0_i32_1 = arith.constant 0 : i32
    %c0_i32_2 = arith.constant 0 : i32
    return %c0_i32, %c0_i32_0, %c0_i32_1 : i32, i32, i32
  }
  func.func @transform_4(%arg0: i32) -> (i32, i32, i32) {
    %c0_i32 = arith.constant 0 : i32
    %c0_i32_0 = arith.constant 0 : i32
    %c0_i32_1 = arith.constant 0 : i32
    return %arg0, %c0_i32, %c0_i32_0 : i32, i32, i32
  }
  func.func @transform_5(%arg0: i32) -> (i32, i32, i32) {
    %c0_i32 = arith.constant 0 : i32
    %c0_i32_0 = arith.constant 0 : i32
    %c0_i32_1 = arith.constant 0 : i32
    return %arg0, %c0_i32, %c0_i32_0 : i32, i32, i32
  }
}

</mosaic_0001>

<llo_original>
// kernel: _bottleneck_jit.4
$region0: #{_bottleneck_jit.4}
  #allocation0 [shape = 'u32[]', space=smem, size = 0x4, offset = 0x4, fixed_abs, tag = 'smem constant byte address 0x4 - core index']
  #allocation1 [shape = 'u32[144,128]{1,0:T(1,128)}', space=vmem, size = 0x12000, scoped, tag = 'internal scratch']
  %s0 = inlined_call_operand.vmem [shape: bf16[512,128], index: 0, kind: input, shape index: {}]
  %s1 = inlined_call_operand.vmem [shape: bf16[128,128], index: 1, kind: input, shape index: {}]
  %s2 = inlined_call_operand.vmem [shape: bf16[512,128], index: 2, kind: output, shape index: {0}]
  %s3 = inlined_call_operand.vmem [shape: f32[2,2,128], index: 3, kind: output, shape index: {1}]
  %4 = xla_tuple %s2, %s3
  %s5 = sld [smem:[#allocation0]]
  $region49: #{_bottleneck_jit.4} parent=0
    _
  %s7 = ssub.s32 1, %s5
  %s8 = scalar_select 0, %s7, %s5
  loop: start=0, step=1, limit=4
  $region2: #{_bottleneck_jit.4} parent=0 // loop_pre_header
    _
  $region3: #{_bottleneck_jit.4} parent=0 // loop_header
    %s10 = sphi 0, %s14
    %p11 = scmp.ge.s32.totalorder %s10, 4
    %s20 = sphi 0, %s22
    %s23 = sphi 0, %s20
    %s24 = sphi 0, %s23
    %s40 = sphi 0, %s24
    %s44 = sphi 0, %s44
    %s46 = sphi 0, %s44
    %s47 = sphi 0, %s46
    %s61 = sphi 0, %s47
    %s67 = sphi 0, %s69
    %s70 = sphi 0, %s67
    %s71 = sphi 0, %s70
    %s87 = sphi 0, %s71
    %s93 = sphi 0, %s95
    %s96 = sphi 0, %s93
    %s97 = sphi 0, %s96
    %s113 = sphi 0, %s97
  $region4: #{_bottleneck_jit.4} parent=0 // loop_header_branch
    %13 = sbr.rel (%p11) target = $region8
  $region5: #{_bottleneck_jit.4} parent=0 // loop_body
    %s15 = ssub.s32 %s10, 1
    %s16 = ssub.s32 %s10, 2
    %s17 = sadd.s32 %s10, 1
    %s18 = ssub.s32 %s10, %s17
    %p19 = scmp.eq.s32.totalorder %s18, 0
    %s21 = sadd.s32 %s20, 1
    %s22 = scalar_select %p19, %s20, %s21
    %p25 = pneg %p19
    %p26 = scmp.eq.s32.totalorder %s10, 1
    %p27 = por %p25, %p26
    %p28 = scmp.ne.s32.totalorder %s20, %s23
    %p29 = scmp.eq.s32.totalorder %s10, 0
    %p30 = por %p28, %p29
    %p31 = scmp.ne.s32.totalorder %s20, %s23
    %p32 = scmp.eq.s32.totalorder %s15, 1
    %p33 = por %p31, %p32
    %p34 = scmp.ne.s32.totalorder %s23, %s24
    %p35 = scmp.eq.s32.totalorder %s15, 0
    %p36 = por %p34, %p35
    %p37 = scmp.ne.s32.totalorder %s23, %s24
    %p38 = scmp.eq.s32.totalorder %s16, 1
    %p39 = por %p37, %p38
    %p41 = scmp.ne.s32.totalorder %s24, %s40
    %p42 = scmp.eq.s32.totalorder %s16, 0
    %p43 = por %p41, %p42
    %s45 = sadd.s32 %s44, 1
    %p48 = scmp.eq.s32.totalorder %s10, 1
    %p49 = scmp.ne.s32.totalorder %s44, %s46
    %p50 = scmp.eq.s32.totalorder %s10, 0
    %p51 = por %p49, %p50
    %p52 = scmp.ne.s32.totalorder %s44, %s46
    %p53 = scmp.eq.s32.totalorder %s15, 1
    %p54 = por %p52, %p53
    %p55 = scmp.ne.s32.totalorder %s46, %s47
    %p56 = scmp.eq.s32.totalorder %s15, 0
    %p57 = por %p55, %p56
    %p58 = scmp.ne.s32.totalorder %s46, %s47
    %p59 = scmp.eq.s32.totalorder %s16, 1
    %p60 = por %p58, %p59
    %p62 = scmp.ne.s32.totalorder %s47, %s61
    %p63 = scmp.eq.s32.totalorder %s16, 0
    %p64 = por %p62, %p63
    %s65 = ssub.s32 %s10, %s17
    %p66 = scmp.eq.s32.totalorder %s65, 0
    %s68 = sadd.s32 %s67, 1
    %s69 = scalar_select %p66, %s67, %s68
    %p72 = pneg %p66
    %p73 = scmp.eq.s32.totalorder %s10, 1
    %p74 = por %p72, %p73
    %p75 = scmp.ne.s32.totalorder %s67, %s70
    %p76 = scmp.eq.s32.totalorder %s10, 0
    %p77 = por %p75, %p76
    %p78 = scmp.ne.s32.totalorder %s67, %s70
    %p79 = scmp.eq.s32.totalorder %s15, 1
    %p80 = por %p78, %p79
    %p81 = scmp.ne.s32.totalorder %s70, %s71
    %p82 = scmp.eq.s32.totalorder %s15, 0
    %p83 = por %p81, %p82
    %p84 = scmp.ne.s32.totalorder %s70, %s71
    %p85 = scmp.eq.s32.totalorder %s16, 1
    %p86 = por %p84, %p85
    %p88 = scmp.ne.s32.totalorder %s71, %s87
    %p89 = scmp.eq.s32.totalorder %s16, 0
    %p90 = por %p88, %p89
    %s91 = ssub.s32 %s10, %s17
    %p92 = scmp.eq.s32.totalorder %s91, 0
    %s94 = sadd.s32 %s93, 1
    %s95 = scalar_select %p92, %s93, %s94
    %p98 = pneg %p92
    %p99 = scmp.eq.s32.totalorder %s10, 1
    %p100 = por %p98, %p99
    %p101 = scmp.ne.s32.totalorder %s93, %s96
    %p102 = scmp.eq.s32.totalorder %s10, 0
    %p103 = por %p101, %p102
    %p104 = scmp.ne.s32.totalorder %s93, %s96
    %p105 = scmp.eq.s32.totalorder %s15, 1
    %p106 = por %p104, %p105
    %p107 = scmp.ne.s32.totalorder %s96, %s97
    %p108 = scmp.eq.s32.totalorder %s15, 0
    %p109 = por %p107, %p108
    %p110 = scmp.ne.s32.totalorder %s96, %s97
    %p111 = scmp.eq.s32.totalorder %s16, 1
    %p112 = por %p110, %p111
    %p114 = scmp.ne.s32.totalorder %s97, %s113
    %p115 = scmp.eq.s32.totalorder %s16, 0
    %p116 = por %p114, %p115
    %p117 = scmp.le.s32.totalorder 1, %s10
    %p118 = scmp.lt.s32.totalorder %s10, 3
    %p119 = pnand %p117, %p118
    %p120 = pneg %p119
    // Predicated region
    $region9: #{_bottleneck_jit.4} parent=5 // pred_check
      _
    $region10: #{_bottleneck_jit.4} parent=5 // pred_check_branch
      %122 = sbr.rel (%p119) target = $region12
    $region11: #{_bottleneck_jit.4} parent=5 // pred_region
      %s123 = ssub.s32 %s10, 1
      // Predicated region
      $region13: #{_bottleneck_jit.4} parent=11 // pred_check
        %p124 = pneg %p57
      $region14: #{_bottleneck_jit.4} parent=11 // pred_check_branch
        %126 = sbr.rel (%p124) target = $region16
      $region15: #{_bottleneck_jit.4} parent=11 // pred_region
        _
      $region16: #{_bottleneck_jit.4} parent=11 // pred_fallthru
        _
    $region12: #{_bottleneck_jit.4} parent=5 // pred_fallthru
      _
    %p127 = scmp.lt.s32.totalorder %s10, 2
    // Predicated region
    $region17: #{_bottleneck_jit.4} parent=5 // pred_check
      %p128 = pneg %p127
    $region18: #{_bottleneck_jit.4} parent=5 // pred_check_branch
      %130 = sbr.rel (%p128) target = $region20
    $region19: #{_bottleneck_jit.4} parent=5 // pred_region
      // Predicated region
      $region21: #{_bottleneck_jit.4} parent=19 // pred_check
        %p131 = pneg %p30
      $region22: #{_bottleneck_jit.4} parent=19 // pred_check_branch
        %133 = sbr.rel (%p131) target = $region24
      $region23: #{_bottleneck_jit.4} parent=19 // pred_region
        %s134 = smul.u32 32, %s10
        %p135 = scmp.lt.s32.totalorder %s134, 63
        %s136 = scalar_select %p135, %s134, 63
        %s137 = smul.addr %s136, 4
        %s138 = scalar_lea.vmem %s0, %s137
        %s139 = smul.u32 32, %s10
      $region24: #{_bottleneck_jit.4} parent=19 // pred_fallthru
        _
    $region20: #{_bottleneck_jit.4} parent=5 // pred_fallthru
      _
    %p140 = scmp.le.s32.totalorder 1, %s10
    %p141 = scmp.lt.s32.totalorder %s10, 3
    %p142 = pnand %p140, %p141
    %p143 = pneg %p142
    // Predicated region
    $region25: #{_bottleneck_jit.4} parent=5 // pred_check
      _
    $region26: #{_bottleneck_jit.4} parent=5 // pred_check_branch
      %145 = sbr.rel (%p142) target = $region28
    $region27: #{_bottleneck_jit.4} parent=5 // pred_region
      %s146 = ssub.s32 %s10, 1
      %s147 = smul.u32 32, %s15
      %p148 = scmp.lt.s32.totalorder %s147, 63
      %s149 = scalar_select %p148, %s147, 63
      %s150 = smul.addr %s149, 4
      %s151 = scalar_lea.vmem %s0, %s150
      %p152 = pneg %p36
      %p153 = pneg %p33
      %p154 = pneg %p57
      %p155 = pneg %p54
      %p156 = pneg %p83
      %p157 = pneg %p80
      %s158 = smul.u32 32, %s15
      %p159 = scmp.lt.s32.totalorder %s158, 63
      %s160 = scalar_select %p159, %s158, 63
      %s161 = smul.addr %s160, 4
      %s162 = scalar_lea.vmem %s2, %s161
      %p163 = pneg %p109
      %p164 = pneg %p106
      %p165 = scmp.lt.s32.totalorder %s15, 1
      %s166 = scalar_select %p165, %s15, 1
      %s167 = smul.addr %s166, 2
      %s168 = scalar_lea.vmem %s3, %s167
      %s169 = smul.u32 32, %s15
      %p170 = scmp.lt.s32.totalorder %s169, 63
      %s171 = scalar_select %p170, %s169, 63
      %s172 = smul.addr %s171, 4
      %s173 = scalar_lea.vmem %s0, %s172
      %s174 = smul.u32 32, %s15
      %s175 = smul.u32 32, %s15
      %p176 = scmp.lt.s32.totalorder %s175, 63
      %s177 = scalar_select %p176, %s175, 63
      %s178 = smul.addr %s177, 4
      %s179 = scalar_lea.vmem %s2, %s178
      %s180 = smul.u32 32, %s15
      %p181 = scmp.lt.s32.totalorder %s15, 1
      %s182 = scalar_select %p181, %s15, 1
      %s183 = smul.addr %s182, 2
      %s184 = scalar_lea.vmem %s3, %s183
      %v186 = vld [vmem:[%s173] sm:$0xf]
      %v187 = vld [vmem:[%s173 + $0x4] sm:$0xf]
      %v188 = vld [vmem:[%s173 + $0x8] sm:$0xf]
      %v189 = vld [vmem:[%s173 + $0xc] sm:$0xf]
      %v190 = vld [vmem:[%s173 + $0x10] sm:$0xf]
      %v191 = vld [vmem:[%s173 + $0x14] sm:$0xf]
      %v192 = vld [vmem:[%s173 + $0x18] sm:$0xf]
      %v193 = vld [vmem:[%s173 + $0x1c] sm:$0xf]
      %v194 = vld [vmem:[%s173 + $0x20] sm:$0xf]
      %v195 = vld [vmem:[%s173 + $0x24] sm:$0xf]
      %v196 = vld [vmem:[%s173 + $0x28] sm:$0xf]
      %v197 = vld [vmem:[%s173 + $0x2c] sm:$0xf]
      %v198 = vld [vmem:[%s173 + $0x30] sm:$0xf]
      %v199 = vld [vmem:[%s173 + $0x34] sm:$0xf]
      %v200 = vld [vmem:[%s173 + $0x38] sm:$0xf]
      %v201 = vld [vmem:[%s173 + $0x3c] sm:$0xf]
      %v202 = vld [vmem:[%s173 + $0x40] sm:$0xf]
      %v203 = vld [vmem:[%s173 + $0x44] sm:$0xf]
      %v204 = vld [vmem:[%s173 + $0x48] sm:$0xf]
      %v205 = vld [vmem:[%s173 + $0x4c] sm:$0xf]
      %v206 = vld [vmem:[%s173 + $0x50] sm:$0xf]
      %v207 = vld [vmem:[%s173 + $0x54] sm:$0xf]
      %v208 = vld [vmem:[%s173 + $0x58] sm:$0xf]
      %v209 = vld [vmem:[%s173 + $0x5c] sm:$0xf]
      %v210 = vld [vmem:[%s173 + $0x60] sm:$0xf]
      %v211 = vld [vmem:[%s173 + $0x64] sm:$0xf]
      %v212 = vld [vmem:[%s173 + $0x68] sm:$0xf]
      %v213 = vld [vmem:[%s173 + $0x6c] sm:$0xf]
      %v214 = vld [vmem:[%s173 + $0x70] sm:$0xf]
      %v215 = vld [vmem:[%s173 + $0x74] sm:$0xf]
      %v216 = vld [vmem:[%s173 + $0x78] sm:$0xf]
      %v217 = vld [vmem:[%s173 + $0x7c] sm:$0xf]
      %v218 = vld [vmem:[%s1] sm:$0xf]
      %v219 = vld [vmem:[%s1 + $0x4] sm:$0xf]
      %v220 = vld [vmem:[%s1 + $0x8] sm:$0xf]
      %v221 = vld [vmem:[%s1 + $0xc] sm:$0xf]
      %v222 = vld [vmem:[%s1 + $0x10] sm:$0xf]
      %v223 = vld [vmem:[%s1 + $0x14] sm:$0xf]
      %v224 = vld [vmem:[%s1 + $0x18] sm:$0xf]
      %v225 = vld [vmem:[%s1 + $0x1c] sm:$0xf]
      %v226 = vld [vmem:[%s1 + $0x20] sm:$0xf]
      %v227 = vld [vmem:[%s1 + $0x24] sm:$0xf]
      %v228 = vld [vmem:[%s1 + $0x28] sm:$0xf]
      %v229 = vld [vmem:[%s1 + $0x2c] sm:$0xf]
      %v230 = vld [vmem:[%s1 + $0x30] sm:$0xf]
      %v231 = vld [vmem:[%s1 + $0x34] sm:$0xf]
      %v232 = vld [vmem:[%s1 + $0x38] sm:$0xf]
      %v233 = vld [vmem:[%s1 + $0x3c] sm:$0xf]
      %v266 = vunpack.c.l.b16 %v186
      %v267 = vunpack.c.l.b16 %v187
      %v268 = vunpack.c.l.b16 %v188
      %v269 = vunpack.c.l.b16 %v189
      %v270 = vunpack.c.l.b16 %v190
      %v271 = vunpack.c.l.b16 %v191
      %v272 = vunpack.c.l.b16 %v192
      %v273 = vunpack.c.l.b16 %v193
      %v274 = vunpack.c.l.b16 %v194
      %v275 = vunpack.c.l.b16 %v195
      %v276 = vunpack.c.l.b16 %v196
      %v277 = vunpack.c.l.b16 %v197
      %v278 = vunpack.c.l.b16 %v198
      %v279 = vunpack.c.l.b16 %v199
      %v280 = vunpack.c.l.b16 %v200
      %v281 = vunpack.c.l.b16 %v201
      %v282 = vunpack.c.l.b16 %v202
      %v283 = vunpack.c.l.b16 %v203
      %v284 = vunpack.c.l.b16 %v204
      %v285 = vunpack.c.l.b16 %v205
      %v286 = vunpack.c.l.b16 %v206
      %v287 = vunpack.c.l.b16 %v207
      %v288 = vunpack.c.l.b16 %v208
      %v289 = vunpack.c.l.b16 %v209
      %v290 = vunpack.c.l.b16 %v210
      %v291 = vunpack.c.l.b16 %v211
      %v292 = vunpack.c.l.b16 %v212
      %v293 = vunpack.c.l.b16 %v213
      %v294 = vunpack.c.l.b16 %v214
      %v295 = vunpack.c.l.b16 %v215
      %v296 = vunpack.c.l.b16 %v216
      %v297 = vunpack.c.l.b16 %v217
      %v298 = vpack.c.b16 %v267, %v266
      %v299 = vpack.c.b16 %v269, %v268
      %v300 = vpack.c.b16 %v271, %v270
      %v301 = vpack.c.b16 %v273, %v272
      %v302 = vpack.c.b16 %v275, %v274
      %v303 = vpack.c.b16 %v277, %v276
      %v304 = vpack.c.b16 %v279, %v278
      %v305 = vpack.c.b16 %v281, %v280
      %v306 = vpack.c.b16 %v283, %v282
      %v307 = vpack.c.b16 %v285, %v284
      %v308 = vpack.c.b16 %v287, %v286
      %v309 = vpack.c.b16 %v289, %v288
      %v310 = vpack.c.b16 %v291, %v290
      %v311 = vpack.c.b16 %v293, %v292
      %v312 = vpack.c.b16 %v295, %v294
      %v313 = vpack.c.b16 %v297, %v296
      %v346 = vunpack.c.l.b16 %v218
      %v347 = vunpack.c.l.b16 %v219
      %v348 = vunpack.c.l.b16 %v220
      %v349 = vunpack.c.l.b16 %v221
      %v350 = vunpack.c.l.b16 %v222
      %v351 = vunpack.c.l.b16 %v223
      %v352 = vunpack.c.l.b16 %v224
      %v353 = vunpack.c.l.b16 %v225
      %v354 = vunpack.c.l.b16 %v226
      %v355 = vunpack.c.l.b16 %v227
      %v356 = vunpack.c.l.b16 %v228
      %v357 = vunpack.c.l.b16 %v229
      %v358 = vunpack.c.l.b16 %v230
      %v359 = vunpack.c.l.b16 %v231
      %v360 = vunpack.c.l.b16 %v232
      %v361 = vunpack.c.l.b16 %v233
      %v362 = vpack.c.b16 %v347, %v346
      %v363 = vpack.c.b16 %v349, %v348
      %v364 = vpack.c.b16 %v351, %v350
      %v365 = vpack.c.b16 %v353, %v352
      %v366 = vpack.c.b16 %v355, %v354
      %v367 = vpack.c.b16 %v357, %v356
      %v368 = vpack.c.b16 %v359, %v358
      %v369 = vpack.c.b16 %v361, %v360
      %378 = vmatprep.subr.bf16.mxu0 0
      %379 = vmatpush1.bf16.msra.mxu0 %v369
      %380 = vmatprep.subr.bf16.mxu0 0
      %381 = vmatpush1.bf16.msra.mxu0 %v368
      %382 = vmatprep.subr.bf16.mxu0 0
      %383 = vmatpush1.bf16.msra.mxu0 %v367
      %384 = vmatprep.subr.bf16.mxu0 0
      %385 = vmatpush1.bf16.msra.mxu0 %v366
      %386 = vmatprep.subr.bf16.mxu0 0
      %387 = vmatpush1.bf16.msra.mxu0 %v365
      %388 = vmatprep.subr.bf16.mxu0 0
      %389 = vmatpush1.bf16.msra.mxu0 %v364
      %390 = vmatprep.subr.bf16.mxu0 0
      %391 = vmatpush1.bf16.msra.mxu0 %v363
      %392 = vmatprep.subr.bf16.mxu0 0
      %393 = vmatpush1.bf16.msra.mxu0 %v362
      %394 = vmatprep.subr.bf16.mxu0 0
      %395 = vmatpush2.bf16.msra.mxu0 0
      %396 = vmatprep.subr.bf16.mxu0 0
      %397 = vmatpush2.bf16.msra.mxu0 0
      %398 = vmatprep.subr.bf16.mxu0 0
      %399 = vmatpush2.bf16.msra.mxu0 0
      %400 = vmatprep.subr.bf16.mxu0 0
      %401 = vmatpush2.bf16.msra.mxu0 0
      %402 = vmatprep.subr.bf16.mxu0 0
      %403 = vmatpush2.bf16.msra.mxu0 0
      %404 = vmatprep.subr.bf16.mxu0 0
      %405 = vmatpush2.bf16.msra.mxu0 0
      %406 = vmatprep.subr.bf16.mxu0 0
      %407 = vmatpush2.bf16.msra.mxu0 0
      %408 = vmatprep.subr.bf16.mxu0 0
      %409 = vmatpush2.bf16.msra.mxu0 0
      %410 = vmatprep.mubr.bf16.mxu0 0
      %411 = vmatmul.mubr.bf16.gmra.mxu0 %v298
      %v412 = vpop.f32.mrf.mxu0
      %v413 = vadd.f32 0.0, %v412
      %v414 = vpop.f32.mrf.mxu0
      %v415 = vpop.f32.mrf.mxu0
      %v416 = vadd.f32 0.0, %v415
      %v417 = vpop.f32.mrf.mxu0
      %418 = vmatprep.mubr.bf16.mxu0 0
      %419 = vmatmul.mubr.bf16.gmra.mxu0 %v299
      %v420 = vpop.f32.mrf.mxu0
      %v421 = vadd.f32 0.0, %v420
      %v422 = vpop.f32.mrf.mxu0
      %v423 = vpop.f32.mrf.mxu0
      %v424 = vadd.f32 0.0, %v423
      %v425 = vpop.f32.mrf.mxu0
      %426 = vmatprep.mubr.bf16.mxu0 0
      %427 = vmatmul.mubr.bf16.gmra.mxu0 %v300
      %v428 = vpop.f32.mrf.mxu0
      %v429 = vadd.f32 0.0, %v428
      %v430 = vpop.f32.mrf.mxu0
      %v431 = vpop.f32.mrf.mxu0
      %v432 = vadd.f32 0.0, %v431
      %v433 = vpop.f32.mrf.mxu0
      %434 = vmatprep.mubr.bf16.mxu0 0
      %435 = vmatmul.mubr.bf16.gmra.mxu0 %v301
      %v436 = vpop.f32.mrf.mxu0
      %v437 = vadd.f32 0.0, %v436
      %v438 = vpop.f32.mrf.mxu0
      %v439 = vpop.f32.mrf.mxu0
      %v440 = vadd.f32 0.0, %v439
      %v441 = vpop.f32.mrf.mxu0
      %442 = vmatprep.mubr.bf16.mxu0 0
      %443 = vmatmul.mubr.bf16.gmra.mxu0 %v302
      %v444 = vpop.f32.mrf.mxu0
      %v445 = vadd.f32 0.0, %v444
      %v446 = vpop.f32.mrf.mxu0
      %v447 = vpop.f32.mrf.mxu0
      %v448 = vadd.f32 0.0, %v447
      %v449 = vpop.f32.mrf.mxu0
      %450 = vmatprep.mubr.bf16.mxu0 0
      %451 = vmatmul.mubr.bf16.gmra.mxu0 %v303
      %v452 = vpop.f32.mrf.mxu0
      %v453 = vadd.f32 0.0, %v452
      %v454 = vpop.f32.mrf.mxu0
      %v455 = vpop.f32.mrf.mxu0
      %v456 = vadd.f32 0.0, %v455
      %v457 = vpop.f32.mrf.mxu0
      %458 = vmatprep.mubr.bf16.mxu0 0
      %459 = vmatmul.mubr.bf16.gmra.mxu0 %v304
      %v460 = vpop.f32.mrf.mxu0
      %v461 = vadd.f32 0.0, %v460
      %v462 = vpop.f32.mrf.mxu0
      %v463 = vpop.f32.mrf.mxu0
      %v464 = vadd.f32 0.0, %v463
      %v465 = vpop.f32.mrf.mxu0
      %466 = vmatprep.mubr.bf16.mxu0 0
      %467 = vmatmul.mubr.bf16.gmra.mxu0 %v305
      %v468 = vpop.f32.mrf.mxu0
      %v469 = vadd.f32 0.0, %v468
      %v470 = vpop.f32.mrf.mxu0
      %v471 = vpop.f32.mrf.mxu0
      %v472 = vadd.f32 0.0, %v471
      %v473 = vpop.f32.mrf.mxu0
      %474 = vmatprep.mubr.bf16.mxu0 0
      %475 = vmatmul.mubr.bf16.gmra.mxu0 %v306
      %v476 = vpop.f32.mrf.mxu0
      %v477 = vadd.f32 0.0, %v476
      %v478 = vpop.f32.mrf.mxu0
      %v479 = vpop.f32.mrf.mxu0
      %v480 = vadd.f32 0.0, %v479
      %v481 = vpop.f32.mrf.mxu0
      %482 = vmatprep.mubr.bf16.mxu0 0
      %483 = vmatmul.mubr.bf16.gmra.mxu0 %v307
      %v484 = vpop.f32.mrf.mxu0
      %v485 = vadd.f32 0.0, %v484
      %v486 = vpop.f32.mrf.mxu0
      %v487 = vpop.f32.mrf.mxu0
      %v488 = vadd.f32 0.0, %v487
      %v489 = vpop.f32.mrf.mxu0
      %490 = vmatprep.mubr.bf16.mxu0 0
      %491 = vmatmul.mubr.bf16.gmra.mxu0 %v308
      %v492 = vpop.f32.mrf.mxu0
      %v493 = vadd.f32 0.0, %v492
      %v494 = vpop.f32.mrf.mxu0
      %v495 = vpop.f32.mrf.mxu0
      %v496 = vadd.f32 0.0, %v495
      %v497 = vpop.f32.mrf.mxu0
      %498 = vmatprep.mubr.bf16.mxu0 0
      %499 = vmatmul.mubr.bf16.gmra.mxu0 %v309
      %v500 = vpop.f32.mrf.mxu0
      %v501 = vadd.f32 0.0, %v500
      %v502 = vpop.f32.mrf.mxu0
      %v503 = vpop.f32.mrf.mxu0
      %v504 = vadd.f32 0.0, %v503
      %v505 = vpop.f32.mrf.mxu0
      %506 = vmatprep.mubr.bf16.mxu0 0
      %507 = vmatmul.mubr.bf16.gmra.mxu0 %v310
      %v508 = vpop.f32.mrf.mxu0
      %v509 = vadd.f32 0.0, %v508
      %v510 = vpop.f32.mrf.mxu0
      %v511 = vpop.f32.mrf.mxu0
      %v512 = vadd.f32 0.0, %v511
      %v513 = vpop.f32.mrf.mxu0
      %514 = vmatprep.mubr.bf16.mxu0 0
      %515 = vmatmul.mubr.bf16.gmra.mxu0 %v311
      %v516 = vpop.f32.mrf.mxu0
      %v517 = vadd.f32 0.0, %v516
      %v518 = vpop.f32.mrf.mxu0
      %v519 = vpop.f32.mrf.mxu0
      %v520 = vadd.f32 0.0, %v519
      %v521 = vpop.f32.mrf.mxu0
      %522 = vmatprep.mubr.bf16.mxu0 0
      %523 = vmatmul.mubr.bf16.gmra.mxu0 %v312
      %v524 = vpop.f32.mrf.mxu0
      %v525 = vadd.f32 0.0, %v524
      %v526 = vpop.f32.mrf.mxu0
      %v527 = vpop.f32.mrf.mxu0
      %v528 = vadd.f32 0.0, %v527
      %v529 = vpop.f32.mrf.mxu0
      %530 = vmatprep.mubr.bf16.mxu0 0
      %531 = vmatmul.mubr.bf16.gmra.mxu0 %v313
      %v532 = vpop.f32.mrf.mxu0
      %v533 = vadd.f32 0.0, %v532
      %v534 = vpop.f32.mrf.mxu0
      %v535 = vpop.f32.mrf.mxu0
      %v536 = vadd.f32 0.0, %v535
      %v537 = vpop.f32.mrf.mxu0
      %538 = vdwg.mxu0
      %v539 = vpack.c.bf16 %v416, %v413
      %v540 = vpack.c.bf16 %v424, %v421
      %v541 = vpack.c.bf16 %v432, %v429
      %v542 = vpack.c.bf16 %v440, %v437
      %v543 = vpack.c.bf16 %v448, %v445
      %v544 = vpack.c.bf16 %v456, %v453
      %v545 = vpack.c.bf16 %v464, %v461
      %v546 = vpack.c.bf16 %v472, %v469
      %v547 = vpack.c.bf16 %v480, %v477
      %v548 = vpack.c.bf16 %v488, %v485
      %v549 = vpack.c.bf16 %v496, %v493
      %v550 = vpack.c.bf16 %v504, %v501
      %v551 = vpack.c.bf16 %v512, %v509
      %v552 = vpack.c.bf16 %v520, %v517
      %v553 = vpack.c.bf16 %v528, %v525
      %v554 = vpack.c.bf16 %v536, %v533
      %v571 = vunpack.c.l.b16 %v539
      %v572 = vunpack.c.h.b16 %v539
      %v573 = vunpack.c.l.b16 %v540
      %v574 = vunpack.c.h.b16 %v540
      %v575 = vunpack.c.l.b16 %v541
      %v576 = vunpack.c.h.b16 %v541
      %v577 = vunpack.c.l.b16 %v542
      %v578 = vunpack.c.h.b16 %v542
      %v579 = vunpack.c.l.b16 %v543
      %v580 = vunpack.c.h.b16 %v543
      %v581 = vunpack.c.l.b16 %v544
      %v582 = vunpack.c.h.b16 %v544
      %v583 = vunpack.c.l.b16 %v545
      %v584 = vunpack.c.h.b16 %v545
      %v585 = vunpack.c.l.b16 %v546
      %v586 = vunpack.c.h.b16 %v546
      %v587 = vunpack.c.l.b16 %v547
      %v588 = vunpack.c.h.b16 %v547
      %v589 = vunpack.c.l.b16 %v548
      %v590 = vunpack.c.h.b16 %v548
      %v591 = vunpack.c.l.b16 %v549
      %v592 = vunpack.c.h.b16 %v549
      %v593 = vunpack.c.l.b16 %v550
      %v594 = vunpack.c.h.b16 %v550
      %v595 = vunpack.c.l.b16 %v551
      %v596 = vunpack.c.h.b16 %v551
      %v597 = vunpack.c.l.b16 %v552
      %v598 = vunpack.c.h.b16 %v552
      %v599 = vunpack.c.l.b16 %v553
      %v600 = vunpack.c.h.b16 %v553
      %v601 = vunpack.c.l.b16 %v554
      %v602 = vunpack.c.h.b16 %v554
      %v603 = vpack.c.b16 %v571, %v571
      %v604 = vpack.c.b16 %v572, %v572
      %v605 = vpack.c.b16 %v573, %v573
      %v606 = vpack.c.b16 %v574, %v574
      %v607 = vpack.c.b16 %v575, %v575
      %v608 = vpack.c.b16 %v576, %v576
      %v609 = vpack.c.b16 %v577, %v577
      %v610 = vpack.c.b16 %v578, %v578
      %v611 = vpack.c.b16 %v579, %v579
      %v612 = vpack.c.b16 %v580, %v580
      %v613 = vpack.c.b16 %v581, %v581
      %v614 = vpack.c.b16 %v582, %v582
      %v615 = vpack.c.b16 %v583, %v583
      %v616 = vpack.c.b16 %v584, %v584
      %v617 = vpack.c.b16 %v585, %v585
      %v618 = vpack.c.b16 %v586, %v586
      %v619 = vpack.c.b16 %v587, %v587
      %v620 = vpack.c.b16 %v588, %v588
      %v621 = vpack.c.b16 %v589, %v589
      %v622 = vpack.c.b16 %v590, %v590
      %v623 = vpack.c.b16 %v591, %v591
      %v624 = vpack.c.b16 %v592, %v592
      %v625 = vpack.c.b16 %v593, %v593
      %v626 = vpack.c.b16 %v594, %v594
      %v627 = vpack.c.b16 %v595, %v595
      %v628 = vpack.c.b16 %v596, %v596
      %v629 = vpack.c.b16 %v597, %v597
      %v630 = vpack.c.b16 %v598, %v598
      %v631 = vpack.c.b16 %v599, %v599
      %v632 = vpack.c.b16 %v600, %v600
      %v633 = vpack.c.b16 %v601, %v601
      %v634 = vpack.c.b16 %v602, %v602
      %667 = vst [vmem:[%s179] sm:$0xf] %v603
      %668 = vst [vmem:[%s179 + $0x4] sm:$0xf] %v604
      %669 = vst [vmem:[%s179 + $0x8] sm:$0xf] %v605
      %670 = vst [vmem:[%s179 + $0xc] sm:$0xf] %v606
      %671 = vst [vmem:[%s179 + $0x10] sm:$0xf] %v607
      %672 = vst [vmem:[%s179 + $0x14] sm:$0xf] %v608
      %673 = vst [vmem:[%s179 + $0x18] sm:$0xf] %v609
      %674 = vst [vmem:[%s179 + $0x1c] sm:$0xf] %v610
      %675 = vst [vmem:[%s179 + $0x20] sm:$0xf] %v611
      %676 = vst [vmem:[%s179 + $0x24] sm:$0xf] %v612
      %677 = vst [vmem:[%s179 + $0x28] sm:$0xf] %v613
      %678 = vst [vmem:[%s179 + $0x2c] sm:$0xf] %v614
      %679 = vst [vmem:[%s179 + $0x30] sm:$0xf] %v615
      %680 = vst [vmem:[%s179 + $0x34] sm:$0xf] %v616
      %681 = vst [vmem:[%s179 + $0x38] sm:$0xf] %v617
      %682 = vst [vmem:[%s179 + $0x3c] sm:$0xf] %v618
      %683 = vst [vmem:[%s179 + $0x40] sm:$0xf] %v619
      %684 = vst [vmem:[%s179 + $0x44] sm:$0xf] %v620
      %685 = vst [vmem:[%s179 + $0x48] sm:$0xf] %v621
      %686 = vst [vmem:[%s179 + $0x4c] sm:$0xf] %v622
      %687 = vst [vmem:[%s179 + $0x50] sm:$0xf] %v623
      %688 = vst [vmem:[%s179 + $0x54] sm:$0xf] %v624
      %689 = vst [vmem:[%s179 + $0x58] sm:$0xf] %v625
      %690 = vst [vmem:[%s179 + $0x5c] sm:$0xf] %v626
      %691 = vst [vmem:[%s179 + $0x60] sm:$0xf] %v627
      %692 = vst [vmem:[%s179 + $0x64] sm:$0xf] %v628
      %693 = vst [vmem:[%s179 + $0x68] sm:$0xf] %v629
      %694 = vst [vmem:[%s179 + $0x6c] sm:$0xf] %v630
      %695 = vst [vmem:[%s179 + $0x70] sm:$0xf] %v631
      %696 = vst [vmem:[%s179 + $0x74] sm:$0xf] %v632
      %697 = vst [vmem:[%s179 + $0x78] sm:$0xf] %v633
      %698 = vst [vmem:[%s179 + $0x7c] sm:$0xf] %v634
      %v699 = vadd.f32 %v413, %v416
      %v700 = vadd.f32 %v699, %v421
      %v701 = vadd.f32 %v700, %v424
      %v702 = vadd.f32 %v701, %v429
      %v703 = vadd.f32 %v702, %v432
      %v704 = vadd.f32 %v703, %v437
      %v705 = vadd.f32 %v704, %v440
      %v706 = vadd.f32 %v705, %v445
      %v707 = vadd.f32 %v706, %v448
      %v708 = vadd.f32 %v707, %v453
      %v709 = vadd.f32 %v708, %v456
      %v710 = vadd.f32 %v709, %v461
      %v711 = vadd.f32 %v710, %v464
      %v712 = vadd.f32 %v711, %v469
      %v713 = vadd.f32 %v712, %v472
      %v714 = vadd.f32 %v713, %v477
      %v715 = vadd.f32 %v714, %v480
      %v716 = vadd.f32 %v715, %v485
      %v717 = vadd.f32 %v716, %v488
      %v718 = vadd.f32 %v717, %v493
      %v719 = vadd.f32 %v718, %v496
      %v720 = vadd.f32 %v719, %v501
      %v721 = vadd.f32 %v720, %v504
      %v722 = vadd.f32 %v721, %v509
      %v723 = vadd.f32 %v722, %v512
      %v724 = vadd.f32 %v723, %v517
      %v725 = vadd.f32 %v724, %v520
      %v726 = vadd.f32 %v725, %v525
      %v727 = vadd.f32 %v726, %v528
      %v728 = vadd.f32 %v727, %v533
      %v729 = vadd.f32 %v728, %v536
      %v730 = vrot.slane %v729, 4
      %v731 = vadd.f32 %v729, %v730
      %v732 = vrot.slane %v731, 2
      %v733 = vadd.f32 %v731, %v732
      %v734 = vrot.slane %v733, 1
      %v735 = vadd.f32 %v733, %v734
      %v736 = vmul.f32 %v413, %v413
      %v737 = vmul.f32 %v416, %v416
      %v738 = vmul.f32 %v421, %v421
      %v739 = vmul.f32 %v424, %v424
      %v740 = vmul.f32 %v429, %v429
      %v741 = vmul.f32 %v432, %v432
      %v742 = vmul.f32 %v437, %v437
      %v743 = vmul.f32 %v440, %v440
      %v744 = vmul.f32 %v445, %v445
      %v745 = vmul.f32 %v448, %v448
      %v746 = vmul.f32 %v453, %v453
      %v747 = vmul.f32 %v456, %v456
      %v748 = vmul.f32 %v461, %v461
      %v749 = vmul.f32 %v464, %v464
      %v750 = vmul.f32 %v469, %v469
      %v751 = vmul.f32 %v472, %v472
      %v752 = vmul.f32 %v477, %v477
      %v753 = vmul.f32 %v480, %v480
      %v754 = vmul.f32 %v485, %v485
      %v755 = vmul.f32 %v488, %v488
      %v756 = vmul.f32 %v493, %v493
      %v757 = vmul.f32 %v496, %v496
      %v758 = vmul.f32 %v501, %v501
      %v759 = vmul.f32 %v504, %v504
      %v760 = vmul.f32 %v509, %v509
      %v761 = vmul.f32 %v512, %v512
      %v762 = vmul.f32 %v517, %v517
      %v763 = vmul.f32 %v520, %v520
      %v764 = vmul.f32 %v525, %v525
      %v765 = vmul.f32 %v528, %v528
      %v766 = vmul.f32 %v533, %v533
      %v767 = vmul.f32 %v536, %v536
      %v768 = vadd.f32 %v736, %v737
      %v769 = vadd.f32 %v768, %v738
      %v770 = vadd.f32 %v769, %v739
      %v771 = vadd.f32 %v770, %v740
      %v772 = vadd.f32 %v771, %v741
      %v773 = vadd.f32 %v772, %v742
      %v774 = vadd.f32 %v773, %v743
      %v775 = vadd.f32 %v774, %v744
      %v776 = vadd.f32 %v775, %v745
      %v777 = vadd.f32 %v776, %v746
      %v778 = vadd.f32 %v777, %v747
      %v779 = vadd.f32 %v778, %v748
      %v780 = vadd.f32 %v779, %v749
      %v781 = vadd.f32 %v780, %v750
      %v782 = vadd.f32 %v781, %v751
      %v783 = vadd.f32 %v782, %v752
      %v784 = vadd.f32 %v783, %v753
      %v785 = vadd.f32 %v784, %v754
      %v786 = vadd.f32 %v785, %v755
      %v787 = vadd.f32 %v786, %v756
      %v788 = vadd.f32 %v787, %v757
      %v789 = vadd.f32 %v788, %v758
      %v790 = vadd.f32 %v789, %v759
      %v791 = vadd.f32 %v790, %v760
      %v792 = vadd.f32 %v791, %v761
      %v793 = vadd.f32 %v792, %v762
      %v794 = vadd.f32 %v793, %v763
      %v795 = vadd.f32 %v794, %v764
      %v796 = vadd.f32 %v795, %v765
      %v797 = vadd.f32 %v796, %v766
      %v798 = vadd.f32 %v797, %v767
      %v799 = vrot.slane %v798, 4
      %v800 = vadd.f32 %v798, %v799
      %v801 = vrot.slane %v800, 2
      %v802 = vadd.f32 %v800, %v801
      %v803 = vrot.slane %v802, 1
      %v804 = vadd.f32 %v802, %v803
      %vm805 = vcmask 1040384
      %v806 = vsel %vm805, %v735, %v804
      %807 = vst [vmem:[%s184] sm:$0x3] %v806
      %s808 = smul.u32 32, %s15
      %p809 = scmp.lt.s32.totalorder %s808, 63
      %s810 = scalar_select %p809, %s808, 63
      %s811 = smul.addr %s810, 4
      %s812 = scalar_lea.vmem %s2, %s811
      %p813 = scmp.lt.s32.totalorder %s15, 1
      %s814 = scalar_select %p813, %s15, 1
      %s815 = smul.addr %s814, 2
      %s816 = scalar_lea.vmem %s3, %s815
      // Predicated region
      $region29: #{_bottleneck_jit.4} parent=27 // pred_check
        %p817 = pneg %p80
      $region30: #{_bottleneck_jit.4} parent=27 // pred_check_branch
        %819 = sbr.rel (%p817) target = $region32
      $region31: #{_bottleneck_jit.4} parent=27 // pred_region
        %s820 = smul.u32 32, %s15
      $region32: #{_bottleneck_jit.4} parent=27 // pred_fallthru
        _
      // Predicated region
      $region33: #{_bottleneck_jit.4} parent=27 // pred_check
        %p821 = pneg %p106
      $region34: #{_bottleneck_jit.4} parent=27 // pred_check_branch
        %823 = sbr.rel (%p821) target = $region36
      $region35: #{_bottleneck_jit.4} parent=27 // pred_region
        _
      $region36: #{_bottleneck_jit.4} parent=27 // pred_fallthru
        _
    $region28: #{_bottleneck_jit.4} parent=5 // pred_fallthru
      _
    %p824 = scmp.le.s32.totalorder 2, %s10
    // Predicated region
    $region37: #{_bottleneck_jit.4} parent=5 // pred_check
      %p825 = pneg %p824
    $region38: #{_bottleneck_jit.4} parent=5 // pred_check_branch
      %827 = sbr.rel (%p825) target = $region40
    $region39: #{_bottleneck_jit.4} parent=5 // pred_region
      %s828 = ssub.s32 %s10, 2
      // Predicated region
      $region41: #{_bottleneck_jit.4} parent=39 // pred_check
        %p829 = pneg %p86
      $region42: #{_bottleneck_jit.4} parent=39 // pred_check_branch
        %831 = sbr.rel (%p829) target = $region44
      $region43: #{_bottleneck_jit.4} parent=39 // pred_region
        %s832 = smul.u32 32, %s16
        %p833 = scmp.lt.s32.totalorder %s832, 63
        %s834 = scalar_select %p833, %s832, 63
        %s835 = smul.addr %s834, 4
        %s836 = scalar_lea.vmem %s2, %s835
      $region44: #{_bottleneck_jit.4} parent=39 // pred_fallthru
        _
      // Predicated region
      $region45: #{_bottleneck_jit.4} parent=39 // pred_check
        %p837 = pneg %p112
      $region46: #{_bottleneck_jit.4} parent=39 // pred_check_branch
        %839 = sbr.rel (%p837) target = $region48
      $region47: #{_bottleneck_jit.4} parent=39 // pred_region
        %p840 = scmp.lt.s32.totalorder %s16, 1
        %s841 = scalar_select %p840, %s16, 1
        %s842 = smul.addr %s841, 2
        %s843 = scalar_lea.vmem %s3, %s842
      $region48: #{_bottleneck_jit.4} parent=39 // pred_fallthru
        _
    $region40: #{_bottleneck_jit.4} parent=5 // pred_fallthru
      _
  $region6: #{_bottleneck_jit.4} parent=0 // loop_footer
    %s14 = sadd.s32 1, %s10
  $region7: #{_bottleneck_jit.4} parent=0 // loop_footer_branch
    %9 = sbr.rel target = $region3
  $region8: #{_bottleneck_jit.4} parent=0 // loop_exit
    _

// kernel: _bottleneck_jit.7
$region0: #{_bottleneck_jit.7}
  #allocation0 [shape = 'u32[]', space=smem, size = 0x4, offset = 0x4, fixed_abs, tag = 'smem constant byte address 0x4 - core index']
  #allocation1 [shape = 'u32[144,128]{1,0:T(1,128)}', space=vmem, size = 0x12000, scoped, tag = 'internal scratch']
  %s0 = inlined_call_operand.vmem [shape: bf16[512,128], index: 0, kind: input, shape index: {}]
  %s1 = inlined_call_operand.vmem [shape: f32[1,128], index: 1, kind: input, shape index: {}]
  %s2 = inlined_call_operand.vmem [shape: f32[1,128], index: 2, kind: input, shape index: {}]
  %s3 = inlined_call_operand.vmem [shape: bf16[512,128], index: 3, kind: input, shape index: {}]
  %s4 = inlined_call_operand.vmem [shape: bf16[128,128], index: 4, kind: input, shape index: {}]
  %s5 = inlined_call_operand.vmem [shape: f32[1,128], index: 5, kind: input, shape index: {}]
  %s6 = inlined_call_operand.vmem [shape: f32[512,128], index: 6, kind: output, shape index: {}]
  %s7 = sld [smem:[#allocation0]]
  $region57: #{_bottleneck_jit.7} parent=0
    _
  %s9 = ssub.s32 1, %s7
  %s10 = scalar_select 0, %s9, %s7
  loop: start=0, step=1, limit=4
  $region2: #{_bottleneck_jit.7} parent=0 // loop_pre_header
    _
  $region3: #{_bottleneck_jit.7} parent=0 // loop_header
    %s12 = sphi 0, %s16
    %p13 = scmp.ge.s32.totalorder %s12, 4
    %s22 = sphi 0, %s24
    %s25 = sphi 0, %s22
    %s26 = sphi 0, %s25
    %s42 = sphi 0, %s26
    %s46 = sphi 0, %s46
    %s48 = sphi 0, %s46
    %s49 = sphi 0, %s48
    %s63 = sphi 0, %s49
    %s67 = sphi 0, %s67
    %s69 = sphi 0, %s67
    %s70 = sphi 0, %s69
    %s84 = sphi 0, %s70
    %s90 = sphi 0, %s92
    %s93 = sphi 0, %s90
    %s94 = sphi 0, %s93
    %s110 = sphi 0, %s94
    %s114 = sphi 0, %s114
    %s116 = sphi 0, %s114
    %s117 = sphi 0, %s116
    %s131 = sphi 0, %s117
    %s135 = sphi 0, %s135
    %s137 = sphi 0, %s135
    %s138 = sphi 0, %s137
    %s152 = sphi 0, %s138
    %s158 = sphi 0, %s160
    %s161 = sphi 0, %s158
    %s162 = sphi 0, %s161
    %s178 = sphi 0, %s162
  $region4: #{_bottleneck_jit.7} parent=0 // loop_header_branch
    %15 = sbr.rel (%p13) target = $region8
  $region5: #{_bottleneck_jit.7} parent=0 // loop_body
    %s17 = ssub.s32 %s12, 1
    %s18 = ssub.s32 %s12, 2
    %s19 = sadd.s32 %s12, 1
    %s20 = ssub.s32 %s12, %s19
    %p21 = scmp.eq.s32.totalorder %s20, 0
    %s23 = sadd.s32 %s22, 1
    %s24 = scalar_select %p21, %s22, %s23
    %p27 = pneg %p21
    %p28 = scmp.eq.s32.totalorder %s12, 1
    %p29 = por %p27, %p28
    %p30 = scmp.ne.s32.totalorder %s22, %s25
    %p31 = scmp.eq.s32.totalorder %s12, 0
    %p32 = por %p30, %p31
    %p33 = scmp.ne.s32.totalorder %s22, %s25
    %p34 = scmp.eq.s32.totalorder %s17, 1
    %p35 = por %p33, %p34
    %p36 = scmp.ne.s32.totalorder %s25, %s26
    %p37 = scmp.eq.s32.totalorder %s17, 0
    %p38 = por %p36, %p37
    %p39 = scmp.ne.s32.totalorder %s25, %s26
    %p40 = scmp.eq.s32.totalorder %s18, 1
    %p41 = por %p39, %p40
    %p43 = scmp.ne.s32.totalorder %s26, %s42
    %p44 = scmp.eq.s32.totalorder %s18, 0
    %p45 = por %p43, %p44
    %s47 = sadd.s32 %s46, 1
    %p50 = scmp.eq.s32.totalorder %s12, 1
    %p51 = scmp.ne.s32.totalorder %s46, %s48
    %p52 = scmp.eq.s32.totalorder %s12, 0
    %p53 = por %p51, %p52
    %p54 = scmp.ne.s32.totalorder %s46, %s48
    %p55 = scmp.eq.s32.totalorder %s17, 1
    %p56 = por %p54, %p55
    %p57 = scmp.ne.s32.totalorder %s48, %s49
    %p58 = scmp.eq.s32.totalorder %s17, 0
    %p59 = por %p57, %p58
    %p60 = scmp.ne.s32.totalorder %s48, %s49
    %p61 = scmp.eq.s32.totalorder %s18, 1
    %p62 = por %p60, %p61
    %p64 = scmp.ne.s32.totalorder %s49, %s63
    %p65 = scmp.eq.s32.totalorder %s18, 0
    %p66 = por %p64, %p65
    %s68 = sadd.s32 %s67, 1
    %p71 = scmp.eq.s32.totalorder %s12, 1
    %p72 = scmp.ne.s32.totalorder %s67, %s69
    %p73 = scmp.eq.s32.totalorder %s12, 0
    %p74 = por %p72, %p73
    %p75 = scmp.ne.s32.totalorder %s67, %s69
    %p76 = scmp.eq.s32.totalorder %s17, 1
    %p77 = por %p75, %p76
    %p78 = scmp.ne.s32.totalorder %s69, %s70
    %p79 = scmp.eq.s32.totalorder %s17, 0
    %p80 = por %p78, %p79
    %p81 = scmp.ne.s32.totalorder %s69, %s70
    %p82 = scmp.eq.s32.totalorder %s18, 1
    %p83 = por %p81, %p82
    %p85 = scmp.ne.s32.totalorder %s70, %s84
    %p86 = scmp.eq.s32.totalorder %s18, 0
    %p87 = por %p85, %p86
    %s88 = ssub.s32 %s12, %s19
    %p89 = scmp.eq.s32.totalorder %s88, 0
    %s91 = sadd.s32 %s90, 1
    %s92 = scalar_select %p89, %s90, %s91
    %p95 = pneg %p89
    %p96 = scmp.eq.s32.totalorder %s12, 1
    %p97 = por %p95, %p96
    %p98 = scmp.ne.s32.totalorder %s90, %s93
    %p99 = scmp.eq.s32.totalorder %s12, 0
    %p100 = por %p98, %p99
    %p101 = scmp.ne.s32.totalorder %s90, %s93
    %p102 = scmp.eq.s32.totalorder %s17, 1
    %p103 = por %p101, %p102
    %p104 = scmp.ne.s32.totalorder %s93, %s94
    %p105 = scmp.eq.s32.totalorder %s17, 0
    %p106 = por %p104, %p105
    %p107 = scmp.ne.s32.totalorder %s93, %s94
    %p108 = scmp.eq.s32.totalorder %s18, 1
    %p109 = por %p107, %p108
    %p111 = scmp.ne.s32.totalorder %s94, %s110
    %p112 = scmp.eq.s32.totalorder %s18, 0
    %p113 = por %p111, %p112
    %s115 = sadd.s32 %s114, 1
    %p118 = scmp.eq.s32.totalorder %s12, 1
    %p119 = scmp.ne.s32.totalorder %s114, %s116
    %p120 = scmp.eq.s32.totalorder %s12, 0
    %p121 = por %p119, %p120
    %p122 = scmp.ne.s32.totalorder %s114, %s116
    %p123 = scmp.eq.s32.totalorder %s17, 1
    %p124 = por %p122, %p123
    %p125 = scmp.ne.s32.totalorder %s116, %s117
    %p126 = scmp.eq.s32.totalorder %s17, 0
    %p127 = por %p125, %p126
    %p128 = scmp.ne.s32.totalorder %s116, %s117
    %p129 = scmp.eq.s32.totalorder %s18, 1
    %p130 = por %p128, %p129
    %p132 = scmp.ne.s32.totalorder %s117, %s131
    %p133 = scmp.eq.s32.totalorder %s18, 0
    %p134 = por %p132, %p133
    %s136 = sadd.s32 %s135, 1
    %p139 = scmp.eq.s32.totalorder %s12, 1
    %p140 = scmp.ne.s32.totalorder %s135, %s137
    %p141 = scmp.eq.s32.totalorder %s12, 0
    %p142 = por %p140, %p141
    %p143 = scmp.ne.s32.totalorder %s135, %s137
    %p144 = scmp.eq.s32.totalorder %s17, 1
    %p145 = por %p143, %p144
    %p146 = scmp.ne.s32.totalorder %s137, %s138
    %p147 = scmp.eq.s32.totalorder %s17, 0
    %p148 = por %p146, %p147
    %p149 = scmp.ne.s32.totalorder %s137, %s138
    %p150 = scmp.eq.s32.totalorder %s18, 1
    %p151 = por %p149, %p150
    %p153 = scmp.ne.s32.totalorder %s138, %s152
    %p154 = scmp.eq.s32.totalorder %s18, 0
    %p155 = por %p153, %p154
    %s156 = ssub.s32 %s12, %s19
    %p157 = scmp.eq.s32.totalorder %s156, 0
    %s159 = sadd.s32 %s158, 1
    %s160 = scalar_select %p157, %s158, %s159
    %p163 = pneg %p157
    %p164 = scmp.eq.s32.totalorder %s12, 1
    %p165 = por %p163, %p164
    %p166 = scmp.ne.s32.totalorder %s158, %s161
    %p167 = scmp.eq.s32.totalorder %s12, 0
    %p168 = por %p166, %p167
    %p169 = scmp.ne.s32.totalorder %s158, %s161
    %p170 = scmp.eq.s32.totalorder %s17, 1
    %p171 = por %p169, %p170
    %p172 = scmp.ne.s32.totalorder %s161, %s162
    %p173 = scmp.eq.s32.totalorder %s17, 0
    %p174 = por %p172, %p173
    %p175 = scmp.ne.s32.totalorder %s161, %s162
    %p176 = scmp.eq.s32.totalorder %s18, 1
    %p177 = por %p175, %p176
    %p179 = scmp.ne.s32.totalorder %s162, %s178
    %p180 = scmp.eq.s32.totalorder %s18, 0
    %p181 = por %p179, %p180
    %p182 = scmp.le.s32.totalorder 1, %s12
    %p183 = scmp.lt.s32.totalorder %s12, 3
    %p184 = pnand %p182, %p183
    %p185 = pneg %p184
    // Predicated region
    $region9: #{_bottleneck_jit.7} parent=5 // pred_check
      _
    $region10: #{_bottleneck_jit.7} parent=5 // pred_check_branch
      %187 = sbr.rel (%p184) target = $region12
    $region11: #{_bottleneck_jit.7} parent=5 // pred_region
      %s188 = ssub.s32 %s12, 1
      // Predicated region
      $region13: #{_bottleneck_jit.7} parent=11 // pred_check
        %p189 = pneg %p59
      $region14: #{_bottleneck_jit.7} parent=11 // pred_check_branch
        %191 = sbr.rel (%p189) target = $region16
      $region15: #{_bottleneck_jit.7} parent=11 // pred_region
        _
      $region16: #{_bottleneck_jit.7} parent=11 // pred_fallthru
        _
      // Predicated region
      $region17: #{_bottleneck_jit.7} parent=11 // pred_check
        %p192 = pneg %p80
      $region18: #{_bottleneck_jit.7} parent=11 // pred_check_branch
        %194 = sbr.rel (%p192) target = $region20
      $region19: #{_bottleneck_jit.7} parent=11 // pred_region
        _
      $region20: #{_bottleneck_jit.7} parent=11 // pred_fallthru
        _
      // Predicated region
      $region21: #{_bottleneck_jit.7} parent=11 // pred_check
        %p195 = pneg %p127
      $region22: #{_bottleneck_jit.7} parent=11 // pred_check_branch
        %197 = sbr.rel (%p195) target = $region24
      $region23: #{_bottleneck_jit.7} parent=11 // pred_region
        _
      $region24: #{_bottleneck_jit.7} parent=11 // pred_fallthru
        _
      // Predicated region
      $region25: #{_bottleneck_jit.7} parent=11 // pred_check
        %p198 = pneg %p148
      $region26: #{_bottleneck_jit.7} parent=11 // pred_check_branch
        %200 = sbr.rel (%p198) target = $region28
      $region27: #{_bottleneck_jit.7} parent=11 // pred_region
        _
      $region28: #{_bottleneck_jit.7} parent=11 // pred_fallthru
        _
    $region12: #{_bottleneck_jit.7} parent=5 // pred_fallthru
      _
    %p201 = scmp.lt.s32.totalorder %s12, 2
    // Predicated region
    $region29: #{_bottleneck_jit.7} parent=5 // pred_check
      %p202 = pneg %p201
    $region30: #{_bottleneck_jit.7} parent=5 // pred_check_branch
      %204 = sbr.rel (%p202) target = $region32
    $region31: #{_bottleneck_jit.7} parent=5 // pred_region
      // Predicated region
      $region33: #{_bottleneck_jit.7} parent=31 // pred_check
        %p205 = pneg %p32
      $region34: #{_bottleneck_jit.7} parent=31 // pred_check_branch
        %207 = sbr.rel (%p205) target = $region36
      $region35: #{_bottleneck_jit.7} parent=31 // pred_region
        %s208 = smul.u32 32, %s12
        %p209 = scmp.lt.s32.totalorder %s208, 63
        %s210 = scalar_select %p209, %s208, 63
        %s211 = smul.addr %s210, 4
        %s212 = scalar_lea.vmem %s0, %s211
        %s213 = smul.u32 32, %s12
      $region36: #{_bottleneck_jit.7} parent=31 // pred_fallthru
        _
      // Predicated region
      $region37: #{_bottleneck_jit.7} parent=31 // pred_check
        %p214 = pneg %p100
      $region38: #{_bottleneck_jit.7} parent=31 // pred_check_branch
        %216 = sbr.rel (%p214) target = $region40
      $region39: #{_bottleneck_jit.7} parent=31 // pred_region
        %s217 = smul.u32 32, %s12
        %p218 = scmp.lt.s32.totalorder %s217, 63
        %s219 = scalar_select %p218, %s217, 63
        %s220 = smul.addr %s219, 4
        %s221 = scalar_lea.vmem %s3, %s220
        %s222 = smul.u32 32, %s12
      $region40: #{_bottleneck_jit.7} parent=31 // pred_fallthru
        _
    $region32: #{_bottleneck_jit.7} parent=5 // pred_fallthru
      _
    %p223 = scmp.le.s32.totalorder 1, %s12
    %p224 = scmp.lt.s32.totalorder %s12, 3
    %p225 = pnand %p223, %p224
    %p226 = pneg %p225
    // Predicated region
    $region41: #{_bottleneck_jit.7} parent=5 // pred_check
      _
    $region42: #{_bottleneck_jit.7} parent=5 // pred_check_branch
      %228 = sbr.rel (%p225) target = $region44
    $region43: #{_bottleneck_jit.7} parent=5 // pred_region
      %s229 = ssub.s32 %s12, 1
      %s230 = smul.u32 32, %s17
      %p231 = scmp.lt.s32.totalorder %s230, 63
      %s232 = scalar_select %p231, %s230, 63
      %s233 = smul.addr %s232, 4
      %s234 = scalar_lea.vmem %s0, %s233
      %p235 = pneg %p38
      %p236 = pneg %p35
      %p237 = pneg %p59
      %p238 = pneg %p56
      %p239 = pneg %p80
      %p240 = pneg %p77
      %s241 = smul.u32 32, %s17
      %p242 = scmp.lt.s32.totalorder %s241, 63
      %s243 = scalar_select %p242, %s241, 63
      %s244 = smul.addr %s243, 4
      %s245 = scalar_lea.vmem %s3, %s244
      %p246 = pneg %p106
      %p247 = pneg %p103
      %p248 = pneg %p127
      %p249 = pneg %p124
      %p250 = pneg %p148
      %p251 = pneg %p145
      %p252 = pneg %p174
      %p253 = pneg %p171
      %s254 = smul.u32 32, %s17
      %p255 = scmp.lt.s32.totalorder %s254, 63
      %s256 = scalar_select %p255, %s254, 63
      %s257 = smul.addr %s256, 8
      %s258 = scalar_lea.vmem %s6, %s257
      %s259 = smul.u32 32, %s17
      %p260 = scmp.lt.s32.totalorder %s259, 63
      %s261 = scalar_select %p260, %s259, 63
      %s262 = smul.addr %s261, 4
      %s263 = scalar_lea.vmem %s0, %s262
      %s264 = smul.u32 32, %s17
      %s265 = smul.u32 32, %s17
      %p266 = scmp.lt.s32.totalorder %s265, 63
      %s267 = scalar_select %p266, %s265, 63
      %s268 = smul.addr %s267, 4
      %s269 = scalar_lea.vmem %s3, %s268
      %s270 = smul.u32 32, %s17
      %s271 = smul.u32 32, %s17
      %p272 = scmp.lt.s32.totalorder %s271, 63
      %s273 = scalar_select %p272, %s271, 63
      %s274 = smul.addr %s273, 8
      %s275 = scalar_lea.vmem %s6, %s274
      %s276 = smul.u32 32, %s17
      %v278 = vld [vmem:[%s263] sm:$0xf]
      %v279 = vld [vmem:[%s263 + $0x4] sm:$0xf]
      %v280 = vld [vmem:[%s263 + $0x8] sm:$0xf]
      %v281 = vld [vmem:[%s263 + $0xc] sm:$0xf]
      %v282 = vld [vmem:[%s263 + $0x10] sm:$0xf]
      %v283 = vld [vmem:[%s263 + $0x14] sm:$0xf]
      %v284 = vld [vmem:[%s263 + $0x18] sm:$0xf]
      %v285 = vld [vmem:[%s263 + $0x1c] sm:$0xf]
      %v286 = vld [vmem:[%s263 + $0x20] sm:$0xf]
      %v287 = vld [vmem:[%s263 + $0x24] sm:$0xf]
      %v288 = vld [vmem:[%s263 + $0x28] sm:$0xf]
      %v289 = vld [vmem:[%s263 + $0x2c] sm:$0xf]
      %v290 = vld [vmem:[%s263 + $0x30] sm:$0xf]
      %v291 = vld [vmem:[%s263 + $0x34] sm:$0xf]
      %v292 = vld [vmem:[%s263 + $0x38] sm:$0xf]
      %v293 = vld [vmem:[%s263 + $0x3c] sm:$0xf]
      %v294 = vld [vmem:[%s263 + $0x40] sm:$0xf]
      %v295 = vld [vmem:[%s263 + $0x44] sm:$0xf]
      %v296 = vld [vmem:[%s263 + $0x48] sm:$0xf]
      %v297 = vld [vmem:[%s263 + $0x4c] sm:$0xf]
      %v298 = vld [vmem:[%s263 + $0x50] sm:$0xf]
      %v299 = vld [vmem:[%s263 + $0x54] sm:$0xf]
      %v300 = vld [vmem:[%s263 + $0x58] sm:$0xf]
      %v301 = vld [vmem:[%s263 + $0x5c] sm:$0xf]
      %v302 = vld [vmem:[%s263 + $0x60] sm:$0xf]
      %v303 = vld [vmem:[%s263 + $0x64] sm:$0xf]
      %v304 = vld [vmem:[%s263 + $0x68] sm:$0xf]
      %v305 = vld [vmem:[%s263 + $0x6c] sm:$0xf]
      %v306 = vld [vmem:[%s263 + $0x70] sm:$0xf]
      %v307 = vld [vmem:[%s263 + $0x74] sm:$0xf]
      %v308 = vld [vmem:[%s263 + $0x78] sm:$0xf]
      %v309 = vld [vmem:[%s263 + $0x7c] sm:$0xf]
      %v310 = vld [vmem:[%s1] sm:$0x1]
      %v311 = vunpack.c.l.bf16 %v278
      %v312 = vunpack.c.l.bf16 %v279
      %v313 = vunpack.c.l.bf16 %v280
      %v314 = vunpack.c.l.bf16 %v281
      %v315 = vunpack.c.l.bf16 %v282
      %v316 = vunpack.c.l.bf16 %v283
      %v317 = vunpack.c.l.bf16 %v284
      %v318 = vunpack.c.l.bf16 %v285
      %v319 = vunpack.c.l.bf16 %v286
      %v320 = vunpack.c.l.bf16 %v287
      %v321 = vunpack.c.l.bf16 %v288
      %v322 = vunpack.c.l.bf16 %v289
      %v323 = vunpack.c.l.bf16 %v290
      %v324 = vunpack.c.l.bf16 %v291
      %v325 = vunpack.c.l.bf16 %v292
      %v326 = vunpack.c.l.bf16 %v293
      %v327 = vunpack.c.l.bf16 %v294
      %v328 = vunpack.c.l.bf16 %v295
      %v329 = vunpack.c.l.bf16 %v296
      %v330 = vunpack.c.l.bf16 %v297
      %v331 = vunpack.c.l.bf16 %v298
      %v332 = vunpack.c.l.bf16 %v299
      %v333 = vunpack.c.l.bf16 %v300
      %v334 = vunpack.c.l.bf16 %v301
      %v335 = vunpack.c.l.bf16 %v302
      %v336 = vunpack.c.l.bf16 %v303
      %v337 = vunpack.c.l.bf16 %v304
      %v338 = vunpack.c.l.bf16 %v305
      %v339 = vunpack.c.l.bf16 %v306
      %v340 = vunpack.c.l.bf16 %v307
      %v341 = vunpack.c.l.bf16 %v308
      %v342 = vunpack.c.l.bf16 %v309
      %v344 = vlaneseq
      %v345 = vshrl.u32 %v344, 7
      %v346 = vsub.s32 0, %v345
      %v347 = vrot.slane %v310, %v346
      %v349 = vmul.f32 %v311, %v347
      %v350 = vmul.f32 %v312, %v347
      %v351 = vmul.f32 %v313, %v347
      %v352 = vmul.f32 %v314, %v347
      %v353 = vmul.f32 %v315, %v347
      %v354 = vmul.f32 %v316, %v347
      %v355 = vmul.f32 %v317, %v347
      %v356 = vmul.f32 %v318, %v347
      %v357 = vmul.f32 %v319, %v347
      %v358 = vmul.f32 %v320, %v347
      %v359 = vmul.f32 %v321, %v347
      %v360 = vmul.f32 %v322, %v347
      %v361 = vmul.f32 %v323, %v347
      %v362 = vmul.f32 %v324, %v347
      %v363 = vmul.f32 %v325, %v347
      %v364 = vmul.f32 %v326, %v347
      %v365 = vmul.f32 %v327, %v347
      %v366 = vmul.f32 %v328, %v347
      %v367 = vmul.f32 %v329, %v347
      %v368 = vmul.f32 %v330, %v347
      %v369 = vmul.f32 %v331, %v347
      %v370 = vmul.f32 %v332, %v347
      %v371 = vmul.f32 %v333, %v347
      %v372 = vmul.f32 %v334, %v347
      %v373 = vmul.f32 %v335, %v347
      %v374 = vmul.f32 %v336, %v347
      %v375 = vmul.f32 %v337, %v347
      %v376 = vmul.f32 %v338, %v347
      %v377 = vmul.f32 %v339, %v347
      %v378 = vmul.f32 %v340, %v347
      %v379 = vmul.f32 %v341, %v347
      %v380 = vmul.f32 %v342, %v347
      %v381 = vld [vmem:[%s2] sm:$0x1]
      %v383 = vlaneseq
      %v384 = vshrl.u32 %v383, 7
      %v385 = vsub.s32 0, %v384
      %v386 = vrot.slane %v381, %v385
      %v388 = vadd.f32 %v349, %v386
      %v389 = vadd.f32 %v350, %v386
      %v390 = vadd.f32 %v351, %v386
      %v391 = vadd.f32 %v352, %v386
      %v392 = vadd.f32 %v353, %v386
      %v393 = vadd.f32 %v354, %v386
      %v394 = vadd.f32 %v355, %v386
      %v395 = vadd.f32 %v356, %v386
      %v396 = vadd.f32 %v357, %v386
      %v397 = vadd.f32 %v358, %v386
      %v398 = vadd.f32 %v359, %v386
      %v399 = vadd.f32 %v360, %v386
      %v400 = vadd.f32 %v361, %v386
      %v401 = vadd.f32 %v362, %v386
      %v402 = vadd.f32 %v363, %v386
      %v403 = vadd.f32 %v364, %v386
      %v404 = vadd.f32 %v365, %v386
      %v405 = vadd.f32 %v366, %v386
      %v406 = vadd.f32 %v367, %v386
      %v407 = vadd.f32 %v368, %v386
      %v408 = vadd.f32 %v369, %v386
      %v409 = vadd.f32 %v370, %v386
      %v410 = vadd.f32 %v371, %v386
      %v411 = vadd.f32 %v372, %v386
      %v412 = vadd.f32 %v373, %v386
      %v413 = vadd.f32 %v374, %v386
      %v414 = vadd.f32 %v375, %v386
      %v415 = vadd.f32 %v376, %v386
      %v416 = vadd.f32 %v377, %v386
      %v417 = vadd.f32 %v378, %v386
      %v418 = vadd.f32 %v379, %v386
      %v419 = vadd.f32 %v380, %v386
      %v420 = vmax.f32 %v388, 0.0
      %v421 = vmax.f32 %v389, 0.0
      %v422 = vmax.f32 %v390, 0.0
      %v423 = vmax.f32 %v391, 0.0
      %v424 = vmax.f32 %v392, 0.0
      %v425 = vmax.f32 %v393, 0.0
      %v426 = vmax.f32 %v394, 0.0
      %v427 = vmax.f32 %v395, 0.0
      %v428 = vmax.f32 %v396, 0.0
      %v429 = vmax.f32 %v397, 0.0
      %v430 = vmax.f32 %v398, 0.0
      %v431 = vmax.f32 %v399, 0.0
      %v432 = vmax.f32 %v400, 0.0
      %v433 = vmax.f32 %v401, 0.0
      %v434 = vmax.f32 %v402, 0.0
      %v435 = vmax.f32 %v403, 0.0
      %v436 = vmax.f32 %v404, 0.0
      %v437 = vmax.f32 %v405, 0.0
      %v438 = vmax.f32 %v406, 0.0
      %v439 = vmax.f32 %v407, 0.0
      %v440 = vmax.f32 %v408, 0.0
      %v441 = vmax.f32 %v409, 0.0
      %v442 = vmax.f32 %v410, 0.0
      %v443 = vmax.f32 %v411, 0.0
      %v444 = vmax.f32 %v412, 0.0
      %v445 = vmax.f32 %v413, 0.0
      %v446 = vmax.f32 %v414, 0.0
      %v447 = vmax.f32 %v415, 0.0
      %v448 = vmax.f32 %v416, 0.0
      %v449 = vmax.f32 %v417, 0.0
      %v450 = vmax.f32 %v418, 0.0
      %v451 = vmax.f32 %v419, 0.0
      %v452 = vld [vmem:[%s269] sm:$0xf]
      %v453 = vld [vmem:[%s269 + $0x4] sm:$0xf]
      %v454 = vld [vmem:[%s269 + $0x8] sm:$0xf]
      %v455 = vld [vmem:[%s269 + $0xc] sm:$0xf]
      %v456 = vld [vmem:[%s269 + $0x10] sm:$0xf]
      %v457 = vld [vmem:[%s269 + $0x14] sm:$0xf]
      %v458 = vld [vmem:[%s269 + $0x18] sm:$0xf]
      %v459 = vld [vmem:[%s269 + $0x1c] sm:$0xf]
      %v460 = vld [vmem:[%s269 + $0x20] sm:$0xf]
      %v461 = vld [vmem:[%s269 + $0x24] sm:$0xf]
      %v462 = vld [vmem:[%s269 + $0x28] sm:$0xf]
      %v463 = vld [vmem:[%s269 + $0x2c] sm:$0xf]
      %v464 = vld [vmem:[%s269 + $0x30] sm:$0xf]
      %v465 = vld [vmem:[%s269 + $0x34] sm:$0xf]
      %v466 = vld [vmem:[%s269 + $0x38] sm:$0xf]
      %v467 = vld [vmem:[%s269 + $0x3c] sm:$0xf]
      %v468 = vld [vmem:[%s269 + $0x40] sm:$0xf]
      %v469 = vld [vmem:[%s269 + $0x44] sm:$0xf]
      %v470 = vld [vmem:[%s269 + $0x48] sm:$0xf]
      %v471 = vld [vmem:[%s269 + $0x4c] sm:$0xf]
      %v472 = vld [vmem:[%s269 + $0x50] sm:$0xf]
      %v473 = vld [vmem:[%s269 + $0x54] sm:$0xf]
      %v474 = vld [vmem:[%s269 + $0x58] sm:$0xf]
      %v475 = vld [vmem:[%s269 + $0x5c] sm:$0xf]
      %v476 = vld [vmem:[%s269 + $0x60] sm:$0xf]
      %v477 = vld [vmem:[%s269 + $0x64] sm:$0xf]
      %v478 = vld [vmem:[%s269 + $0x68] sm:$0xf]
      %v479 = vld [vmem:[%s269 + $0x6c] sm:$0xf]
      %v480 = vld [vmem:[%s269 + $0x70] sm:$0xf]
      %v481 = vld [vmem:[%s269 + $0x74] sm:$0xf]
      %v482 = vld [vmem:[%s269 + $0x78] sm:$0xf]
      %v483 = vld [vmem:[%s269 + $0x7c] sm:$0xf]
      %v484 = vld [vmem:[%s4] sm:$0xf]
      %v485 = vld [vmem:[%s4 + $0x4] sm:$0xf]
      %v486 = vld [vmem:[%s4 + $0x8] sm:$0xf]
      %v487 = vld [vmem:[%s4 + $0xc] sm:$0xf]
      %v488 = vld [vmem:[%s4 + $0x10] sm:$0xf]
      %v489 = vld [vmem:[%s4 + $0x14] sm:$0xf]
      %v490 = vld [vmem:[%s4 + $0x18] sm:$0xf]
      %v491 = vld [vmem:[%s4 + $0x1c] sm:$0xf]
      %v492 = vld [vmem:[%s4 + $0x20] sm:$0xf]
      %v493 = vld [vmem:[%s4 + $0x24] sm:$0xf]
      %v494 = vld [vmem:[%s4 + $0x28] sm:$0xf]
      %v495 = vld [vmem:[%s4 + $0x2c] sm:$0xf]
      %v496 = vld [vmem:[%s4 + $0x30] sm:$0xf]
      %v497 = vld [vmem:[%s4 + $0x34] sm:$0xf]
      %v498 = vld [vmem:[%s4 + $0x38] sm:$0xf]
      %v499 = vld [vmem:[%s4 + $0x3c] sm:$0xf]
      %v500 = vld [vmem:[%s5] sm:$0x1]
      %v502 = vlaneseq
      %v503 = vshrl.u32 %v502, 7
      %v504 = vsub.s32 0, %v503
      %v505 = vrot.slane %v500, %v504
      %v539 = vunpack.c.l.b16 %v452
      %v540 = vunpack.c.l.b16 %v453
      %v541 = vunpack.c.l.b16 %v454
      %v542 = vunpack.c.l.b16 %v455
      %v543 = vunpack.c.l.b16 %v456
      %v544 = vunpack.c.l.b16 %v457
      %v545 = vunpack.c.l.b16 %v458
      %v546 = vunpack.c.l.b16 %v459
      %v547 = vunpack.c.l.b16 %v460
      %v548 = vunpack.c.l.b16 %v461
      %v549 = vunpack.c.l.b16 %v462
      %v550 = vunpack.c.l.b16 %v463
      %v551 = vunpack.c.l.b16 %v464
      %v552 = vunpack.c.l.b16 %v465
      %v553 = vunpack.c.l.b16 %v466
      %v554 = vunpack.c.l.b16 %v467
      %v555 = vunpack.c.l.b16 %v468
      %v556 = vunpack.c.l.b16 %v469
      %v557 = vunpack.c.l.b16 %v470
      %v558 = vunpack.c.l.b16 %v471
      %v559 = vunpack.c.l.b16 %v472
      %v560 = vunpack.c.l.b16 %v473
      %v561 = vunpack.c.l.b16 %v474
      %v562 = vunpack.c.l.b16 %v475
      %v563 = vunpack.c.l.b16 %v476
      %v564 = vunpack.c.l.b16 %v477
      %v565 = vunpack.c.l.b16 %v478
      %v566 = vunpack.c.l.b16 %v479
      %v567 = vunpack.c.l.b16 %v480
      %v568 = vunpack.c.l.b16 %v481
      %v569 = vunpack.c.l.b16 %v482
      %v570 = vunpack.c.l.b16 %v483
      %v571 = vpack.c.b16 %v540, %v539
      %v572 = vpack.c.b16 %v542, %v541
      %v573 = vpack.c.b16 %v544, %v543
      %v574 = vpack.c.b16 %v546, %v545
      %v575 = vpack.c.b16 %v548, %v547
      %v576 = vpack.c.b16 %v550, %v549
      %v577 = vpack.c.b16 %v552, %v551
      %v578 = vpack.c.b16 %v554, %v553
      %v579 = vpack.c.b16 %v556, %v555
      %v580 = vpack.c.b16 %v558, %v557
      %v581 = vpack.c.b16 %v560, %v559
      %v582 = vpack.c.b16 %v562, %v561
      %v583 = vpack.c.b16 %v564, %v563
      %v584 = vpack.c.b16 %v566, %v565
      %v585 = vpack.c.b16 %v568, %v567
      %v586 = vpack.c.b16 %v570, %v569
      %v619 = vunpack.c.l.b16 %v484
      %v620 = vunpack.c.l.b16 %v485
      %v621 = vunpack.c.l.b16 %v486
      %v622 = vunpack.c.l.b16 %v487
      %v623 = vunpack.c.l.b16 %v488
      %v624 = vunpack.c.l.b16 %v489
      %v625 = vunpack.c.l.b16 %v490
      %v626 = vunpack.c.l.b16 %v491
      %v627 = vunpack.c.l.b16 %v492
      %v628 = vunpack.c.l.b16 %v493
      %v629 = vunpack.c.l.b16 %v494
      %v630 = vunpack.c.l.b16 %v495
      %v631 = vunpack.c.l.b16 %v496
      %v632 = vunpack.c.l.b16 %v497
      %v633 = vunpack.c.l.b16 %v498
      %v634 = vunpack.c.l.b16 %v499
      %v635 = vpack.c.b16 %v620, %v619
      %v636 = vpack.c.b16 %v622, %v621
      %v637 = vpack.c.b16 %v624, %v623
      %v638 = vpack.c.b16 %v626, %v625
      %v639 = vpack.c.b16 %v628, %v627
      %v640 = vpack.c.b16 %v630, %v629
      %v641 = vpack.c.b16 %v632, %v631
      %v642 = vpack.c.b16 %v634, %v633
      %651 = vmatprep.subr.bf16.mxu0 0
      %652 = vmatpush1.bf16.msra.mxu0 %v642
      %653 = vmatprep.subr.bf16.mxu0 0
      %654 = vmatpush1.bf16.msra.mxu0 %v641
      %655 = vmatprep.subr.bf16.mxu0 0
      %656 = vmatpush1.bf16.msra.mxu0 %v640
      %657 = vmatprep.subr.bf16.mxu0 0
      %658 = vmatpush1.bf16.msra.mxu0 %v639
      %659 = vmatprep.subr.bf16.mxu0 0
      %660 = vmatpush1.bf16.msra.mxu0 %v638
      %661 = vmatprep.subr.bf16.mxu0 0
      %662 = vmatpush1.bf16.msra.mxu0 %v637
      %663 = vmatprep.subr.bf16.mxu0 0
      %664 = vmatpush1.bf16.msra.mxu0 %v636
      %665 = vmatprep.subr.bf16.mxu0 0
      %666 = vmatpush1.bf16.msra.mxu0 %v635
      %667 = vmatprep.subr.bf16.mxu0 0
      %668 = vmatpush2.bf16.msra.mxu0 0
      %669 = vmatprep.subr.bf16.mxu0 0
      %670 = vmatpush2.bf16.msra.mxu0 0
      %671 = vmatprep.subr.bf16.mxu0 0
      %672 = vmatpush2.bf16.msra.mxu0 0
      %673 = vmatprep.subr.bf16.mxu0 0
      %674 = vmatpush2.bf16.msra.mxu0 0
      %675 = vmatprep.subr.bf16.mxu0 0
      %676 = vmatpush2.bf16.msra.mxu0 0
      %677 = vmatprep.subr.bf16.mxu0 0
      %678 = vmatpush2.bf16.msra.mxu0 0
      %679 = vmatprep.subr.bf16.mxu0 0
      %680 = vmatpush2.bf16.msra.mxu0 0
      %681 = vmatprep.subr.bf16.mxu0 0
      %682 = vmatpush2.bf16.msra.mxu0 0
      %683 = vmatprep.mubr.bf16.mxu0 0
      %684 = vmatmul.mubr.bf16.gmra.mxu0 %v571
      %v685 = vpop.f32.mrf.mxu0
      %v686 = vadd.f32 %v505, %v685
      %v687 = vpop.f32.mrf.mxu0
      %v688 = vpop.f32.mrf.mxu0
      %v689 = vadd.f32 %v505, %v688
      %v690 = vpop.f32.mrf.mxu0
      %691 = vmatprep.mubr.bf16.mxu0 0
      %692 = vmatmul.mubr.bf16.gmra.mxu0 %v572
      %v693 = vpop.f32.mrf.mxu0
      %v694 = vadd.f32 %v505, %v693
      %v695 = vpop.f32.mrf.mxu0
      %v696 = vpop.f32.mrf.mxu0
      %v697 = vadd.f32 %v505, %v696
      %v698 = vpop.f32.mrf.mxu0
      %699 = vmatprep.mubr.bf16.mxu0 0
      %700 = vmatmul.mubr.bf16.gmra.mxu0 %v573
      %v701 = vpop.f32.mrf.mxu0
      %v702 = vadd.f32 %v505, %v701
      %v703 = vpop.f32.mrf.mxu0
      %v704 = vpop.f32.mrf.mxu0
      %v705 = vadd.f32 %v505, %v704
      %v706 = vpop.f32.mrf.mxu0
      %707 = vmatprep.mubr.bf16.mxu0 0
      %708 = vmatmul.mubr.bf16.gmra.mxu0 %v574
      %v709 = vpop.f32.mrf.mxu0
      %v710 = vadd.f32 %v505, %v709
      %v711 = vpop.f32.mrf.mxu0
      %v712 = vpop.f32.mrf.mxu0
      %v713 = vadd.f32 %v505, %v712
      %v714 = vpop.f32.mrf.mxu0
      %715 = vmatprep.mubr.bf16.mxu0 0
      %716 = vmatmul.mubr.bf16.gmra.mxu0 %v575
      %v717 = vpop.f32.mrf.mxu0
      %v718 = vadd.f32 %v505, %v717
      %v719 = vpop.f32.mrf.mxu0
      %v720 = vpop.f32.mrf.mxu0
      %v721 = vadd.f32 %v505, %v720
      %v722 = vpop.f32.mrf.mxu0
      %723 = vmatprep.mubr.bf16.mxu0 0
      %724 = vmatmul.mubr.bf16.gmra.mxu0 %v576
      %v725 = vpop.f32.mrf.mxu0
      %v726 = vadd.f32 %v505, %v725
      %v727 = vpop.f32.mrf.mxu0
      %v728 = vpop.f32.mrf.mxu0
      %v729 = vadd.f32 %v505, %v728
      %v730 = vpop.f32.mrf.mxu0
      %731 = vmatprep.mubr.bf16.mxu0 0
      %732 = vmatmul.mubr.bf16.gmra.mxu0 %v577
      %v733 = vpop.f32.mrf.mxu0
      %v734 = vadd.f32 %v505, %v733
      %v735 = vpop.f32.mrf.mxu0
      %v736 = vpop.f32.mrf.mxu0
      %v737 = vadd.f32 %v505, %v736
      %v738 = vpop.f32.mrf.mxu0
      %739 = vmatprep.mubr.bf16.mxu0 0
      %740 = vmatmul.mubr.bf16.gmra.mxu0 %v578
      %v741 = vpop.f32.mrf.mxu0
      %v742 = vadd.f32 %v505, %v741
      %v743 = vpop.f32.mrf.mxu0
      %v744 = vpop.f32.mrf.mxu0
      %v745 = vadd.f32 %v505, %v744
      %v746 = vpop.f32.mrf.mxu0
      %747 = vmatprep.mubr.bf16.mxu0 0
      %748 = vmatmul.mubr.bf16.gmra.mxu0 %v579
      %v749 = vpop.f32.mrf.mxu0
      %v750 = vadd.f32 %v505, %v749
      %v751 = vpop.f32.mrf.mxu0
      %v752 = vpop.f32.mrf.mxu0
      %v753 = vadd.f32 %v505, %v752
      %v754 = vpop.f32.mrf.mxu0
      %755 = vmatprep.mubr.bf16.mxu0 0
      %756 = vmatmul.mubr.bf16.gmra.mxu0 %v580
      %v757 = vpop.f32.mrf.mxu0
      %v758 = vadd.f32 %v505, %v757
      %v759 = vpop.f32.mrf.mxu0
      %v760 = vpop.f32.mrf.mxu0
      %v761 = vadd.f32 %v505, %v760
      %v762 = vpop.f32.mrf.mxu0
      %763 = vmatprep.mubr.bf16.mxu0 0
      %764 = vmatmul.mubr.bf16.gmra.mxu0 %v581
      %v765 = vpop.f32.mrf.mxu0
      %v766 = vadd.f32 %v505, %v765
      %v767 = vpop.f32.mrf.mxu0
      %v768 = vpop.f32.mrf.mxu0
      %v769 = vadd.f32 %v505, %v768
      %v770 = vpop.f32.mrf.mxu0
      %771 = vmatprep.mubr.bf16.mxu0 0
      %772 = vmatmul.mubr.bf16.gmra.mxu0 %v582
      %v773 = vpop.f32.mrf.mxu0
      %v774 = vadd.f32 %v505, %v773
      %v775 = vpop.f32.mrf.mxu0
      %v776 = vpop.f32.mrf.mxu0
      %v777 = vadd.f32 %v505, %v776
      %v778 = vpop.f32.mrf.mxu0
      %779 = vmatprep.mubr.bf16.mxu0 0
      %780 = vmatmul.mubr.bf16.gmra.mxu0 %v583
      %v781 = vpop.f32.mrf.mxu0
      %v782 = vadd.f32 %v505, %v781
      %v783 = vpop.f32.mrf.mxu0
      %v784 = vpop.f32.mrf.mxu0
      %v785 = vadd.f32 %v505, %v784
      %v786 = vpop.f32.mrf.mxu0
      %787 = vmatprep.mubr.bf16.mxu0 0
      %788 = vmatmul.mubr.bf16.gmra.mxu0 %v584
      %v789 = vpop.f32.mrf.mxu0
      %v790 = vadd.f32 %v505, %v789
      %v791 = vpop.f32.mrf.mxu0
      %v792 = vpop.f32.mrf.mxu0
      %v793 = vadd.f32 %v505, %v792
      %v794 = vpop.f32.mrf.mxu0
      %795 = vmatprep.mubr.bf16.mxu0 0
      %796 = vmatmul.mubr.bf16.gmra.mxu0 %v585
      %v797 = vpop.f32.mrf.mxu0
      %v798 = vadd.f32 %v505, %v797
      %v799 = vpop.f32.mrf.mxu0
      %v800 = vpop.f32.mrf.mxu0
      %v801 = vadd.f32 %v505, %v800
      %v802 = vpop.f32.mrf.mxu0
      %803 = vmatprep.mubr.bf16.mxu0 0
      %804 = vmatmul.mubr.bf16.gmra.mxu0 %v586
      %v805 = vpop.f32.mrf.mxu0
      %v806 = vadd.f32 %v505, %v805
      %v807 = vpop.f32.mrf.mxu0
      %v808 = vpop.f32.mrf.mxu0
      %v809 = vadd.f32 %v505, %v808
      %v810 = vpop.f32.mrf.mxu0
      %811 = vdwg.mxu0
      %v812 = vadd.f32 %v420, %v686
      %v813 = vadd.f32 %v421, %v689
      %v814 = vadd.f32 %v422, %v694
      %v815 = vadd.f32 %v423, %v697
      %v816 = vadd.f32 %v424, %v702
      %v817 = vadd.f32 %v425, %v705
      %v818 = vadd.f32 %v426, %v710
      %v819 = vadd.f32 %v427, %v713
      %v820 = vadd.f32 %v428, %v718
      %v821 = vadd.f32 %v429, %v721
      %v822 = vadd.f32 %v430, %v726
      %v823 = vadd.f32 %v431, %v729
      %v824 = vadd.f32 %v432, %v734
      %v825 = vadd.f32 %v433, %v737
      %v826 = vadd.f32 %v434, %v742
      %v827 = vadd.f32 %v435, %v745
      %v828 = vadd.f32 %v436, %v750
      %v829 = vadd.f32 %v437, %v753
      %v830 = vadd.f32 %v438, %v758
      %v831 = vadd.f32 %v439, %v761
      %v832 = vadd.f32 %v440, %v766
      %v833 = vadd.f32 %v441, %v769
      %v834 = vadd.f32 %v442, %v774
      %v835 = vadd.f32 %v443, %v777
      %v836 = vadd.f32 %v444, %v782
      %v837 = vadd.f32 %v445, %v785
      %v838 = vadd.f32 %v446, %v790
      %v839 = vadd.f32 %v447, %v793
      %v840 = vadd.f32 %v448, %v798
      %v841 = vadd.f32 %v449, %v801
      %v842 = vadd.f32 %v450, %v806
      %v843 = vadd.f32 %v451, %v809
      %844 = vst [vmem:[%s275] sm:$0xff] %v812
      %845 = vst [vmem:[%s275 + $0x8] sm:$0xff] %v813
      %846 = vst [vmem:[%s275 + $0x10] sm:$0xff] %v814
      %847 = vst [vmem:[%s275 + $0x18] sm:$0xff] %v815
      %848 = vst [vmem:[%s275 + $0x20] sm:$0xff] %v816
      %849 = vst [vmem:[%s275 + $0x28] sm:$0xff] %v817
      %850 = vst [vmem:[%s275 + $0x30] sm:$0xff] %v818
      %851 = vst [vmem:[%s275 + $0x38] sm:$0xff] %v819
      %852 = vst [vmem:[%s275 + $0x40] sm:$0xff] %v820
      %853 = vst [vmem:[%s275 + $0x48] sm:$0xff] %v821
      %854 = vst [vmem:[%s275 + $0x50] sm:$0xff] %v822
      %855 = vst [vmem:[%s275 + $0x58] sm:$0xff] %v823
      %856 = vst [vmem:[%s275 + $0x60] sm:$0xff] %v824
      %857 = vst [vmem:[%s275 + $0x68] sm:$0xff] %v825
      %858 = vst [vmem:[%s275 + $0x70] sm:$0xff] %v826
      %859 = vst [vmem:[%s275 + $0x78] sm:$0xff] %v827
      %860 = vst [vmem:[%s275 + $0x80] sm:$0xff] %v828
      %861 = vst [vmem:[%s275 + $0x88] sm:$0xff] %v829
      %862 = vst [vmem:[%s275 + $0x90] sm:$0xff] %v830
      %863 = vst [vmem:[%s275 + $0x98] sm:$0xff] %v831
      %864 = vst [vmem:[%s275 + $0xa0] sm:$0xff] %v832
      %865 = vst [vmem:[%s275 + $0xa8] sm:$0xff] %v833
      %866 = vst [vmem:[%s275 + $0xb0] sm:$0xff] %v834
      %867 = vst [vmem:[%s275 + $0xb8] sm:$0xff] %v835
      %868 = vst [vmem:[%s275 + $0xc0] sm:$0xff] %v836
      %869 = vst [vmem:[%s275 + $0xc8] sm:$0xff] %v837
      %870 = vst [vmem:[%s275 + $0xd0] sm:$0xff] %v838
      %871 = vst [vmem:[%s275 + $0xd8] sm:$0xff] %v839
      %872 = vst [vmem:[%s275 + $0xe0] sm:$0xff] %v840
      %873 = vst [vmem:[%s275 + $0xe8] sm:$0xff] %v841
      %874 = vst [vmem:[%s275 + $0xf0] sm:$0xff] %v842
      %875 = vst [vmem:[%s275 + $0xf8] sm:$0xff] %v843
      %s876 = smul.u32 32, %s17
      %p877 = scmp.lt.s32.totalorder %s876, 63
      %s878 = scalar_select %p877, %s876, 63
      %s879 = smul.addr %s878, 8
      %s880 = scalar_lea.vmem %s6, %s879
      // Predicated region
      $region45: #{_bottleneck_jit.7} parent=43 // pred_check
        %p881 = pneg %p171
      $region46: #{_bottleneck_jit.7} parent=43 // pred_check_branch
        %883 = sbr.rel (%p881) target = $region48
      $region47: #{_bottleneck_jit.7} parent=43 // pred_region
        %s884 = smul.u32 32, %s17
      $region48: #{_bottleneck_jit.7} parent=43 // pred_fallthru
        _
    $region44: #{_bottleneck_jit.7} parent=5 // pred_fallthru
      _
    %p885 = scmp.le.s32.totalorder 2, %s12
    // Predicated region
    $region49: #{_bottleneck_jit.7} parent=5 // pred_check
      %p886 = pneg %p885
    $region50: #{_bottleneck_jit.7} parent=5 // pred_check_branch
      %888 = sbr.rel (%p886) target = $region52
    $region51: #{_bottleneck_jit.7} parent=5 // pred_region
      %s889 = ssub.s32 %s12, 2
      // Predicated region
      $region53: #{_bottleneck_jit.7} parent=51 // pred_check
        %p890 = pneg %p177
      $region54: #{_bottleneck_jit.7} parent=51 // pred_check_branch
        %892 = sbr.rel (%p890) target = $region56
      $region55: #{_bottleneck_jit.7} parent=51 // pred_region
        %s893 = smul.u32 32, %s18
        %p894 = scmp.lt.s32.totalorder %s893, 63
        %s895 = scalar_select %p894, %s893, 63
        %s896 = smul.addr %s895, 8
        %s897 = scalar_lea.vmem %s6, %s896
      $region56: #{_bottleneck_jit.7} parent=51 // pred_fallthru
        _
    $region52: #{_bottleneck_jit.7} parent=5 // pred_fallthru
      _
  $region6: #{_bottleneck_jit.7} parent=0 // loop_footer
    %s16 = sadd.s32 1, %s12
  $region7: #{_bottleneck_jit.7} parent=0 // loop_footer_branch
    %11 = sbr.rel target = $region3
  $region8: #{_bottleneck_jit.7} parent=0 // loop_exit
    _

// kernel: _bottleneck_jit.6
$region0: #{_bottleneck_jit.6}
  #allocation0 [shape = 'u32[]', space=smem, size = 0x4, offset = 0x4, fixed_abs, tag = 'smem constant byte address 0x4 - core index']
  #allocation1 [shape = 'u32[144,128]{1,0:T(1,128)}', space=vmem, size = 0x12000, scoped, tag = 'internal scratch']
  %s0 = inlined_call_operand.vmem [shape: bf16[512,128], index: 0, kind: input, shape index: {}]
  %s1 = inlined_call_operand.vmem [shape: f32[1,128], index: 1, kind: input, shape index: {}]
  %s2 = inlined_call_operand.vmem [shape: f32[1,128], index: 2, kind: input, shape index: {}]
  %s3 = inlined_call_operand.vmem [shape: bf16[128,128], index: 3, kind: input, shape index: {}]
  %s4 = inlined_call_operand.vmem [shape: bf16[512,128], index: 4, kind: output, shape index: {0}]
  %s5 = inlined_call_operand.vmem [shape: f32[2,2,128], index: 5, kind: output, shape index: {1}]
  %6 = xla_tuple %s4, %s5
  %s7 = sld [smem:[#allocation0]]
  $region57: #{_bottleneck_jit.6} parent=0
    _
  %s9 = ssub.s32 1, %s7
  %s10 = scalar_select 0, %s9, %s7
  loop: start=0, step=1, limit=4
  $region2: #{_bottleneck_jit.6} parent=0 // loop_pre_header
    _
  $region3: #{_bottleneck_jit.6} parent=0 // loop_header
    %s12 = sphi 0, %s16
    %p13 = scmp.ge.s32.totalorder %s12, 4
    %s22 = sphi 0, %s24
    %s25 = sphi 0, %s22
    %s26 = sphi 0, %s25
    %s42 = sphi 0, %s26
    %s46 = sphi 0, %s46
    %s48 = sphi 0, %s46
    %s49 = sphi 0, %s48
    %s63 = sphi 0, %s49
    %s67 = sphi 0, %s67
    %s69 = sphi 0, %s67
    %s70 = sphi 0, %s69
    %s84 = sphi 0, %s70
    %s88 = sphi 0, %s88
    %s90 = sphi 0, %s88
    %s91 = sphi 0, %s90
    %s105 = sphi 0, %s91
    %s111 = sphi 0, %s113
    %s114 = sphi 0, %s111
    %s115 = sphi 0, %s114
    %s131 = sphi 0, %s115
    %s137 = sphi 0, %s139
    %s140 = sphi 0, %s137
    %s141 = sphi 0, %s140
    %s157 = sphi 0, %s141
  $region4: #{_bottleneck_jit.6} parent=0 // loop_header_branch
    %15 = sbr.rel (%p13) target = $region8
  $region5: #{_bottleneck_jit.6} parent=0 // loop_body
    %s17 = ssub.s32 %s12, 1
    %s18 = ssub.s32 %s12, 2
    %s19 = sadd.s32 %s12, 1
    %s20 = ssub.s32 %s12, %s19
    %p21 = scmp.eq.s32.totalorder %s20, 0
    %s23 = sadd.s32 %s22, 1
    %s24 = scalar_select %p21, %s22, %s23
    %p27 = pneg %p21
    %p28 = scmp.eq.s32.totalorder %s12, 1
    %p29 = por %p27, %p28
    %p30 = scmp.ne.s32.totalorder %s22, %s25
    %p31 = scmp.eq.s32.totalorder %s12, 0
    %p32 = por %p30, %p31
    %p33 = scmp.ne.s32.totalorder %s22, %s25
    %p34 = scmp.eq.s32.totalorder %s17, 1
    %p35 = por %p33, %p34
    %p36 = scmp.ne.s32.totalorder %s25, %s26
    %p37 = scmp.eq.s32.totalorder %s17, 0
    %p38 = por %p36, %p37
    %p39 = scmp.ne.s32.totalorder %s25, %s26
    %p40 = scmp.eq.s32.totalorder %s18, 1
    %p41 = por %p39, %p40
    %p43 = scmp.ne.s32.totalorder %s26, %s42
    %p44 = scmp.eq.s32.totalorder %s18, 0
    %p45 = por %p43, %p44
    %s47 = sadd.s32 %s46, 1
    %p50 = scmp.eq.s32.totalorder %s12, 1
    %p51 = scmp.ne.s32.totalorder %s46, %s48
    %p52 = scmp.eq.s32.totalorder %s12, 0
    %p53 = por %p51, %p52
    %p54 = scmp.ne.s32.totalorder %s46, %s48
    %p55 = scmp.eq.s32.totalorder %s17, 1
    %p56 = por %p54, %p55
    %p57 = scmp.ne.s32.totalorder %s48, %s49
    %p58 = scmp.eq.s32.totalorder %s17, 0
    %p59 = por %p57, %p58
    %p60 = scmp.ne.s32.totalorder %s48, %s49
    %p61 = scmp.eq.s32.totalorder %s18, 1
    %p62 = por %p60, %p61
    %p64 = scmp.ne.s32.totalorder %s49, %s63
    %p65 = scmp.eq.s32.totalorder %s18, 0
    %p66 = por %p64, %p65
    %s68 = sadd.s32 %s67, 1
    %p71 = scmp.eq.s32.totalorder %s12, 1
    %p72 = scmp.ne.s32.totalorder %s67, %s69
    %p73 = scmp.eq.s32.totalorder %s12, 0
    %p74 = por %p72, %p73
    %p75 = scmp.ne.s32.totalorder %s67, %s69
    %p76 = scmp.eq.s32.totalorder %s17, 1
    %p77 = por %p75, %p76
    %p78 = scmp.ne.s32.totalorder %s69, %s70
    %p79 = scmp.eq.s32.totalorder %s17, 0
    %p80 = por %p78, %p79
    %p81 = scmp.ne.s32.totalorder %s69, %s70
    %p82 = scmp.eq.s32.totalorder %s18, 1
    %p83 = por %p81, %p82
    %p85 = scmp.ne.s32.totalorder %s70, %s84
    %p86 = scmp.eq.s32.totalorder %s18, 0
    %p87 = por %p85, %p86
    %s89 = sadd.s32 %s88, 1
    %p92 = scmp.eq.s32.totalorder %s12, 1
    %p93 = scmp.ne.s32.totalorder %s88, %s90
    %p94 = scmp.eq.s32.totalorder %s12, 0
    %p95 = por %p93, %p94
    %p96 = scmp.ne.s32.totalorder %s88, %s90
    %p97 = scmp.eq.s32.totalorder %s17, 1
    %p98 = por %p96, %p97
    %p99 = scmp.ne.s32.totalorder %s90, %s91
    %p100 = scmp.eq.s32.totalorder %s17, 0
    %p101 = por %p99, %p100
    %p102 = scmp.ne.s32.totalorder %s90, %s91
    %p103 = scmp.eq.s32.totalorder %s18, 1
    %p104 = por %p102, %p103
    %p106 = scmp.ne.s32.totalorder %s91, %s105
    %p107 = scmp.eq.s32.totalorder %s18, 0
    %p108 = por %p106, %p107
    %s109 = ssub.s32 %s12, %s19
    %p110 = scmp.eq.s32.totalorder %s109, 0
    %s112 = sadd.s32 %s111, 1
    %s113 = scalar_select %p110, %s111, %s112
    %p116 = pneg %p110
    %p117 = scmp.eq.s32.totalorder %s12, 1
    %p118 = por %p116, %p117
    %p119 = scmp.ne.s32.totalorder %s111, %s114
    %p120 = scmp.eq.s32.totalorder %s12, 0
    %p121 = por %p119, %p120
    %p122 = scmp.ne.s32.totalorder %s111, %s114
    %p123 = scmp.eq.s32.totalorder %s17, 1
    %p124 = por %p122, %p123
    %p125 = scmp.ne.s32.totalorder %s114, %s115
    %p126 = scmp.eq.s32.totalorder %s17, 0
    %p127 = por %p125, %p126
    %p128 = scmp.ne.s32.totalorder %s114, %s115
    %p129 = scmp.eq.s32.totalorder %s18, 1
    %p130 = por %p128, %p129
    %p132 = scmp.ne.s32.totalorder %s115, %s131
    %p133 = scmp.eq.s32.totalorder %s18, 0
    %p134 = por %p132, %p133
    %s135 = ssub.s32 %s12, %s19
    %p136 = scmp.eq.s32.totalorder %s135, 0
    %s138 = sadd.s32 %s137, 1
    %s139 = scalar_select %p136, %s137, %s138
    %p142 = pneg %p136
    %p143 = scmp.eq.s32.totalorder %s12, 1
    %p144 = por %p142, %p143
    %p145 = scmp.ne.s32.totalorder %s137, %s140
    %p146 = scmp.eq.s32.totalorder %s12, 0
    %p147 = por %p145, %p146
    %p148 = scmp.ne.s32.totalorder %s137, %s140
    %p149 = scmp.eq.s32.totalorder %s17, 1
    %p150 = por %p148, %p149
    %p151 = scmp.ne.s32.totalorder %s140, %s141
    %p152 = scmp.eq.s32.totalorder %s17, 0
    %p153 = por %p151, %p152
    %p154 = scmp.ne.s32.totalorder %s140, %s141
    %p155 = scmp.eq.s32.totalorder %s18, 1
    %p156 = por %p154, %p155
    %p158 = scmp.ne.s32.totalorder %s141, %s157
    %p159 = scmp.eq.s32.totalorder %s18, 0
    %p160 = por %p158, %p159
    %p161 = scmp.le.s32.totalorder 1, %s12
    %p162 = scmp.lt.s32.totalorder %s12, 3
    %p163 = pnand %p161, %p162
    %p164 = pneg %p163
    // Predicated region
    $region9: #{_bottleneck_jit.6} parent=5 // pred_check
      _
    $region10: #{_bottleneck_jit.6} parent=5 // pred_check_branch
      %166 = sbr.rel (%p163) target = $region12
    $region11: #{_bottleneck_jit.6} parent=5 // pred_region
      %s167 = ssub.s32 %s12, 1
      // Predicated region
      $region13: #{_bottleneck_jit.6} parent=11 // pred_check
        %p168 = pneg %p59
      $region14: #{_bottleneck_jit.6} parent=11 // pred_check_branch
        %170 = sbr.rel (%p168) target = $region16
      $region15: #{_bottleneck_jit.6} parent=11 // pred_region
        _
      $region16: #{_bottleneck_jit.6} parent=11 // pred_fallthru
        _
      // Predicated region
      $region17: #{_bottleneck_jit.6} parent=11 // pred_check
        %p171 = pneg %p80
      $region18: #{_bottleneck_jit.6} parent=11 // pred_check_branch
        %173 = sbr.rel (%p171) target = $region20
      $region19: #{_bottleneck_jit.6} parent=11 // pred_region
        _
      $region20: #{_bottleneck_jit.6} parent=11 // pred_fallthru
        _
      // Predicated region
      $region21: #{_bottleneck_jit.6} parent=11 // pred_check
        %p174 = pneg %p101
      $region22: #{_bottleneck_jit.6} parent=11 // pred_check_branch
        %176 = sbr.rel (%p174) target = $region24
      $region23: #{_bottleneck_jit.6} parent=11 // pred_region
        _
      $region24: #{_bottleneck_jit.6} parent=11 // pred_fallthru
        _
    $region12: #{_bottleneck_jit.6} parent=5 // pred_fallthru
      _
    %p177 = scmp.lt.s32.totalorder %s12, 2
    // Predicated region
    $region25: #{_bottleneck_jit.6} parent=5 // pred_check
      %p178 = pneg %p177
    $region26: #{_bottleneck_jit.6} parent=5 // pred_check_branch
      %180 = sbr.rel (%p178) target = $region28
    $region27: #{_bottleneck_jit.6} parent=5 // pred_region
      // Predicated region
      $region29: #{_bottleneck_jit.6} parent=27 // pred_check
        %p181 = pneg %p32
      $region30: #{_bottleneck_jit.6} parent=27 // pred_check_branch
        %183 = sbr.rel (%p181) target = $region32
      $region31: #{_bottleneck_jit.6} parent=27 // pred_region
        %s184 = smul.u32 32, %s12
        %p185 = scmp.lt.s32.totalorder %s184, 63
        %s186 = scalar_select %p185, %s184, 63
        %s187 = smul.addr %s186, 4
        %s188 = scalar_lea.vmem %s0, %s187
        %s189 = smul.u32 32, %s12
      $region32: #{_bottleneck_jit.6} parent=27 // pred_fallthru
        _
    $region28: #{_bottleneck_jit.6} parent=5 // pred_fallthru
      _
    %p190 = scmp.le.s32.totalorder 1, %s12
    %p191 = scmp.lt.s32.totalorder %s12, 3
    %p192 = pnand %p190, %p191
    %p193 = pneg %p192
    // Predicated region
    $region33: #{_bottleneck_jit.6} parent=5 // pred_check
      _
    $region34: #{_bottleneck_jit.6} parent=5 // pred_check_branch
      %195 = sbr.rel (%p192) target = $region36
    $region35: #{_bottleneck_jit.6} parent=5 // pred_region
      %s196 = ssub.s32 %s12, 1
      %s197 = smul.u32 32, %s17
      %p198 = scmp.lt.s32.totalorder %s197, 63
      %s199 = scalar_select %p198, %s197, 63
      %s200 = smul.addr %s199, 4
      %s201 = scalar_lea.vmem %s0, %s200
      %p202 = pneg %p38
      %p203 = pneg %p35
      %p204 = pneg %p59
      %p205 = pneg %p56
      %p206 = pneg %p80
      %p207 = pneg %p77
      %p208 = pneg %p101
      %p209 = pneg %p98
      %p210 = pneg %p127
      %p211 = pneg %p124
      %s212 = smul.u32 32, %s17
      %p213 = scmp.lt.s32.totalorder %s212, 63
      %s214 = scalar_select %p213, %s212, 63
      %s215 = smul.addr %s214, 4
      %s216 = scalar_lea.vmem %s4, %s215
      %p217 = pneg %p153
      %p218 = pneg %p150
      %p219 = scmp.lt.s32.totalorder %s17, 1
      %s220 = scalar_select %p219, %s17, 1
      %s221 = smul.addr %s220, 2
      %s222 = scalar_lea.vmem %s5, %s221
      %s223 = smul.u32 32, %s17
      %p224 = scmp.lt.s32.totalorder %s223, 63
      %s225 = scalar_select %p224, %s223, 63
      %s226 = smul.addr %s225, 4
      %s227 = scalar_lea.vmem %s0, %s226
      %s228 = smul.u32 32, %s17
      %s229 = smul.u32 32, %s17
      %p230 = scmp.lt.s32.totalorder %s229, 63
      %s231 = scalar_select %p230, %s229, 63
      %s232 = smul.addr %s231, 4
      %s233 = scalar_lea.vmem %s4, %s232
      %s234 = smul.u32 32, %s17
      %p235 = scmp.lt.s32.totalorder %s17, 1
      %s236 = scalar_select %p235, %s17, 1
      %s237 = smul.addr %s236, 2
      %s238 = scalar_lea.vmem %s5, %s237
      %v240 = vld [vmem:[%s227] sm:$0xf]
      %v241 = vld [vmem:[%s227 + $0x4] sm:$0xf]
      %v242 = vld [vmem:[%s227 + $0x8] sm:$0xf]
      %v243 = vld [vmem:[%s227 + $0xc] sm:$0xf]
      %v244 = vld [vmem:[%s227 + $0x10] sm:$0xf]
      %v245 = vld [vmem:[%s227 + $0x14] sm:$0xf]
      %v246 = vld [vmem:[%s227 + $0x18] sm:$0xf]
      %v247 = vld [vmem:[%s227 + $0x1c] sm:$0xf]
      %v248 = vld [vmem:[%s227 + $0x20] sm:$0xf]
      %v249 = vld [vmem:[%s227 + $0x24] sm:$0xf]
      %v250 = vld [vmem:[%s227 + $0x28] sm:$0xf]
      %v251 = vld [vmem:[%s227 + $0x2c] sm:$0xf]
      %v252 = vld [vmem:[%s227 + $0x30] sm:$0xf]
      %v253 = vld [vmem:[%s227 + $0x34] sm:$0xf]
      %v254 = vld [vmem:[%s227 + $0x38] sm:$0xf]
      %v255 = vld [vmem:[%s227 + $0x3c] sm:$0xf]
      %v256 = vld [vmem:[%s227 + $0x40] sm:$0xf]
      %v257 = vld [vmem:[%s227 + $0x44] sm:$0xf]
      %v258 = vld [vmem:[%s227 + $0x48] sm:$0xf]
      %v259 = vld [vmem:[%s227 + $0x4c] sm:$0xf]
      %v260 = vld [vmem:[%s227 + $0x50] sm:$0xf]
      %v261 = vld [vmem:[%s227 + $0x54] sm:$0xf]
      %v262 = vld [vmem:[%s227 + $0x58] sm:$0xf]
      %v263 = vld [vmem:[%s227 + $0x5c] sm:$0xf]
      %v264 = vld [vmem:[%s227 + $0x60] sm:$0xf]
      %v265 = vld [vmem:[%s227 + $0x64] sm:$0xf]
      %v266 = vld [vmem:[%s227 + $0x68] sm:$0xf]
      %v267 = vld [vmem:[%s227 + $0x6c] sm:$0xf]
      %v268 = vld [vmem:[%s227 + $0x70] sm:$0xf]
      %v269 = vld [vmem:[%s227 + $0x74] sm:$0xf]
      %v270 = vld [vmem:[%s227 + $0x78] sm:$0xf]
      %v271 = vld [vmem:[%s227 + $0x7c] sm:$0xf]
      %v272 = vld [vmem:[%s1] sm:$0x1]
      %v273 = vunpack.c.l.bf16 %v240
      %v274 = vunpack.c.l.bf16 %v241
      %v275 = vunpack.c.l.bf16 %v242
      %v276 = vunpack.c.l.bf16 %v243
      %v277 = vunpack.c.l.bf16 %v244
      %v278 = vunpack.c.l.bf16 %v245
      %v279 = vunpack.c.l.bf16 %v246
      %v280 = vunpack.c.l.bf16 %v247
      %v281 = vunpack.c.l.bf16 %v248
      %v282 = vunpack.c.l.bf16 %v249
      %v283 = vunpack.c.l.bf16 %v250
      %v284 = vunpack.c.l.bf16 %v251
      %v285 = vunpack.c.l.bf16 %v252
      %v286 = vunpack.c.l.bf16 %v253
      %v287 = vunpack.c.l.bf16 %v254
      %v288 = vunpack.c.l.bf16 %v255
      %v289 = vunpack.c.l.bf16 %v256
      %v290 = vunpack.c.l.bf16 %v257
      %v291 = vunpack.c.l.bf16 %v258
      %v292 = vunpack.c.l.bf16 %v259
      %v293 = vunpack.c.l.bf16 %v260
      %v294 = vunpack.c.l.bf16 %v261
      %v295 = vunpack.c.l.bf16 %v262
      %v296 = vunpack.c.l.bf16 %v263
      %v297 = vunpack.c.l.bf16 %v264
      %v298 = vunpack.c.l.bf16 %v265
      %v299 = vunpack.c.l.bf16 %v266
      %v300 = vunpack.c.l.bf16 %v267
      %v301 = vunpack.c.l.bf16 %v268
      %v302 = vunpack.c.l.bf16 %v269
      %v303 = vunpack.c.l.bf16 %v270
      %v304 = vunpack.c.l.bf16 %v271
      %v306 = vlaneseq
      %v307 = vshrl.u32 %v306, 7
      %v308 = vsub.s32 0, %v307
      %v309 = vrot.slane %v272, %v308
      %v311 = vmul.f32 %v273, %v309
      %v312 = vmul.f32 %v274, %v309
      %v313 = vmul.f32 %v275, %v309
      %v314 = vmul.f32 %v276, %v309
      %v315 = vmul.f32 %v277, %v309
      %v316 = vmul.f32 %v278, %v309
      %v317 = vmul.f32 %v279, %v309
      %v318 = vmul.f32 %v280, %v309
      %v319 = vmul.f32 %v281, %v309
      %v320 = vmul.f32 %v282, %v309
      %v321 = vmul.f32 %v283, %v309
      %v322 = vmul.f32 %v284, %v309
      %v323 = vmul.f32 %v285, %v309
      %v324 = vmul.f32 %v286, %v309
      %v325 = vmul.f32 %v287, %v309
      %v326 = vmul.f32 %v288, %v309
      %v327 = vmul.f32 %v289, %v309
      %v328 = vmul.f32 %v290, %v309
      %v329 = vmul.f32 %v291, %v309
      %v330 = vmul.f32 %v292, %v309
      %v331 = vmul.f32 %v293, %v309
      %v332 = vmul.f32 %v294, %v309
      %v333 = vmul.f32 %v295, %v309
      %v334 = vmul.f32 %v296, %v309
      %v335 = vmul.f32 %v297, %v309
      %v336 = vmul.f32 %v298, %v309
      %v337 = vmul.f32 %v299, %v309
      %v338 = vmul.f32 %v300, %v309
      %v339 = vmul.f32 %v301, %v309
      %v340 = vmul.f32 %v302, %v309
      %v341 = vmul.f32 %v303, %v309
      %v342 = vmul.f32 %v304, %v309
      %v343 = vld [vmem:[%s2] sm:$0x1]
      %v345 = vlaneseq
      %v346 = vshrl.u32 %v345, 7
      %v347 = vsub.s32 0, %v346
      %v348 = vrot.slane %v343, %v347
      %v350 = vadd.f32 %v311, %v348
      %v351 = vadd.f32 %v312, %v348
      %v352 = vadd.f32 %v313, %v348
      %v353 = vadd.f32 %v314, %v348
      %v354 = vadd.f32 %v315, %v348
      %v355 = vadd.f32 %v316, %v348
      %v356 = vadd.f32 %v317, %v348
      %v357 = vadd.f32 %v318, %v348
      %v358 = vadd.f32 %v319, %v348
      %v359 = vadd.f32 %v320, %v348
      %v360 = vadd.f32 %v321, %v348
      %v361 = vadd.f32 %v322, %v348
      %v362 = vadd.f32 %v323, %v348
      %v363 = vadd.f32 %v324, %v348
      %v364 = vadd.f32 %v325, %v348
      %v365 = vadd.f32 %v326, %v348
      %v366 = vadd.f32 %v327, %v348
      %v367 = vadd.f32 %v328, %v348
      %v368 = vadd.f32 %v329, %v348
      %v369 = vadd.f32 %v330, %v348
      %v370 = vadd.f32 %v331, %v348
      %v371 = vadd.f32 %v332, %v348
      %v372 = vadd.f32 %v333, %v348
      %v373 = vadd.f32 %v334, %v348
      %v374 = vadd.f32 %v335, %v348
      %v375 = vadd.f32 %v336, %v348
      %v376 = vadd.f32 %v337, %v348
      %v377 = vadd.f32 %v338, %v348
      %v378 = vadd.f32 %v339, %v348
      %v379 = vadd.f32 %v340, %v348
      %v380 = vadd.f32 %v341, %v348
      %v381 = vadd.f32 %v342, %v348
      %v382 = vmax.f32 %v350, 0.0
      %v383 = vmax.f32 %v351, 0.0
      %v384 = vmax.f32 %v352, 0.0
      %v385 = vmax.f32 %v353, 0.0
      %v386 = vmax.f32 %v354, 0.0
      %v387 = vmax.f32 %v355, 0.0
      %v388 = vmax.f32 %v356, 0.0
      %v389 = vmax.f32 %v357, 0.0
      %v390 = vmax.f32 %v358, 0.0
      %v391 = vmax.f32 %v359, 0.0
      %v392 = vmax.f32 %v360, 0.0
      %v393 = vmax.f32 %v361, 0.0
      %v394 = vmax.f32 %v362, 0.0
      %v395 = vmax.f32 %v363, 0.0
      %v396 = vmax.f32 %v364, 0.0
      %v397 = vmax.f32 %v365, 0.0
      %v398 = vmax.f32 %v366, 0.0
      %v399 = vmax.f32 %v367, 0.0
      %v400 = vmax.f32 %v368, 0.0
      %v401 = vmax.f32 %v369, 0.0
      %v402 = vmax.f32 %v370, 0.0
      %v403 = vmax.f32 %v371, 0.0
      %v404 = vmax.f32 %v372, 0.0
      %v405 = vmax.f32 %v373, 0.0
      %v406 = vmax.f32 %v374, 0.0
      %v407 = vmax.f32 %v375, 0.0
      %v408 = vmax.f32 %v376, 0.0
      %v409 = vmax.f32 %v377, 0.0
      %v410 = vmax.f32 %v378, 0.0
      %v411 = vmax.f32 %v379, 0.0
      %v412 = vmax.f32 %v380, 0.0
      %v413 = vmax.f32 %v381, 0.0
      %v414 = vpack.c.bf16 %v383, %v382
      %v415 = vpack.c.bf16 %v385, %v384
      %v416 = vpack.c.bf16 %v387, %v386
      %v417 = vpack.c.bf16 %v389, %v388
      %v418 = vpack.c.bf16 %v391, %v390
      %v419 = vpack.c.bf16 %v393, %v392
      %v420 = vpack.c.bf16 %v395, %v394
      %v421 = vpack.c.bf16 %v397, %v396
      %v422 = vpack.c.bf16 %v399, %v398
      %v423 = vpack.c.bf16 %v401, %v400
      %v424 = vpack.c.bf16 %v403, %v402
      %v425 = vpack.c.bf16 %v405, %v404
      %v426 = vpack.c.bf16 %v407, %v406
      %v427 = vpack.c.bf16 %v409, %v408
      %v428 = vpack.c.bf16 %v411, %v410
      %v429 = vpack.c.bf16 %v413, %v412
      %v430 = vld [vmem:[%s3] sm:$0xf]
      %v431 = vld [vmem:[%s3 + $0x4] sm:$0xf]
      %v432 = vld [vmem:[%s3 + $0x8] sm:$0xf]
      %v433 = vld [vmem:[%s3 + $0xc] sm:$0xf]
      %v434 = vld [vmem:[%s3 + $0x10] sm:$0xf]
      %v435 = vld [vmem:[%s3 + $0x14] sm:$0xf]
      %v436 = vld [vmem:[%s3 + $0x18] sm:$0xf]
      %v437 = vld [vmem:[%s3 + $0x1c] sm:$0xf]
      %v438 = vld [vmem:[%s3 + $0x20] sm:$0xf]
      %v439 = vld [vmem:[%s3 + $0x24] sm:$0xf]
      %v440 = vld [vmem:[%s3 + $0x28] sm:$0xf]
      %v441 = vld [vmem:[%s3 + $0x2c] sm:$0xf]
      %v442 = vld [vmem:[%s3 + $0x30] sm:$0xf]
      %v443 = vld [vmem:[%s3 + $0x34] sm:$0xf]
      %v444 = vld [vmem:[%s3 + $0x38] sm:$0xf]
      %v445 = vld [vmem:[%s3 + $0x3c] sm:$0xf]
      %v462 = vunpack.c.l.b16 %v430
      %v463 = vunpack.c.l.b16 %v431
      %v464 = vunpack.c.l.b16 %v432
      %v465 = vunpack.c.l.b16 %v433
      %v466 = vunpack.c.l.b16 %v434
      %v467 = vunpack.c.l.b16 %v435
      %v468 = vunpack.c.l.b16 %v436
      %v469 = vunpack.c.l.b16 %v437
      %v470 = vunpack.c.l.b16 %v438
      %v471 = vunpack.c.l.b16 %v439
      %v472 = vunpack.c.l.b16 %v440
      %v473 = vunpack.c.l.b16 %v441
      %v474 = vunpack.c.l.b16 %v442
      %v475 = vunpack.c.l.b16 %v443
      %v476 = vunpack.c.l.b16 %v444
      %v477 = vunpack.c.l.b16 %v445
      %v478 = vpack.c.b16 %v463, %v462
      %v479 = vpack.c.b16 %v465, %v464
      %v480 = vpack.c.b16 %v467, %v466
      %v481 = vpack.c.b16 %v469, %v468
      %v482 = vpack.c.b16 %v471, %v470
      %v483 = vpack.c.b16 %v473, %v472
      %v484 = vpack.c.b16 %v475, %v474
      %v485 = vpack.c.b16 %v477, %v476
      %494 = vmatprep.subr.bf16.mxu0 0
      %495 = vmatpush1.bf16.msra.mxu0 %v485
      %496 = vmatprep.subr.bf16.mxu0 0
      %497 = vmatpush1.bf16.msra.mxu0 %v484
      %498 = vmatprep.subr.bf16.mxu0 0
      %499 = vmatpush1.bf16.msra.mxu0 %v483
      %500 = vmatprep.subr.bf16.mxu0 0
      %501 = vmatpush1.bf16.msra.mxu0 %v482
      %502 = vmatprep.subr.bf16.mxu0 0
      %503 = vmatpush1.bf16.msra.mxu0 %v481
      %504 = vmatprep.subr.bf16.mxu0 0
      %505 = vmatpush1.bf16.msra.mxu0 %v480
      %506 = vmatprep.subr.bf16.mxu0 0
      %507 = vmatpush1.bf16.msra.mxu0 %v479
      %508 = vmatprep.subr.bf16.mxu0 0
      %509 = vmatpush1.bf16.msra.mxu0 %v478
      %510 = vmatprep.subr.bf16.mxu0 0
      %511 = vmatpush2.bf16.msra.mxu0 0
      %512 = vmatprep.subr.bf16.mxu0 0
      %513 = vmatpush2.bf16.msra.mxu0 0
      %514 = vmatprep.subr.bf16.mxu0 0
      %515 = vmatpush2.bf16.msra.mxu0 0
      %516 = vmatprep.subr.bf16.mxu0 0
      %517 = vmatpush2.bf16.msra.mxu0 0
      %518 = vmatprep.subr.bf16.mxu0 0
      %519 = vmatpush2.bf16.msra.mxu0 0
      %520 = vmatprep.subr.bf16.mxu0 0
      %521 = vmatpush2.bf16.msra.mxu0 0
      %522 = vmatprep.subr.bf16.mxu0 0
      %523 = vmatpush2.bf16.msra.mxu0 0
      %524 = vmatprep.subr.bf16.mxu0 0
      %525 = vmatpush2.bf16.msra.mxu0 0
      %526 = vmatprep.mubr.bf16.mxu0 0
      %527 = vmatmul.mubr.bf16.gmra.mxu0 %v414
      %v528 = vpop.f32.mrf.mxu0
      %v529 = vadd.f32 0.0, %v528
      %v530 = vpop.f32.mrf.mxu0
      %v531 = vpop.f32.mrf.mxu0
      %v532 = vadd.f32 0.0, %v531
      %v533 = vpop.f32.mrf.mxu0
      %534 = vmatprep.mubr.bf16.mxu0 0
      %535 = vmatmul.mubr.bf16.gmra.mxu0 %v415
      %v536 = vpop.f32.mrf.mxu0
      %v537 = vadd.f32 0.0, %v536
      %v538 = vpop.f32.mrf.mxu0
      %v539 = vpop.f32.mrf.mxu0
      %v540 = vadd.f32 0.0, %v539
      %v541 = vpop.f32.mrf.mxu0
      %542 = vmatprep.mubr.bf16.mxu0 0
      %543 = vmatmul.mubr.bf16.gmra.mxu0 %v416
      %v544 = vpop.f32.mrf.mxu0
      %v545 = vadd.f32 0.0, %v544
      %v546 = vpop.f32.mrf.mxu0
      %v547 = vpop.f32.mrf.mxu0
      %v548 = vadd.f32 0.0, %v547
      %v549 = vpop.f32.mrf.mxu0
      %550 = vmatprep.mubr.bf16.mxu0 0
      %551 = vmatmul.mubr.bf16.gmra.mxu0 %v417
      %v552 = vpop.f32.mrf.mxu0
      %v553 = vadd.f32 0.0, %v552
      %v554 = vpop.f32.mrf.mxu0
      %v555 = vpop.f32.mrf.mxu0
      %v556 = vadd.f32 0.0, %v555
      %v557 = vpop.f32.mrf.mxu0
      %558 = vmatprep.mubr.bf16.mxu0 0
      %559 = vmatmul.mubr.bf16.gmra.mxu0 %v418
      %v560 = vpop.f32.mrf.mxu0
      %v561 = vadd.f32 0.0, %v560
      %v562 = vpop.f32.mrf.mxu0
      %v563 = vpop.f32.mrf.mxu0
      %v564 = vadd.f32 0.0, %v563
      %v565 = vpop.f32.mrf.mxu0
      %566 = vmatprep.mubr.bf16.mxu0 0
      %567 = vmatmul.mubr.bf16.gmra.mxu0 %v419
      %v568 = vpop.f32.mrf.mxu0
      %v569 = vadd.f32 0.0, %v568
      %v570 = vpop.f32.mrf.mxu0
      %v571 = vpop.f32.mrf.mxu0
      %v572 = vadd.f32 0.0, %v571
      %v573 = vpop.f32.mrf.mxu0
      %574 = vmatprep.mubr.bf16.mxu0 0
      %575 = vmatmul.mubr.bf16.gmra.mxu0 %v420
      %v576 = vpop.f32.mrf.mxu0
      %v577 = vadd.f32 0.0, %v576
      %v578 = vpop.f32.mrf.mxu0
      %v579 = vpop.f32.mrf.mxu0
      %v580 = vadd.f32 0.0, %v579
      %v581 = vpop.f32.mrf.mxu0
      %582 = vmatprep.mubr.bf16.mxu0 0
      %583 = vmatmul.mubr.bf16.gmra.mxu0 %v421
      %v584 = vpop.f32.mrf.mxu0
      %v585 = vadd.f32 0.0, %v584
      %v586 = vpop.f32.mrf.mxu0
      %v587 = vpop.f32.mrf.mxu0
      %v588 = vadd.f32 0.0, %v587
      %v589 = vpop.f32.mrf.mxu0
      %590 = vmatprep.mubr.bf16.mxu0 0
      %591 = vmatmul.mubr.bf16.gmra.mxu0 %v422
      %v592 = vpop.f32.mrf.mxu0
      %v593 = vadd.f32 0.0, %v592
      %v594 = vpop.f32.mrf.mxu0
      %v595 = vpop.f32.mrf.mxu0
      %v596 = vadd.f32 0.0, %v595
      %v597 = vpop.f32.mrf.mxu0
      %598 = vmatprep.mubr.bf16.mxu0 0
      %599 = vmatmul.mubr.bf16.gmra.mxu0 %v423
      %v600 = vpop.f32.mrf.mxu0
      %v601 = vadd.f32 0.0, %v600
      %v602 = vpop.f32.mrf.mxu0
      %v603 = vpop.f32.mrf.mxu0
      %v604 = vadd.f32 0.0, %v603
      %v605 = vpop.f32.mrf.mxu0
      %606 = vmatprep.mubr.bf16.mxu0 0
      %607 = vmatmul.mubr.bf16.gmra.mxu0 %v424
      %v608 = vpop.f32.mrf.mxu0
      %v609 = vadd.f32 0.0, %v608
      %v610 = vpop.f32.mrf.mxu0
      %v611 = vpop.f32.mrf.mxu0
      %v612 = vadd.f32 0.0, %v611
      %v613 = vpop.f32.mrf.mxu0
      %614 = vmatprep.mubr.bf16.mxu0 0
      %615 = vmatmul.mubr.bf16.gmra.mxu0 %v425
      %v616 = vpop.f32.mrf.mxu0
      %v617 = vadd.f32 0.0, %v616
      %v618 = vpop.f32.mrf.mxu0
      %v619 = vpop.f32.mrf.mxu0
      %v620 = vadd.f32 0.0, %v619
      %v621 = vpop.f32.mrf.mxu0
      %622 = vmatprep.mubr.bf16.mxu0 0
      %623 = vmatmul.mubr.bf16.gmra.mxu0 %v426
      %v624 = vpop.f32.mrf.mxu0
      %v625 = vadd.f32 0.0, %v624
      %v626 = vpop.f32.mrf.mxu0
      %v627 = vpop.f32.mrf.mxu0
      %v628 = vadd.f32 0.0, %v627
      %v629 = vpop.f32.mrf.mxu0
      %630 = vmatprep.mubr.bf16.mxu0 0
      %631 = vmatmul.mubr.bf16.gmra.mxu0 %v427
      %v632 = vpop.f32.mrf.mxu0
      %v633 = vadd.f32 0.0, %v632
      %v634 = vpop.f32.mrf.mxu0
      %v635 = vpop.f32.mrf.mxu0
      %v636 = vadd.f32 0.0, %v635
      %v637 = vpop.f32.mrf.mxu0
      %638 = vmatprep.mubr.bf16.mxu0 0
      %639 = vmatmul.mubr.bf16.gmra.mxu0 %v428
      %v640 = vpop.f32.mrf.mxu0
      %v641 = vadd.f32 0.0, %v640
      %v642 = vpop.f32.mrf.mxu0
      %v643 = vpop.f32.mrf.mxu0
      %v644 = vadd.f32 0.0, %v643
      %v645 = vpop.f32.mrf.mxu0
      %646 = vmatprep.mubr.bf16.mxu0 0
      %647 = vmatmul.mubr.bf16.gmra.mxu0 %v429
      %v648 = vpop.f32.mrf.mxu0
      %v649 = vadd.f32 0.0, %v648
      %v650 = vpop.f32.mrf.mxu0
      %v651 = vpop.f32.mrf.mxu0
      %v652 = vadd.f32 0.0, %v651
      %v653 = vpop.f32.mrf.mxu0
      %654 = vdwg.mxu0
      %v655 = vpack.c.bf16 %v532, %v529
      %v656 = vpack.c.bf16 %v540, %v537
      %v657 = vpack.c.bf16 %v548, %v545
      %v658 = vpack.c.bf16 %v556, %v553
      %v659 = vpack.c.bf16 %v564, %v561
      %v660 = vpack.c.bf16 %v572, %v569
      %v661 = vpack.c.bf16 %v580, %v577
      %v662 = vpack.c.bf16 %v588, %v585
      %v663 = vpack.c.bf16 %v596, %v593
      %v664 = vpack.c.bf16 %v604, %v601
      %v665 = vpack.c.bf16 %v612, %v609
      %v666 = vpack.c.bf16 %v620, %v617
      %v667 = vpack.c.bf16 %v628, %v625
      %v668 = vpack.c.bf16 %v636, %v633
      %v669 = vpack.c.bf16 %v644, %v641
      %v670 = vpack.c.bf16 %v652, %v649
      %v687 = vunpack.c.l.b16 %v655
      %v688 = vunpack.c.h.b16 %v655
      %v689 = vunpack.c.l.b16 %v656
      %v690 = vunpack.c.h.b16 %v656
      %v691 = vunpack.c.l.b16 %v657
      %v692 = vunpack.c.h.b16 %v657
      %v693 = vunpack.c.l.b16 %v658
      %v694 = vunpack.c.h.b16 %v658
      %v695 = vunpack.c.l.b16 %v659
      %v696 = vunpack.c.h.b16 %v659
      %v697 = vunpack.c.l.b16 %v660
      %v698 = vunpack.c.h.b16 %v660
      %v699 = vunpack.c.l.b16 %v661
      %v700 = vunpack.c.h.b16 %v661
      %v701 = vunpack.c.l.b16 %v662
      %v702 = vunpack.c.h.b16 %v662
      %v703 = vunpack.c.l.b16 %v663
      %v704 = vunpack.c.h.b16 %v663
      %v705 = vunpack.c.l.b16 %v664
      %v706 = vunpack.c.h.b16 %v664
      %v707 = vunpack.c.l.b16 %v665
      %v708 = vunpack.c.h.b16 %v665
      %v709 = vunpack.c.l.b16 %v666
      %v710 = vunpack.c.h.b16 %v666
      %v711 = vunpack.c.l.b16 %v667
      %v712 = vunpack.c.h.b16 %v667
      %v713 = vunpack.c.l.b16 %v668
      %v714 = vunpack.c.h.b16 %v668
      %v715 = vunpack.c.l.b16 %v669
      %v716 = vunpack.c.h.b16 %v669
      %v717 = vunpack.c.l.b16 %v670
      %v718 = vunpack.c.h.b16 %v670
      %v719 = vpack.c.b16 %v687, %v687
      %v720 = vpack.c.b16 %v688, %v688
      %v721 = vpack.c.b16 %v689, %v689
      %v722 = vpack.c.b16 %v690, %v690
      %v723 = vpack.c.b16 %v691, %v691
      %v724 = vpack.c.b16 %v692, %v692
      %v725 = vpack.c.b16 %v693, %v693
      %v726 = vpack.c.b16 %v694, %v694
      %v727 = vpack.c.b16 %v695, %v695
      %v728 = vpack.c.b16 %v696, %v696
      %v729 = vpack.c.b16 %v697, %v697
      %v730 = vpack.c.b16 %v698, %v698
      %v731 = vpack.c.b16 %v699, %v699
      %v732 = vpack.c.b16 %v700, %v700
      %v733 = vpack.c.b16 %v701, %v701
      %v734 = vpack.c.b16 %v702, %v702
      %v735 = vpack.c.b16 %v703, %v703
      %v736 = vpack.c.b16 %v704, %v704
      %v737 = vpack.c.b16 %v705, %v705
      %v738 = vpack.c.b16 %v706, %v706
      %v739 = vpack.c.b16 %v707, %v707
      %v740 = vpack.c.b16 %v708, %v708
      %v741 = vpack.c.b16 %v709, %v709
      %v742 = vpack.c.b16 %v710, %v710
      %v743 = vpack.c.b16 %v711, %v711
      %v744 = vpack.c.b16 %v712, %v712
      %v745 = vpack.c.b16 %v713, %v713
      %v746 = vpack.c.b16 %v714, %v714
      %v747 = vpack.c.b16 %v715, %v715
      %v748 = vpack.c.b16 %v716, %v716
      %v749 = vpack.c.b16 %v717, %v717
      %v750 = vpack.c.b16 %v718, %v718
      %783 = vst [vmem:[%s233] sm:$0xf] %v719
      %784 = vst [vmem:[%s233 + $0x4] sm:$0xf] %v720
      %785 = vst [vmem:[%s233 + $0x8] sm:$0xf] %v721
      %786 = vst [vmem:[%s233 + $0xc] sm:$0xf] %v722
      %787 = vst [vmem:[%s233 + $0x10] sm:$0xf] %v723
      %788 = vst [vmem:[%s233 + $0x14] sm:$0xf] %v724
      %789 = vst [vmem:[%s233 + $0x18] sm:$0xf] %v725
      %790 = vst [vmem:[%s233 + $0x1c] sm:$0xf] %v726
      %791 = vst [vmem:[%s233 + $0x20] sm:$0xf] %v727
      %792 = vst [vmem:[%s233 + $0x24] sm:$0xf] %v728
      %793 = vst [vmem:[%s233 + $0x28] sm:$0xf] %v729
      %794 = vst [vmem:[%s233 + $0x2c] sm:$0xf] %v730
      %795 = vst [vmem:[%s233 + $0x30] sm:$0xf] %v731
      %796 = vst [vmem:[%s233 + $0x34] sm:$0xf] %v732
      %797 = vst [vmem:[%s233 + $0x38] sm:$0xf] %v733
      %798 = vst [vmem:[%s233 + $0x3c] sm:$0xf] %v734
      %799 = vst [vmem:[%s233 + $0x40] sm:$0xf] %v735
      %800 = vst [vmem:[%s233 + $0x44] sm:$0xf] %v736
      %801 = vst [vmem:[%s233 + $0x48] sm:$0xf] %v737
      %802 = vst [vmem:[%s233 + $0x4c] sm:$0xf] %v738
      %803 = vst [vmem:[%s233 + $0x50] sm:$0xf] %v739
      %804 = vst [vmem:[%s233 + $0x54] sm:$0xf] %v740
      %805 = vst [vmem:[%s233 + $0x58] sm:$0xf] %v741
      %806 = vst [vmem:[%s233 + $0x5c] sm:$0xf] %v742
      %807 = vst [vmem:[%s233 + $0x60] sm:$0xf] %v743
      %808 = vst [vmem:[%s233 + $0x64] sm:$0xf] %v744
      %809 = vst [vmem:[%s233 + $0x68] sm:$0xf] %v745
      %810 = vst [vmem:[%s233 + $0x6c] sm:$0xf] %v746
      %811 = vst [vmem:[%s233 + $0x70] sm:$0xf] %v747
      %812 = vst [vmem:[%s233 + $0x74] sm:$0xf] %v748
      %813 = vst [vmem:[%s233 + $0x78] sm:$0xf] %v749
      %814 = vst [vmem:[%s233 + $0x7c] sm:$0xf] %v750
      %v815 = vadd.f32 %v529, %v532
      %v816 = vadd.f32 %v815, %v537
      %v817 = vadd.f32 %v816, %v540
      %v818 = vadd.f32 %v817, %v545
      %v819 = vadd.f32 %v818, %v548
      %v820 = vadd.f32 %v819, %v553
      %v821 = vadd.f32 %v820, %v556
      %v822 = vadd.f32 %v821, %v561
      %v823 = vadd.f32 %v822, %v564
      %v824 = vadd.f32 %v823, %v569
      %v825 = vadd.f32 %v824, %v572
      %v826 = vadd.f32 %v825, %v577
      %v827 = vadd.f32 %v826, %v580
      %v828 = vadd.f32 %v827, %v585
      %v829 = vadd.f32 %v828, %v588
      %v830 = vadd.f32 %v829, %v593
      %v831 = vadd.f32 %v830, %v596
      %v832 = vadd.f32 %v831, %v601
      %v833 = vadd.f32 %v832, %v604
      %v834 = vadd.f32 %v833, %v609
      %v835 = vadd.f32 %v834, %v612
      %v836 = vadd.f32 %v835, %v617
      %v837 = vadd.f32 %v836, %v620
      %v838 = vadd.f32 %v837, %v625
      %v839 = vadd.f32 %v838, %v628
      %v840 = vadd.f32 %v839, %v633
      %v841 = vadd.f32 %v840, %v636
      %v842 = vadd.f32 %v841, %v641
      %v843 = vadd.f32 %v842, %v644
      %v844 = vadd.f32 %v843, %v649
      %v845 = vadd.f32 %v844, %v652
      %v846 = vrot.slane %v845, 4
      %v847 = vadd.f32 %v845, %v846
      %v848 = vrot.slane %v847, 2
      %v849 = vadd.f32 %v847, %v848
      %v850 = vrot.slane %v849, 1
      %v851 = vadd.f32 %v849, %v850
      %v852 = vmul.f32 %v529, %v529
      %v853 = vmul.f32 %v532, %v532
      %v854 = vmul.f32 %v537, %v537
      %v855 = vmul.f32 %v540, %v540
      %v856 = vmul.f32 %v545, %v545
      %v857 = vmul.f32 %v548, %v548
      %v858 = vmul.f32 %v553, %v553
      %v859 = vmul.f32 %v556, %v556
      %v860 = vmul.f32 %v561, %v561
      %v861 = vmul.f32 %v564, %v564
      %v862 = vmul.f32 %v569, %v569
      %v863 = vmul.f32 %v572, %v572
      %v864 = vmul.f32 %v577, %v577
      %v865 = vmul.f32 %v580, %v580
      %v866 = vmul.f32 %v585, %v585
      %v867 = vmul.f32 %v588, %v588
      %v868 = vmul.f32 %v593, %v593
      %v869 = vmul.f32 %v596, %v596
      %v870 = vmul.f32 %v601, %v601
      %v871 = vmul.f32 %v604, %v604
      %v872 = vmul.f32 %v609, %v609
      %v873 = vmul.f32 %v612, %v612
      %v874 = vmul.f32 %v617, %v617
      %v875 = vmul.f32 %v620, %v620
      %v876 = vmul.f32 %v625, %v625
      %v877 = vmul.f32 %v628, %v628
      %v878 = vmul.f32 %v633, %v633
      %v879 = vmul.f32 %v636, %v636
      %v880 = vmul.f32 %v641, %v641
      %v881 = vmul.f32 %v644, %v644
      %v882 = vmul.f32 %v649, %v649
      %v883 = vmul.f32 %v652, %v652
      %v884 = vadd.f32 %v852, %v853
      %v885 = vadd.f32 %v884, %v854
      %v886 = vadd.f32 %v885, %v855
      %v887 = vadd.f32 %v886, %v856
      %v888 = vadd.f32 %v887, %v857
      %v889 = vadd.f32 %v888, %v858
      %v890 = vadd.f32 %v889, %v859
      %v891 = vadd.f32 %v890, %v860
      %v892 = vadd.f32 %v891, %v861
      %v893 = vadd.f32 %v892, %v862
      %v894 = vadd.f32 %v893, %v863
      %v895 = vadd.f32 %v894, %v864
      %v896 = vadd.f32 %v895, %v865
      %v897 = vadd.f32 %v896, %v866
      %v898 = vadd.f32 %v897, %v867
      %v899 = vadd.f32 %v898, %v868
      %v900 = vadd.f32 %v899, %v869
      %v901 = vadd.f32 %v900, %v870
      %v902 = vadd.f32 %v901, %v871
      %v903 = vadd.f32 %v902, %v872
      %v904 = vadd.f32 %v903, %v873
      %v905 = vadd.f32 %v904, %v874
      %v906 = vadd.f32 %v905, %v875
      %v907 = vadd.f32 %v906, %v876
      %v908 = vadd.f32 %v907, %v877
      %v909 = vadd.f32 %v908, %v878
      %v910 = vadd.f32 %v909, %v879
      %v911 = vadd.f32 %v910, %v880
      %v912 = vadd.f32 %v911, %v881
      %v913 = vadd.f32 %v912, %v882
      %v914 = vadd.f32 %v913, %v883
      %v915 = vrot.slane %v914, 4
      %v916 = vadd.f32 %v914, %v915
      %v917 = vrot.slane %v916, 2
      %v918 = vadd.f32 %v916, %v917
      %v919 = vrot.slane %v918, 1
      %v920 = vadd.f32 %v918, %v919
      %vm921 = vcmask 1040384
      %v922 = vsel %vm921, %v851, %v920
      %923 = vst [vmem:[%s238] sm:$0x3] %v922
      %s924 = smul.u32 32, %s17
      %p925 = scmp.lt.s32.totalorder %s924, 63
      %s926 = scalar_select %p925, %s924, 63
      %s927 = smul.addr %s926, 4
      %s928 = scalar_lea.vmem %s4, %s927
      %p929 = scmp.lt.s32.totalorder %s17, 1
      %s930 = scalar_select %p929, %s17, 1
      %s931 = smul.addr %s930, 2
      %s932 = scalar_lea.vmem %s5, %s931
      // Predicated region
      $region37: #{_bottleneck_jit.6} parent=35 // pred_check
        %p933 = pneg %p124
      $region38: #{_bottleneck_jit.6} parent=35 // pred_check_branch
        %935 = sbr.rel (%p933) target = $region40
      $region39: #{_bottleneck_jit.6} parent=35 // pred_region
        %s936 = smul.u32 32, %s17
      $region40: #{_bottleneck_jit.6} parent=35 // pred_fallthru
        _
      // Predicated region
      $region41: #{_bottleneck_jit.6} parent=35 // pred_check
        %p937 = pneg %p150
      $region42: #{_bottleneck_jit.6} parent=35 // pred_check_branch
        %939 = sbr.rel (%p937) target = $region44
      $region43: #{_bottleneck_jit.6} parent=35 // pred_region
        _
      $region44: #{_bottleneck_jit.6} parent=35 // pred_fallthru
        _
    $region36: #{_bottleneck_jit.6} parent=5 // pred_fallthru
      _
    %p940 = scmp.le.s32.totalorder 2, %s12
    // Predicated region
    $region45: #{_bottleneck_jit.6} parent=5 // pred_check
      %p941 = pneg %p940
    $region46: #{_bottleneck_jit.6} parent=5 // pred_check_branch
      %943 = sbr.rel (%p941) target = $region48
    $region47: #{_bottleneck_jit.6} parent=5 // pred_region
      %s944 = ssub.s32 %s12, 2
      // Predicated region
      $region49: #{_bottleneck_jit.6} parent=47 // pred_check
        %p945 = pneg %p130
      $region50: #{_bottleneck_jit.6} parent=47 // pred_check_branch
        %947 = sbr.rel (%p945) target = $region52
      $region51: #{_bottleneck_jit.6} parent=47 // pred_region
        %s948 = smul.u32 32, %s18
        %p949 = scmp.lt.s32.totalorder %s948, 63
        %s950 = scalar_select %p949, %s948, 63
        %s951 = smul.addr %s950, 4
        %s952 = scalar_lea.vmem %s4, %s951
      $region52: #{_bottleneck_jit.6} parent=47 // pred_fallthru
        _
      // Predicated region
      $region53: #{_bottleneck_jit.6} parent=47 // pred_check
        %p953 = pneg %p156
      $region54: #{_bottleneck_jit.6} parent=47 // pred_check_branch
        %955 = sbr.rel (%p953) target = $region56
      $region55: #{_bottleneck_jit.6} parent=47 // pred_region
        %p956 = scmp.lt.s32.totalorder %s18, 1
        %s957 = scalar_select %p956, %s18, 1
        %s958 = smul.addr %s957, 2
        %s959 = scalar_lea.vmem %s5, %s958
      $region56: #{_bottleneck_jit.6} parent=47 // pred_fallthru
        _
    $region48: #{_bottleneck_jit.6} parent=5 // pred_fallthru
      _
  $region6: #{_bottleneck_jit.6} parent=0 // loop_footer
    %s16 = sadd.s32 1, %s12
  $region7: #{_bottleneck_jit.6} parent=0 // loop_footer_branch
    %11 = sbr.rel target = $region3
  $region8: #{_bottleneck_jit.6} parent=0 // loop_exit
    _

// kernel: _bottleneck_jit.5
$region0: #{_bottleneck_jit.5}
  #allocation0 [shape = 'u32[]', space=smem, size = 0x4, offset = 0x4, fixed_abs, tag = 'smem constant byte address 0x4 - core index']
  #allocation1 [shape = 'u32[144,128]{1,0:T(1,128)}', space=vmem, size = 0x12000, scoped, tag = 'internal scratch']
  %s0 = inlined_call_operand.vmem [shape: bf16[2,256,128], index: 0, kind: input, shape index: {}]
  %s1 = inlined_call_operand.vmem [shape: f32[1,128], index: 1, kind: input, shape index: {}]
  %s2 = inlined_call_operand.vmem [shape: f32[1,128], index: 2, kind: input, shape index: {}]
  %s3 = inlined_call_operand.vmem [shape: bf16[3,384,128], index: 3, kind: input, shape index: {}]
  %s4 = inlined_call_operand.vmem [shape: bf16[2,256,128], index: 4, kind: output, shape index: {0}]
  %s5 = inlined_call_operand.vmem [shape: f32[2,2,128], index: 5, kind: output, shape index: {1}]
  %6 = xla_tuple %s4, %s5
  %s7 = sld [smem:[#allocation0]]
  $region57: #{_bottleneck_jit.5} parent=0
    _
  %s9 = ssub.s32 1, %s7
  %s10 = scalar_select 0, %s9, %s7
  loop: start=0, step=1, limit=4
  $region2: #{_bottleneck_jit.5} parent=0 // loop_pre_header
    _
  $region3: #{_bottleneck_jit.5} parent=0 // loop_header
    %s12 = sphi 0, %s16
    %p13 = scmp.ge.s32.totalorder %s12, 4
    %s22 = sphi 0, %s24
    %s25 = sphi 0, %s22
    %s26 = sphi 0, %s25
    %s42 = sphi 0, %s26
    %s46 = sphi 0, %s46
    %s48 = sphi 0, %s46
    %s49 = sphi 0, %s48
    %s63 = sphi 0, %s49
    %s67 = sphi 0, %s67
    %s69 = sphi 0, %s67
    %s70 = sphi 0, %s69
    %s84 = sphi 0, %s70
    %s88 = sphi 0, %s88
    %s90 = sphi 0, %s88
    %s91 = sphi 0, %s90
    %s105 = sphi 0, %s91
    %s111 = sphi 0, %s113
    %s114 = sphi 0, %s111
    %s115 = sphi 0, %s114
    %s131 = sphi 0, %s115
    %s137 = sphi 0, %s139
    %s140 = sphi 0, %s137
    %s141 = sphi 0, %s140
    %s157 = sphi 0, %s141
  $region4: #{_bottleneck_jit.5} parent=0 // loop_header_branch
    %15 = sbr.rel (%p13) target = $region8
  $region5: #{_bottleneck_jit.5} parent=0 // loop_body
    %s17 = ssub.s32 %s12, 1
    %s18 = ssub.s32 %s12, 2
    %s19 = sadd.s32 %s12, 1
    %s20 = ssub.s32 %s12, %s19
    %p21 = scmp.eq.s32.totalorder %s20, 0
    %s23 = sadd.s32 %s22, 1
    %s24 = scalar_select %p21, %s22, %s23
    %p27 = pneg %p21
    %p28 = scmp.eq.s32.totalorder %s12, 1
    %p29 = por %p27, %p28
    %p30 = scmp.ne.s32.totalorder %s22, %s25
    %p31 = scmp.eq.s32.totalorder %s12, 0
    %p32 = por %p30, %p31
    %p33 = scmp.ne.s32.totalorder %s22, %s25
    %p34 = scmp.eq.s32.totalorder %s17, 1
    %p35 = por %p33, %p34
    %p36 = scmp.ne.s32.totalorder %s25, %s26
    %p37 = scmp.eq.s32.totalorder %s17, 0
    %p38 = por %p36, %p37
    %p39 = scmp.ne.s32.totalorder %s25, %s26
    %p40 = scmp.eq.s32.totalorder %s18, 1
    %p41 = por %p39, %p40
    %p43 = scmp.ne.s32.totalorder %s26, %s42
    %p44 = scmp.eq.s32.totalorder %s18, 0
    %p45 = por %p43, %p44
    %s47 = sadd.s32 %s46, 1
    %p50 = scmp.eq.s32.totalorder %s12, 1
    %p51 = scmp.ne.s32.totalorder %s46, %s48
    %p52 = scmp.eq.s32.totalorder %s12, 0
    %p53 = por %p51, %p52
    %p54 = scmp.ne.s32.totalorder %s46, %s48
    %p55 = scmp.eq.s32.totalorder %s17, 1
    %p56 = por %p54, %p55
    %p57 = scmp.ne.s32.totalorder %s48, %s49
    %p58 = scmp.eq.s32.totalorder %s17, 0
    %p59 = por %p57, %p58
    %p60 = scmp.ne.s32.totalorder %s48, %s49
    %p61 = scmp.eq.s32.totalorder %s18, 1
    %p62 = por %p60, %p61
    %p64 = scmp.ne.s32.totalorder %s49, %s63
    %p65 = scmp.eq.s32.totalorder %s18, 0
    %p66 = por %p64, %p65
    %s68 = sadd.s32 %s67, 1
    %p71 = scmp.eq.s32.totalorder %s12, 1
    %p72 = scmp.ne.s32.totalorder %s67, %s69
    %p73 = scmp.eq.s32.totalorder %s12, 0
    %p74 = por %p72, %p73
    %p75 = scmp.ne.s32.totalorder %s67, %s69
    %p76 = scmp.eq.s32.totalorder %s17, 1
    %p77 = por %p75, %p76
    %p78 = scmp.ne.s32.totalorder %s69, %s70
    %p79 = scmp.eq.s32.totalorder %s17, 0
    %p80 = por %p78, %p79
    %p81 = scmp.ne.s32.totalorder %s69, %s70
    %p82 = scmp.eq.s32.totalorder %s18, 1
    %p83 = por %p81, %p82
    %p85 = scmp.ne.s32.totalorder %s70, %s84
    %p86 = scmp.eq.s32.totalorder %s18, 0
    %p87 = por %p85, %p86
    %s89 = sadd.s32 %s88, 1
    %p92 = scmp.eq.s32.totalorder %s12, 1
    %p93 = scmp.ne.s32.totalorder %s88, %s90
    %p94 = scmp.eq.s32.totalorder %s12, 0
    %p95 = por %p93, %p94
    %p96 = scmp.ne.s32.totalorder %s88, %s90
    %p97 = scmp.eq.s32.totalorder %s17, 1
    %p98 = por %p96, %p97
    %p99 = scmp.ne.s32.totalorder %s90, %s91
    %p100 = scmp.eq.s32.totalorder %s17, 0
    %p101 = por %p99, %p100
    %p102 = scmp.ne.s32.totalorder %s90, %s91
    %p103 = scmp.eq.s32.totalorder %s18, 1
    %p104 = por %p102, %p103
    %p106 = scmp.ne.s32.totalorder %s91, %s105
    %p107 = scmp.eq.s32.totalorder %s18, 0
    %p108 = por %p106, %p107
    %s109 = ssub.s32 %s12, %s19
    %p110 = scmp.eq.s32.totalorder %s109, 0
    %s112 = sadd.s32 %s111, 1
    %s113 = scalar_select %p110, %s111, %s112
    %p116 = pneg %p110
    %p117 = scmp.eq.s32.totalorder %s12, 1
    %p118 = por %p116, %p117
    %p119 = scmp.ne.s32.totalorder %s111, %s114
    %p120 = scmp.eq.s32.totalorder %s12, 0
    %p121 = por %p119, %p120
    %p122 = scmp.ne.s32.totalorder %s111, %s114
    %p123 = scmp.eq.s32.totalorder %s17, 1
    %p124 = por %p122, %p123
    %p125 = scmp.ne.s32.totalorder %s114, %s115
    %p126 = scmp.eq.s32.totalorder %s17, 0
    %p127 = por %p125, %p126
    %p128 = scmp.ne.s32.totalorder %s114, %s115
    %p129 = scmp.eq.s32.totalorder %s18, 1
    %p130 = por %p128, %p129
    %p132 = scmp.ne.s32.totalorder %s115, %s131
    %p133 = scmp.eq.s32.totalorder %s18, 0
    %p134 = por %p132, %p133
    %s135 = ssub.s32 %s12, %s19
    %p136 = scmp.eq.s32.totalorder %s135, 0
    %s138 = sadd.s32 %s137, 1
    %s139 = scalar_select %p136, %s137, %s138
    %p142 = pneg %p136
    %p143 = scmp.eq.s32.totalorder %s12, 1
    %p144 = por %p142, %p143
    %p145 = scmp.ne.s32.totalorder %s137, %s140
    %p146 = scmp.eq.s32.totalorder %s12, 0
    %p147 = por %p145, %p146
    %p148 = scmp.ne.s32.totalorder %s137, %s140
    %p149 = scmp.eq.s32.totalorder %s17, 1
    %p150 = por %p148, %p149
    %p151 = scmp.ne.s32.totalorder %s140, %s141
    %p152 = scmp.eq.s32.totalorder %s17, 0
    %p153 = por %p151, %p152
    %p154 = scmp.ne.s32.totalorder %s140, %s141
    %p155 = scmp.eq.s32.totalorder %s18, 1
    %p156 = por %p154, %p155
    %p158 = scmp.ne.s32.totalorder %s141, %s157
    %p159 = scmp.eq.s32.totalorder %s18, 0
    %p160 = por %p158, %p159
    %p161 = scmp.le.s32.totalorder 1, %s12
    %p162 = scmp.lt.s32.totalorder %s12, 3
    %p163 = pnand %p161, %p162
    %p164 = pneg %p163
    // Predicated region
    $region9: #{_bottleneck_jit.5} parent=5 // pred_check
      _
    $region10: #{_bottleneck_jit.5} parent=5 // pred_check_branch
      %166 = sbr.rel (%p163) target = $region12
    $region11: #{_bottleneck_jit.5} parent=5 // pred_region
      %s167 = ssub.s32 %s12, 1
      // Predicated region
      $region13: #{_bottleneck_jit.5} parent=11 // pred_check
        %p168 = pneg %p59
      $region14: #{_bottleneck_jit.5} parent=11 // pred_check_branch
        %170 = sbr.rel (%p168) target = $region16
      $region15: #{_bottleneck_jit.5} parent=11 // pred_region
        _
      $region16: #{_bottleneck_jit.5} parent=11 // pred_fallthru
        _
      // Predicated region
      $region17: #{_bottleneck_jit.5} parent=11 // pred_check
        %p171 = pneg %p80
      $region18: #{_bottleneck_jit.5} parent=11 // pred_check_branch
        %173 = sbr.rel (%p171) target = $region20
      $region19: #{_bottleneck_jit.5} parent=11 // pred_region
        _
      $region20: #{_bottleneck_jit.5} parent=11 // pred_fallthru
        _
      // Predicated region
      $region21: #{_bottleneck_jit.5} parent=11 // pred_check
        %p174 = pneg %p101
      $region22: #{_bottleneck_jit.5} parent=11 // pred_check_branch
        %176 = sbr.rel (%p174) target = $region24
      $region23: #{_bottleneck_jit.5} parent=11 // pred_region
        _
      $region24: #{_bottleneck_jit.5} parent=11 // pred_fallthru
        _
    $region12: #{_bottleneck_jit.5} parent=5 // pred_fallthru
      _
    %p177 = scmp.lt.s32.totalorder %s12, 2
    // Predicated region
    $region25: #{_bottleneck_jit.5} parent=5 // pred_check
      %p178 = pneg %p177
    $region26: #{_bottleneck_jit.5} parent=5 // pred_check_branch
      %180 = sbr.rel (%p178) target = $region28
    $region27: #{_bottleneck_jit.5} parent=5 // pred_region
      // Predicated region
      $region29: #{_bottleneck_jit.5} parent=27 // pred_check
        %p181 = pneg %p32
      $region30: #{_bottleneck_jit.5} parent=27 // pred_check_branch
        %183 = sbr.rel (%p181) target = $region32
      $region31: #{_bottleneck_jit.5} parent=27 // pred_region
        %p184 = scmp.lt.s32.totalorder %s12, 1
        %s185 = scalar_select %p184, %s12, 1
        %s186 = smul.addr %s185, 32
        %s187 = smul.addr %s186, 4
        %s188 = scalar_lea.vmem %s0, %s187
      $region32: #{_bottleneck_jit.5} parent=27 // pred_fallthru
        _
    $region28: #{_bottleneck_jit.5} parent=5 // pred_fallthru
      _
    %p189 = scmp.le.s32.totalorder 1, %s12
    %p190 = scmp.lt.s32.totalorder %s12, 3
    %p191 = pnand %p189, %p190
    %p192 = pneg %p191
    // Predicated region
    $region33: #{_bottleneck_jit.5} parent=5 // pred_check
      _
    $region34: #{_bottleneck_jit.5} parent=5 // pred_check_branch
      %194 = sbr.rel (%p191) target = $region36
    $region35: #{_bottleneck_jit.5} parent=5 // pred_region
      %s195 = ssub.s32 %s12, 1
      %p196 = scmp.lt.s32.totalorder %s17, 1
      %s197 = scalar_select %p196, %s17, 1
      %s198 = smul.addr %s197, 32
      %s199 = smul.addr %s198, 4
      %s200 = scalar_lea.vmem %s0, %s199
      %p201 = pneg %p38
      %p202 = pneg %p35
      %p203 = pneg %p59
      %p204 = pneg %p56
      %p205 = pneg %p80
      %p206 = pneg %p77
      %p207 = pneg %p101
      %p208 = pneg %p98
      %p209 = pneg %p127
      %p210 = pneg %p124
      %p211 = scmp.lt.s32.totalorder %s17, 1
      %s212 = scalar_select %p211, %s17, 1
      %s213 = smul.addr %s212, 32
      %s214 = smul.addr %s213, 4
      %s215 = scalar_lea.vmem %s4, %s214
      %p216 = pneg %p153
      %p217 = pneg %p150
      %p218 = scmp.lt.s32.totalorder %s17, 1
      %s219 = scalar_select %p218, %s17, 1
      %s220 = smul.addr %s219, 2
      %s221 = scalar_lea.vmem %s5, %s220
      %p222 = scmp.lt.s32.totalorder %s17, 1
      %s223 = scalar_select %p222, %s17, 1
      %s224 = smul.addr %s223, 32
      %s225 = smul.addr %s224, 4
      %s226 = scalar_lea.vmem %s0, %s225
      %p227 = scmp.lt.s32.totalorder %s17, 1
      %s228 = scalar_select %p227, %s17, 1
      %s229 = smul.addr %s228, 32
      %s230 = smul.addr %s229, 4
      %s231 = scalar_lea.vmem %s4, %s230
      %p232 = scmp.lt.s32.totalorder %s17, 1
      %s233 = scalar_select %p232, %s17, 1
      %s234 = smul.addr %s233, 2
      %s235 = scalar_lea.vmem %s5, %s234
      %v239 = vld [vmem:[%s226] sm:$0xf]
      %v240 = vld [vmem:[%s226 + $0x4] sm:$0xf]
      %v241 = vld [vmem:[%s226 + $0x8] sm:$0xf]
      %v242 = vld [vmem:[%s226 + $0xc] sm:$0xf]
      %v243 = vld [vmem:[%s226 + $0x10] sm:$0xf]
      %v244 = vld [vmem:[%s226 + $0x14] sm:$0xf]
      %v245 = vld [vmem:[%s226 + $0x18] sm:$0xf]
      %v246 = vld [vmem:[%s226 + $0x1c] sm:$0xf]
      %v247 = vld [vmem:[%s226 + $0x20] sm:$0xf]
      %v248 = vld [vmem:[%s226 + $0x24] sm:$0xf]
      %v249 = vld [vmem:[%s226 + $0x28] sm:$0xf]
      %v250 = vld [vmem:[%s226 + $0x2c] sm:$0xf]
      %v251 = vld [vmem:[%s226 + $0x30] sm:$0xf]
      %v252 = vld [vmem:[%s226 + $0x34] sm:$0xf]
      %v253 = vld [vmem:[%s226 + $0x38] sm:$0xf]
      %v254 = vld [vmem:[%s226 + $0x3c] sm:$0xf]
      %v255 = vld [vmem:[%s226 + $0x40] sm:$0xf]
      %v256 = vld [vmem:[%s226 + $0x44] sm:$0xf]
      %v257 = vld [vmem:[%s226 + $0x48] sm:$0xf]
      %v258 = vld [vmem:[%s226 + $0x4c] sm:$0xf]
      %v259 = vld [vmem:[%s226 + $0x50] sm:$0xf]
      %v260 = vld [vmem:[%s226 + $0x54] sm:$0xf]
      %v261 = vld [vmem:[%s226 + $0x58] sm:$0xf]
      %v262 = vld [vmem:[%s226 + $0x5c] sm:$0xf]
      %v263 = vld [vmem:[%s226 + $0x60] sm:$0xf]
      %v264 = vld [vmem:[%s226 + $0x64] sm:$0xf]
      %v265 = vld [vmem:[%s226 + $0x68] sm:$0xf]
      %v266 = vld [vmem:[%s226 + $0x6c] sm:$0xf]
      %v267 = vld [vmem:[%s226 + $0x70] sm:$0xf]
      %v268 = vld [vmem:[%s226 + $0x74] sm:$0xf]
      %v269 = vld [vmem:[%s226 + $0x78] sm:$0xf]
      %v270 = vld [vmem:[%s226 + $0x7c] sm:$0xf]
      %v271 = vld [vmem:[%s1] sm:$0x1]
      %v272 = vunpack.c.l.bf16 %v239
      %v273 = vunpack.c.l.bf16 %v240
      %v274 = vunpack.c.l.bf16 %v241
      %v275 = vunpack.c.l.bf16 %v242
      %v276 = vunpack.c.l.bf16 %v243
      %v277 = vunpack.c.l.bf16 %v244
      %v278 = vunpack.c.l.bf16 %v245
      %v279 = vunpack.c.l.bf16 %v246
      %v280 = vunpack.c.l.bf16 %v247
      %v281 = vunpack.c.l.bf16 %v248
      %v282 = vunpack.c.l.bf16 %v249
      %v283 = vunpack.c.l.bf16 %v250
      %v284 = vunpack.c.l.bf16 %v251
      %v285 = vunpack.c.l.bf16 %v252
      %v286 = vunpack.c.l.bf16 %v253
      %v287 = vunpack.c.l.bf16 %v254
      %v288 = vunpack.c.l.bf16 %v255
      %v289 = vunpack.c.l.bf16 %v256
      %v290 = vunpack.c.l.bf16 %v257
      %v291 = vunpack.c.l.bf16 %v258
      %v292 = vunpack.c.l.bf16 %v259
      %v293 = vunpack.c.l.bf16 %v260
      %v294 = vunpack.c.l.bf16 %v261
      %v295 = vunpack.c.l.bf16 %v262
      %v296 = vunpack.c.l.bf16 %v263
      %v297 = vunpack.c.l.bf16 %v264
      %v298 = vunpack.c.l.bf16 %v265
      %v299 = vunpack.c.l.bf16 %v266
      %v300 = vunpack.c.l.bf16 %v267
      %v301 = vunpack.c.l.bf16 %v268
      %v302 = vunpack.c.l.bf16 %v269
      %v303 = vunpack.c.l.bf16 %v270
      %v305 = vlaneseq
      %v306 = vshrl.u32 %v305, 7
      %v307 = vsub.s32 0, %v306
      %v308 = vrot.slane %v271, %v307
      %v310 = vmul.f32 %v272, %v308
      %v311 = vmul.f32 %v273, %v308
      %v312 = vmul.f32 %v274, %v308
      %v313 = vmul.f32 %v275, %v308
      %v314 = vmul.f32 %v276, %v308
      %v315 = vmul.f32 %v277, %v308
      %v316 = vmul.f32 %v278, %v308
      %v317 = vmul.f32 %v279, %v308
      %v318 = vmul.f32 %v280, %v308
      %v319 = vmul.f32 %v281, %v308
      %v320 = vmul.f32 %v282, %v308
      %v321 = vmul.f32 %v283, %v308
      %v322 = vmul.f32 %v284, %v308
      %v323 = vmul.f32 %v285, %v308
      %v324 = vmul.f32 %v286, %v308
      %v325 = vmul.f32 %v287, %v308
      %v326 = vmul.f32 %v288, %v308
      %v327 = vmul.f32 %v289, %v308
      %v328 = vmul.f32 %v290, %v308
      %v329 = vmul.f32 %v291, %v308
      %v330 = vmul.f32 %v292, %v308
      %v331 = vmul.f32 %v293, %v308
      %v332 = vmul.f32 %v294, %v308
      %v333 = vmul.f32 %v295, %v308
      %v334 = vmul.f32 %v296, %v308
      %v335 = vmul.f32 %v297, %v308
      %v336 = vmul.f32 %v298, %v308
      %v337 = vmul.f32 %v299, %v308
      %v338 = vmul.f32 %v300, %v308
      %v339 = vmul.f32 %v301, %v308
      %v340 = vmul.f32 %v302, %v308
      %v341 = vmul.f32 %v303, %v308
      %v342 = vld [vmem:[%s2] sm:$0x1]
      %v344 = vlaneseq
      %v345 = vshrl.u32 %v344, 7
      %v346 = vsub.s32 0, %v345
      %v347 = vrot.slane %v342, %v346
      %v349 = vadd.f32 %v310, %v347
      %v350 = vadd.f32 %v311, %v347
      %v351 = vadd.f32 %v312, %v347
      %v352 = vadd.f32 %v313, %v347
      %v353 = vadd.f32 %v314, %v347
      %v354 = vadd.f32 %v315, %v347
      %v355 = vadd.f32 %v316, %v347
      %v356 = vadd.f32 %v317, %v347
      %v357 = vadd.f32 %v318, %v347
      %v358 = vadd.f32 %v319, %v347
      %v359 = vadd.f32 %v320, %v347
      %v360 = vadd.f32 %v321, %v347
      %v361 = vadd.f32 %v322, %v347
      %v362 = vadd.f32 %v323, %v347
      %v363 = vadd.f32 %v324, %v347
      %v364 = vadd.f32 %v325, %v347
      %v365 = vadd.f32 %v326, %v347
      %v366 = vadd.f32 %v327, %v347
      %v367 = vadd.f32 %v328, %v347
      %v368 = vadd.f32 %v329, %v347
      %v369 = vadd.f32 %v330, %v347
      %v370 = vadd.f32 %v331, %v347
      %v371 = vadd.f32 %v332, %v347
      %v372 = vadd.f32 %v333, %v347
      %v373 = vadd.f32 %v334, %v347
      %v374 = vadd.f32 %v335, %v347
      %v375 = vadd.f32 %v336, %v347
      %v376 = vadd.f32 %v337, %v347
      %v377 = vadd.f32 %v338, %v347
      %v378 = vadd.f32 %v339, %v347
      %v379 = vadd.f32 %v340, %v347
      %v380 = vadd.f32 %v341, %v347
      %v381 = vmax.f32 %v349, 0.0
      %v382 = vmax.f32 %v350, 0.0
      %v383 = vmax.f32 %v351, 0.0
      %v384 = vmax.f32 %v352, 0.0
      %v385 = vmax.f32 %v353, 0.0
      %v386 = vmax.f32 %v354, 0.0
      %v387 = vmax.f32 %v355, 0.0
      %v388 = vmax.f32 %v356, 0.0
      %v389 = vmax.f32 %v357, 0.0
      %v390 = vmax.f32 %v358, 0.0
      %v391 = vmax.f32 %v359, 0.0
      %v392 = vmax.f32 %v360, 0.0
      %v393 = vmax.f32 %v361, 0.0
      %v394 = vmax.f32 %v362, 0.0
      %v395 = vmax.f32 %v363, 0.0
      %v396 = vmax.f32 %v364, 0.0
      %v397 = vmax.f32 %v365, 0.0
      %v398 = vmax.f32 %v366, 0.0
      %v399 = vmax.f32 %v367, 0.0
      %v400 = vmax.f32 %v368, 0.0
      %v401 = vmax.f32 %v369, 0.0
      %v402 = vmax.f32 %v370, 0.0
      %v403 = vmax.f32 %v371, 0.0
      %v404 = vmax.f32 %v372, 0.0
      %v405 = vmax.f32 %v373, 0.0
      %v406 = vmax.f32 %v374, 0.0
      %v407 = vmax.f32 %v375, 0.0
      %v408 = vmax.f32 %v376, 0.0
      %v409 = vmax.f32 %v377, 0.0
      %v410 = vmax.f32 %v378, 0.0
      %v411 = vmax.f32 %v379, 0.0
      %v412 = vmax.f32 %v380, 0.0
      %v413 = vpack.c.bf16 %v382, %v381
      %v414 = vpack.c.bf16 %v384, %v383
      %v415 = vpack.c.bf16 %v386, %v385
      %v416 = vpack.c.bf16 %v388, %v387
      %v417 = vpack.c.bf16 %v390, %v389
      %v418 = vpack.c.bf16 %v392, %v391
      %v419 = vpack.c.bf16 %v394, %v393
      %v420 = vpack.c.bf16 %v396, %v395
      %v421 = vpack.c.bf16 %v398, %v397
      %v422 = vpack.c.bf16 %v400, %v399
      %v423 = vpack.c.bf16 %v402, %v401
      %v424 = vpack.c.bf16 %v404, %v403
      %v425 = vpack.c.bf16 %v406, %v405
      %v426 = vpack.c.bf16 %v408, %v407
      %v427 = vpack.c.bf16 %v410, %v409
      %v428 = vpack.c.bf16 %v412, %v411
      %v429 = vlaneseq
      %v430 = vshrl.u32 %v429, 7
      %v431 = vadd.s32 %v430, 8
      %v432 = vadd.s32 %v430, 16
      %v433 = vadd.s32 %v430, 24
      %v434 = vadd.s32 %v430, 32
      %v435 = vadd.s32 %v430, 40
      %v436 = vadd.s32 %v430, 48
      %v437 = vadd.s32 %v430, 56
      %v438 = vadd.s32 %v430, 64
      %v439 = vadd.s32 %v430, 72
      %v440 = vadd.s32 %v430, 80
      %v441 = vadd.s32 %v430, 88
      %v442 = vadd.s32 %v430, 96
      %v443 = vadd.s32 %v430, 104
      %v444 = vadd.s32 %v430, 112
      %v445 = vadd.s32 %v430, 120
      %v446 = vadd.s32 %v430, 128
      %v447 = vadd.s32 %v430, 136
      %v448 = vadd.s32 %v430, 144
      %v449 = vadd.s32 %v430, 152
      %v450 = vadd.s32 %v430, 160
      %v451 = vadd.s32 %v430, 168
      %v452 = vadd.s32 %v430, 176
      %v453 = vadd.s32 %v430, 184
      %v454 = vadd.s32 %v430, 192
      %v455 = vadd.s32 %v430, 200
      %v456 = vadd.s32 %v430, 208
      %v457 = vadd.s32 %v430, 216
      %v458 = vadd.s32 %v430, 224
      %v459 = vadd.s32 %v430, 232
      %v460 = vadd.s32 %v430, 240
      %v461 = vadd.s32 %v430, 248
      %vm462 = vcmp.lt.s32.totalorder %v430, 0
      %v463 = vsub.s32 0, %v430
      %v464 = vsel %vm462, %v463, %v430
      %v465 = vshrl.u32 %v464, 4
      %v466 = vand.u32 %v464, 15
      %v467 = vsub.s32 0, %v466
      %v468 = vsel %vm462, %v467, %v466
      %vm469 = vcmp.lt.s32.totalorder %v431, 0
      %v470 = vsub.s32 0, %v431
      %v471 = vsel %vm469, %v470, %v431
      %v472 = vshrl.u32 %v471, 4
      %v473 = vand.u32 %v471, 15
      %v474 = vsub.s32 0, %v473
      %v475 = vsel %vm469, %v474, %v473
      %vm476 = vcmp.lt.s32.totalorder %v432, 0
      %v477 = vsub.s32 0, %v432
      %v478 = vsel %vm476, %v477, %v432
      %v479 = vshrl.u32 %v478, 4
      %v480 = vand.u32 %v478, 15
      %v481 = vsub.s32 0, %v480
      %v482 = vsel %vm476, %v481, %v480
      %vm483 = vcmp.lt.s32.totalorder %v433, 0
      %v484 = vsub.s32 0, %v433
      %v485 = vsel %vm483, %v484, %v433
      %v486 = vshrl.u32 %v485, 4
      %v487 = vand.u32 %v485, 15
      %v488 = vsub.s32 0, %v487
      %v489 = vsel %vm483, %v488, %v487
      %vm490 = vcmp.lt.s32.totalorder %v434, 0
      %v491 = vsub.s32 0, %v434
      %v492 = vsel %vm490, %v491, %v434
      %v493 = vshrl.u32 %v492, 4
      %v494 = vand.u32 %v492, 15
      %v495 = vsub.s32 0, %v494
      %v496 = vsel %vm490, %v495, %v494
      %vm497 = vcmp.lt.s32.totalorder %v435, 0
      %v498 = vsub.s32 0, %v435
      %v499 = vsel %vm497, %v498, %v435
      %v500 = vshrl.u32 %v499, 4
      %v501 = vand.u32 %v499, 15
      %v502 = vsub.s32 0, %v501
      %v503 = vsel %vm497, %v502, %v501
      %vm504 = vcmp.lt.s32.totalorder %v436, 0
      %v505 = vsub.s32 0, %v436
      %v506 = vsel %vm504, %v505, %v436
      %v507 = vshrl.u32 %v506, 4
      %v508 = vand.u32 %v506, 15
      %v509 = vsub.s32 0, %v508
      %v510 = vsel %vm504, %v509, %v508
      %vm511 = vcmp.lt.s32.totalorder %v437, 0
      %v512 = vsub.s32 0, %v437
      %v513 = vsel %vm511, %v512, %v437
      %v514 = vshrl.u32 %v513, 4
      %v515 = vand.u32 %v513, 15
      %v516 = vsub.s32 0, %v515
      %v517 = vsel %vm511, %v516, %v515
      %vm518 = vcmp.lt.s32.totalorder %v438, 0
      %v519 = vsub.s32 0, %v438
      %v520 = vsel %vm518, %v519, %v438
      %v521 = vshrl.u32 %v520, 4
      %v522 = vand.u32 %v520, 15
      %v523 = vsub.s32 0, %v522
      %v524 = vsel %vm518, %v523, %v522
      %vm525 = vcmp.lt.s32.totalorder %v439, 0
      %v526 = vsub.s32 0, %v439
      %v527 = vsel %vm525, %v526, %v439
      %v528 = vshrl.u32 %v527, 4
      %v529 = vand.u32 %v527, 15
      %v530 = vsub.s32 0, %v529
      %v531 = vsel %vm525, %v530, %v529
      %vm532 = vcmp.lt.s32.totalorder %v440, 0
      %v533 = vsub.s32 0, %v440
      %v534 = vsel %vm532, %v533, %v440
      %v535 = vshrl.u32 %v534, 4
      %v536 = vand.u32 %v534, 15
      %v537 = vsub.s32 0, %v536
      %v538 = vsel %vm532, %v537, %v536
      %vm539 = vcmp.lt.s32.totalorder %v441, 0
      %v540 = vsub.s32 0, %v441
      %v541 = vsel %vm539, %v540, %v441
      %v542 = vshrl.u32 %v541, 4
      %v543 = vand.u32 %v541, 15
      %v544 = vsub.s32 0, %v543
      %v545 = vsel %vm539, %v544, %v543
      %vm546 = vcmp.lt.s32.totalorder %v442, 0
      %v547 = vsub.s32 0, %v442
      %v548 = vsel %vm546, %v547, %v442
      %v549 = vshrl.u32 %v548, 4
      %v550 = vand.u32 %v548, 15
      %v551 = vsub.s32 0, %v550
      %v552 = vsel %vm546, %v551, %v550
      %vm553 = vcmp.lt.s32.totalorder %v443, 0
      %v554 = vsub.s32 0, %v443
      %v555 = vsel %vm553, %v554, %v443
      %v556 = vshrl.u32 %v555, 4
      %v557 = vand.u32 %v555, 15
      %v558 = vsub.s32 0, %v557
      %v559 = vsel %vm553, %v558, %v557
      %vm560 = vcmp.lt.s32.totalorder %v444, 0
      %v561 = vsub.s32 0, %v444
      %v562 = vsel %vm560, %v561, %v444
      %v563 = vshrl.u32 %v562, 4
      %v564 = vand.u32 %v562, 15
      %v565 = vsub.s32 0, %v564
      %v566 = vsel %vm560, %v565, %v564
      %vm567 = vcmp.lt.s32.totalorder %v445, 0
      %v568 = vsub.s32 0, %v445
      %v569 = vsel %vm567, %v568, %v445
      %v570 = vshrl.u32 %v569, 4
      %v571 = vand.u32 %v569, 15
      %v572 = vsub.s32 0, %v571
      %v573 = vsel %vm567, %v572, %v571
      %vm574 = vcmp.lt.s32.totalorder %v446, 0
      %v575 = vsub.s32 0, %v446
      %v576 = vsel %vm574, %v575, %v446
      %v577 = vshrl.u32 %v576, 4
      %v578 = vand.u32 %v576, 15
      %v579 = vsub.s32 0, %v578
      %v580 = vsel %vm574, %v579, %v578
      %vm581 = vcmp.lt.s32.totalorder %v447, 0
      %v582 = vsub.s32 0, %v447
      %v583 = vsel %vm581, %v582, %v447
      %v584 = vshrl.u32 %v583, 4
      %v585 = vand.u32 %v583, 15
      %v586 = vsub.s32 0, %v585
      %v587 = vsel %vm581, %v586, %v585
      %vm588 = vcmp.lt.s32.totalorder %v448, 0
      %v589 = vsub.s32 0, %v448
      %v590 = vsel %vm588, %v589, %v448
      %v591 = vshrl.u32 %v590, 4
      %v592 = vand.u32 %v590, 15
      %v593 = vsub.s32 0, %v592
      %v594 = vsel %vm588, %v593, %v592
      %vm595 = vcmp.lt.s32.totalorder %v449, 0
      %v596 = vsub.s32 0, %v449
      %v597 = vsel %vm595, %v596, %v449
      %v598 = vshrl.u32 %v597, 4
      %v599 = vand.u32 %v597, 15
      %v600 = vsub.s32 0, %v599
      %v601 = vsel %vm595, %v600, %v599
      %vm602 = vcmp.lt.s32.totalorder %v450, 0
      %v603 = vsub.s32 0, %v450
      %v604 = vsel %vm602, %v603, %v450
      %v605 = vshrl.u32 %v604, 4
      %v606 = vand.u32 %v604, 15
      %v607 = vsub.s32 0, %v606
      %v608 = vsel %vm602, %v607, %v606
      %vm609 = vcmp.lt.s32.totalorder %v451, 0
      %v610 = vsub.s32 0, %v451
      %v611 = vsel %vm609, %v610, %v451
      %v612 = vshrl.u32 %v611, 4
      %v613 = vand.u32 %v611, 15
      %v614 = vsub.s32 0, %v613
      %v615 = vsel %vm609, %v614, %v613
      %vm616 = vcmp.lt.s32.totalorder %v452, 0
      %v617 = vsub.s32 0, %v452
      %v618 = vsel %vm616, %v617, %v452
      %v619 = vshrl.u32 %v618, 4
      %v620 = vand.u32 %v618, 15
      %v621 = vsub.s32 0, %v620
      %v622 = vsel %vm616, %v621, %v620
      %vm623 = vcmp.lt.s32.totalorder %v453, 0
      %v624 = vsub.s32 0, %v453
      %v625 = vsel %vm623, %v624, %v453
      %v626 = vshrl.u32 %v625, 4
      %v627 = vand.u32 %v625, 15
      %v628 = vsub.s32 0, %v627
      %v629 = vsel %vm623, %v628, %v627
      %vm630 = vcmp.lt.s32.totalorder %v454, 0
      %v631 = vsub.s32 0, %v454
      %v632 = vsel %vm630, %v631, %v454
      %v633 = vshrl.u32 %v632, 4
      %v634 = vand.u32 %v632, 15
      %v635 = vsub.s32 0, %v634
      %v636 = vsel %vm630, %v635, %v634
      %vm637 = vcmp.lt.s32.totalorder %v455, 0
      %v638 = vsub.s32 0, %v455
      %v639 = vsel %vm637, %v638, %v455
      %v640 = vshrl.u32 %v639, 4
      %v641 = vand.u32 %v639, 15
      %v642 = vsub.s32 0, %v641
      %v643 = vsel %vm637, %v642, %v641
      %vm644 = vcmp.lt.s32.totalorder %v456, 0
      %v645 = vsub.s32 0, %v456
      %v646 = vsel %vm644, %v645, %v456
      %v647 = vshrl.u32 %v646, 4
      %v648 = vand.u32 %v646, 15
      %v649 = vsub.s32 0, %v648
      %v650 = vsel %vm644, %v649, %v648
      %vm651 = vcmp.lt.s32.totalorder %v457, 0
      %v652 = vsub.s32 0, %v457
      %v653 = vsel %vm651, %v652, %v457
      %v654 = vshrl.u32 %v653, 4
      %v655 = vand.u32 %v653, 15
      %v656 = vsub.s32 0, %v655
      %v657 = vsel %vm651, %v656, %v655
      %vm658 = vcmp.lt.s32.totalorder %v458, 0
      %v659 = vsub.s32 0, %v458
      %v660 = vsel %vm658, %v659, %v458
      %v661 = vshrl.u32 %v660, 4
      %v662 = vand.u32 %v660, 15
      %v663 = vsub.s32 0, %v662
      %v664 = vsel %vm658, %v663, %v662
      %vm665 = vcmp.lt.s32.totalorder %v459, 0
      %v666 = vsub.s32 0, %v459
      %v667 = vsel %vm665, %v666, %v459
      %v668 = vshrl.u32 %v667, 4
      %v669 = vand.u32 %v667, 15
      %v670 = vsub.s32 0, %v669
      %v671 = vsel %vm665, %v670, %v669
      %vm672 = vcmp.lt.s32.totalorder %v460, 0
      %v673 = vsub.s32 0, %v460
      %v674 = vsel %vm672, %v673, %v460
      %v675 = vshrl.u32 %v674, 4
      %v676 = vand.u32 %v674, 15
      %v677 = vsub.s32 0, %v676
      %v678 = vsel %vm672, %v677, %v676
      %vm679 = vcmp.lt.s32.totalorder %v461, 0
      %v680 = vsub.s32 0, %v461
      %v681 = vsel %vm679, %v680, %v461
      %v682 = vshrl.u32 %v681, 4
      %v683 = vand.u32 %v681, 15
      %v684 = vsub.s32 0, %v683
      %v685 = vsel %vm679, %v684, %v683
      %vm686 = vcmp.ne.s32.totalorder %v468, 0
      %vm687 = vcmp.ne.s32.totalorder %v475, 0
      %vm688 = vcmp.ne.s32.totalorder %v482, 0
      %vm689 = vcmp.ne.s32.totalorder %v489, 0
      %vm690 = vcmp.ne.s32.totalorder %v496, 0
      %vm691 = vcmp.ne.s32.totalorder %v503, 0
      %vm692 = vcmp.ne.s32.totalorder %v510, 0
      %vm693 = vcmp.ne.s32.totalorder %v517, 0
      %vm694 = vcmp.ne.s32.totalorder %v524, 0
      %vm695 = vcmp.ne.s32.totalorder %v531, 0
      %vm696 = vcmp.ne.s32.totalorder %v538, 0
      %vm697 = vcmp.ne.s32.totalorder %v545, 0
      %vm698 = vcmp.ne.s32.totalorder %v552, 0
      %vm699 = vcmp.ne.s32.totalorder %v559, 0
      %vm700 = vcmp.ne.s32.totalorder %v566, 0
      %vm701 = vcmp.ne.s32.totalorder %v573, 0
      %vm702 = vcmp.ne.s32.totalorder %v580, 0
      %vm703 = vcmp.ne.s32.totalorder %v587, 0
      %vm704 = vcmp.ne.s32.totalorder %v594, 0
      %vm705 = vcmp.ne.s32.totalorder %v601, 0
      %vm706 = vcmp.ne.s32.totalorder %v608, 0
      %vm707 = vcmp.ne.s32.totalorder %v615, 0
      %vm708 = vcmp.ne.s32.totalorder %v622, 0
      %vm709 = vcmp.ne.s32.totalorder %v629, 0
      %vm710 = vcmp.ne.s32.totalorder %v636, 0
      %vm711 = vcmp.ne.s32.totalorder %v643, 0
      %vm712 = vcmp.ne.s32.totalorder %v650, 0
      %vm713 = vcmp.ne.s32.totalorder %v657, 0
      %vm714 = vcmp.ne.s32.totalorder %v664, 0
      %vm715 = vcmp.ne.s32.totalorder %v671, 0
      %vm716 = vcmp.ne.s32.totalorder %v678, 0
      %vm717 = vcmp.ne.s32.totalorder %v685, 0
      %vm718 = vcmp.lt.s32.totalorder %v468, 0
      %vm719 = vcmp.lt.s32.totalorder %v475, 0
      %vm720 = vcmp.lt.s32.totalorder %v482, 0
      %vm721 = vcmp.lt.s32.totalorder %v489, 0
      %vm722 = vcmp.lt.s32.totalorder %v496, 0
      %vm723 = vcmp.lt.s32.totalorder %v503, 0
      %vm724 = vcmp.lt.s32.totalorder %v510, 0
      %vm725 = vcmp.lt.s32.totalorder %v517, 0
      %vm726 = vcmp.lt.s32.totalorder %v524, 0
      %vm727 = vcmp.lt.s32.totalorder %v531, 0
      %vm728 = vcmp.lt.s32.totalorder %v538, 0
      %vm729 = vcmp.lt.s32.totalorder %v545, 0
      %vm730 = vcmp.lt.s32.totalorder %v552, 0
      %vm731 = vcmp.lt.s32.totalorder %v559, 0
      %vm732 = vcmp.lt.s32.totalorder %v566, 0
      %vm733 = vcmp.lt.s32.totalorder %v573, 0
      %vm734 = vcmp.lt.s32.totalorder %v580, 0
      %vm735 = vcmp.lt.s32.totalorder %v587, 0
      %vm736 = vcmp.lt.s32.totalorder %v594, 0
      %vm737 = vcmp.lt.s32.totalorder %v601, 0
      %vm738 = vcmp.lt.s32.totalorder %v608, 0
      %vm739 = vcmp.lt.s32.totalorder %v615, 0
      %vm740 = vcmp.lt.s32.totalorder %v622, 0
      %vm741 = vcmp.lt.s32.totalorder %v629, 0
      %vm742 = vcmp.lt.s32.totalorder %v636, 0
      %vm743 = vcmp.lt.s32.totalorder %v643, 0
      %vm744 = vcmp.lt.s32.totalorder %v650, 0
      %vm745 = vcmp.lt.s32.totalorder %v657, 0
      %vm746 = vcmp.lt.s32.totalorder %v664, 0
      %vm747 = vcmp.lt.s32.totalorder %v671, 0
      %vm748 = vcmp.lt.s32.totalorder %v678, 0
      %vm749 = vcmp.lt.s32.totalorder %v685, 0
      %vm750 = vmand %vm718, %vm686
      %vm751 = vmand %vm719, %vm687
      %vm752 = vmand %vm720, %vm688
      %vm753 = vmand %vm721, %vm689
      %vm754 = vmand %vm722, %vm690
      %vm755 = vmand %vm723, %vm691
      %vm756 = vmand %vm724, %vm692
      %vm757 = vmand %vm725, %vm693
      %vm758 = vmand %vm726, %vm694
      %vm759 = vmand %vm727, %vm695
      %vm760 = vmand %vm728, %vm696
      %vm761 = vmand %vm729, %vm697
      %vm762 = vmand %vm730, %vm698
      %vm763 = vmand %vm731, %vm699
      %vm764 = vmand %vm732, %vm700
      %vm765 = vmand %vm733, %vm701
      %vm766 = vmand %vm734, %vm702
      %vm767 = vmand %vm735, %vm703
      %vm768 = vmand %vm736, %vm704
      %vm769 = vmand %vm737, %vm705
      %vm770 = vmand %vm738, %vm706
      %vm771 = vmand %vm739, %vm707
      %vm772 = vmand %vm740, %vm708
      %vm773 = vmand %vm741, %vm709
      %vm774 = vmand %vm742, %vm710
      %vm775 = vmand %vm743, %vm711
      %vm776 = vmand %vm744, %vm712
      %vm777 = vmand %vm745, %vm713
      %vm778 = vmand %vm746, %vm714
      %vm779 = vmand %vm747, %vm715
      %vm780 = vmand %vm748, %vm716
      %vm781 = vmand %vm749, %vm717
      %v782 = vadd.s32 %v468, 16
      %v783 = vadd.s32 %v475, 16
      %v784 = vadd.s32 %v482, 16
      %v785 = vadd.s32 %v489, 16
      %v786 = vadd.s32 %v496, 16
      %v787 = vadd.s32 %v503, 16
      %v788 = vadd.s32 %v510, 16
      %v789 = vadd.s32 %v517, 16
      %v790 = vadd.s32 %v524, 16
      %v791 = vadd.s32 %v531, 16
      %v792 = vadd.s32 %v538, 16
      %v793 = vadd.s32 %v545, 16
      %v794 = vadd.s32 %v552, 16
      %v795 = vadd.s32 %v559, 16
      %v796 = vadd.s32 %v566, 16
      %v797 = vadd.s32 %v573, 16
      %v798 = vadd.s32 %v580, 16
      %v799 = vadd.s32 %v587, 16
      %v800 = vadd.s32 %v594, 16
      %v801 = vadd.s32 %v601, 16
      %v802 = vadd.s32 %v608, 16
      %v803 = vadd.s32 %v615, 16
      %v804 = vadd.s32 %v622, 16
      %v805 = vadd.s32 %v629, 16
      %v806 = vadd.s32 %v636, 16
      %v807 = vadd.s32 %v643, 16
      %v808 = vadd.s32 %v650, 16
      %v809 = vadd.s32 %v657, 16
      %v810 = vadd.s32 %v664, 16
      %v811 = vadd.s32 %v671, 16
      %v812 = vadd.s32 %v678, 16
      %v813 = vadd.s32 %v685, 16
      %v814 = vsel %vm750, %v782, %v468
      %v815 = vsel %vm751, %v783, %v475
      %v816 = vsel %vm752, %v784, %v482
      %v817 = vsel %vm753, %v785, %v489
      %v818 = vsel %vm754, %v786, %v496
      %v819 = vsel %vm755, %v787, %v503
      %v820 = vsel %vm756, %v788, %v510
      %v821 = vsel %vm757, %v789, %v517
      %v822 = vsel %vm758, %v790, %v524
      %v823 = vsel %vm759, %v791, %v531
      %v824 = vsel %vm760, %v792, %v538
      %v825 = vsel %vm761, %v793, %v545
      %v826 = vsel %vm762, %v794, %v552
      %v827 = vsel %vm763, %v795, %v559
      %v828 = vsel %vm764, %v796, %v566
      %v829 = vsel %vm765, %v797, %v573
      %v830 = vsel %vm766, %v798, %v580
      %v831 = vsel %vm767, %v799, %v587
      %v832 = vsel %vm768, %v800, %v594
      %v833 = vsel %vm769, %v801, %v601
      %v834 = vsel %vm770, %v802, %v608
      %v835 = vsel %vm771, %v803, %v615
      %v836 = vsel %vm772, %v804, %v622
      %v837 = vsel %vm773, %v805, %v629
      %v838 = vsel %vm774, %v806, %v636
      %v839 = vsel %vm775, %v807, %v643
      %v840 = vsel %vm776, %v808, %v650
      %v841 = vsel %vm777, %v809, %v657
      %v842 = vsel %vm778, %v810, %v664
      %v843 = vsel %vm779, %v811, %v671
      %v844 = vsel %vm780, %v812, %v678
      %v845 = vsel %vm781, %v813, %v685
      %vm846 = vcmp.eq.s32.totalorder %v814, 0
      %vm847 = vcmp.eq.s32.totalorder %v815, 0
      %vm848 = vcmp.eq.s32.totalorder %v816, 0
      %vm849 = vcmp.eq.s32.totalorder %v817, 0
      %vm850 = vcmp.eq.s32.totalorder %v818, 0
      %vm851 = vcmp.eq.s32.totalorder %v819, 0
      %vm852 = vcmp.eq.s32.totalorder %v820, 0
      %vm853 = vcmp.eq.s32.totalorder %v821, 0
      %vm854 = vcmp.eq.s32.totalorder %v822, 0
      %vm855 = vcmp.eq.s32.totalorder %v823, 0
      %vm856 = vcmp.eq.s32.totalorder %v824, 0
      %vm857 = vcmp.eq.s32.totalorder %v825, 0
      %vm858 = vcmp.eq.s32.totalorder %v826, 0
      %vm859 = vcmp.eq.s32.totalorder %v827, 0
      %vm860 = vcmp.eq.s32.totalorder %v828, 0
      %vm861 = vcmp.eq.s32.totalorder %v829, 0
      %vm862 = vcmp.eq.s32.totalorder %v830, 0
      %vm863 = vcmp.eq.s32.totalorder %v831, 0
      %vm864 = vcmp.eq.s32.totalorder %v832, 0
      %vm865 = vcmp.eq.s32.totalorder %v833, 0
      %vm866 = vcmp.eq.s32.totalorder %v834, 0
      %vm867 = vcmp.eq.s32.totalorder %v835, 0
      %vm868 = vcmp.eq.s32.totalorder %v836, 0
      %vm869 = vcmp.eq.s32.totalorder %v837, 0
      %vm870 = vcmp.eq.s32.totalorder %v838, 0
      %vm871 = vcmp.eq.s32.totalorder %v839, 0
      %vm872 = vcmp.eq.s32.totalorder %v840, 0
      %vm873 = vcmp.eq.s32.totalorder %v841, 0
      %vm874 = vcmp.eq.s32.totalorder %v842, 0
      %vm875 = vcmp.eq.s32.totalorder %v843, 0
      %vm876 = vcmp.eq.s32.totalorder %v844, 0
      %vm877 = vcmp.eq.s32.totalorder %v845, 0
      %v878 = vsel %vm846, 1, 0
      %v879 = vsel %vm847, 1, 0
      %v880 = vsel %vm848, 1, 0
      %v881 = vsel %vm849, 1, 0
      %v882 = vsel %vm850, 1, 0
      %v883 = vsel %vm851, 1, 0
      %v884 = vsel %vm852, 1, 0
      %v885 = vsel %vm853, 1, 0
      %v886 = vsel %vm854, 1, 0
      %v887 = vsel %vm855, 1, 0
      %v888 = vsel %vm856, 1, 0
      %v889 = vsel %vm857, 1, 0
      %v890 = vsel %vm858, 1, 0
      %v891 = vsel %vm859, 1, 0
      %v892 = vsel %vm860, 1, 0
      %v893 = vsel %vm861, 1, 0
      %v894 = vsel %vm862, 1, 0
      %v895 = vsel %vm863, 1, 0
      %v896 = vsel %vm864, 1, 0
      %v897 = vsel %vm865, 1, 0
      %v898 = vsel %vm866, 1, 0
      %v899 = vsel %vm867, 1, 0
      %v900 = vsel %vm868, 1, 0
      %v901 = vsel %vm869, 1, 0
      %v902 = vsel %vm870, 1, 0
      %v903 = vsel %vm871, 1, 0
      %v904 = vsel %vm872, 1, 0
      %v905 = vsel %vm873, 1, 0
      %v906 = vsel %vm874, 1, 0
      %v907 = vsel %vm875, 1, 0
      %v908 = vsel %vm876, 1, 0
      %v909 = vsel %vm877, 1, 0
      %vm910 = vcmp.eq.s32.totalorder %v878, 1
      %vm911 = vcmp.eq.s32.totalorder %v879, 1
      %vm912 = vcmp.eq.s32.totalorder %v880, 1
      %vm913 = vcmp.eq.s32.totalorder %v881, 1
      %vm914 = vcmp.eq.s32.totalorder %v882, 1
      %vm915 = vcmp.eq.s32.totalorder %v883, 1
      %vm916 = vcmp.eq.s32.totalorder %v884, 1
      %vm917 = vcmp.eq.s32.totalorder %v885, 1
      %vm918 = vcmp.eq.s32.totalorder %v886, 1
      %vm919 = vcmp.eq.s32.totalorder %v887, 1
      %vm920 = vcmp.eq.s32.totalorder %v888, 1
      %vm921 = vcmp.eq.s32.totalorder %v889, 1
      %vm922 = vcmp.eq.s32.totalorder %v890, 1
      %vm923 = vcmp.eq.s32.totalorder %v891, 1
      %vm924 = vcmp.eq.s32.totalorder %v892, 1
      %vm925 = vcmp.eq.s32.totalorder %v893, 1
      %vm926 = vcmp.eq.s32.totalorder %v894, 1
      %vm927 = vcmp.eq.s32.totalorder %v895, 1
      %vm928 = vcmp.eq.s32.totalorder %v896, 1
      %vm929 = vcmp.eq.s32.totalorder %v897, 1
      %vm930 = vcmp.eq.s32.totalorder %v898, 1
      %vm931 = vcmp.eq.s32.totalorder %v899, 1
      %vm932 = vcmp.eq.s32.totalorder %v900, 1
      %vm933 = vcmp.eq.s32.totalorder %v901, 1
      %vm934 = vcmp.eq.s32.totalorder %v902, 1
      %vm935 = vcmp.eq.s32.totalorder %v903, 1
      %vm936 = vcmp.eq.s32.totalorder %v904, 1
      %vm937 = vcmp.eq.s32.totalorder %v905, 1
      %vm938 = vcmp.eq.s32.totalorder %v906, 1
      %vm939 = vcmp.eq.s32.totalorder %v907, 1
      %vm940 = vcmp.eq.s32.totalorder %v908, 1
      %vm941 = vcmp.eq.s32.totalorder %v909, 1
      %vm942 = vmpackc.low %vm910, %vm910
      %vm943 = vmpackc.low %vm911, %vm911
      %vm944 = vmpackc.low %vm912, %vm912
      %vm945 = vmpackc.low %vm913, %vm913
      %vm946 = vmpackc.low %vm914, %vm914
      %vm947 = vmpackc.low %vm915, %vm915
      %vm948 = vmpackc.low %vm916, %vm916
      %vm949 = vmpackc.low %vm917, %vm917
      %vm950 = vmpackc.low %vm918, %vm918
      %vm951 = vmpackc.low %vm919, %vm919
      %vm952 = vmpackc.low %vm920, %vm920
      %vm953 = vmpackc.low %vm921, %vm921
      %vm954 = vmpackc.low %vm922, %vm922
      %vm955 = vmpackc.low %vm923, %vm923
      %vm956 = vmpackc.low %vm924, %vm924
      %vm957 = vmpackc.low %vm925, %vm925
      %vm958 = vmpackc.low %vm926, %vm926
      %vm959 = vmpackc.low %vm927, %vm927
      %vm960 = vmpackc.low %vm928, %vm928
      %vm961 = vmpackc.low %vm929, %vm929
      %vm962 = vmpackc.low %vm930, %vm930
      %vm963 = vmpackc.low %vm931, %vm931
      %vm964 = vmpackc.low %vm932, %vm932
      %vm965 = vmpackc.low %vm933, %vm933
      %vm966 = vmpackc.low %vm934, %vm934
      %vm967 = vmpackc.low %vm935, %vm935
      %vm968 = vmpackc.low %vm936, %vm936
      %vm969 = vmpackc.low %vm937, %vm937
      %vm970 = vmpackc.low %vm938, %vm938
      %vm971 = vmpackc.low %vm939, %vm939
      %vm972 = vmpackc.low %vm940, %vm940
      %vm973 = vmpackc.low %vm941, %vm941
      %v974 = vsel %vm942, 65537, 0
      %v975 = vsel %vm943, 65537, 0
      %v976 = vsel %vm944, 65537, 0
      %v977 = vsel %vm945, 65537, 0
      %v978 = vsel %vm946, 65537, 0
      %v979 = vsel %vm947, 65537, 0
      %v980 = vsel %vm948, 65537, 0
      %v981 = vsel %vm949, 65537, 0
      %v982 = vsel %vm950, 65537, 0
      %v983 = vsel %vm951, 65537, 0
      %v984 = vsel %vm952, 65537, 0
      %v985 = vsel %vm953, 65537, 0
      %v986 = vsel %vm954, 65537, 0
      %v987 = vsel %vm955, 65537, 0
      %v988 = vsel %vm956, 65537, 0
      %v989 = vsel %vm957, 65537, 0
      %v990 = vsel %vm958, 65537, 0
      %v991 = vsel %vm959, 65537, 0
      %v992 = vsel %vm960, 65537, 0
      %v993 = vsel %vm961, 65537, 0
      %v994 = vsel %vm962, 65537, 0
      %v995 = vsel %vm963, 65537, 0
      %v996 = vsel %vm964, 65537, 0
      %v997 = vsel %vm965, 65537, 0
      %v998 = vsel %vm966, 65537, 0
      %v999 = vsel %vm967, 65537, 0
      %v1000 = vsel %vm968, 65537, 0
      %v1001 = vsel %vm969, 65537, 0
      %v1002 = vsel %vm970, 65537, 0
      %v1003 = vsel %vm971, 65537, 0
      %v1004 = vsel %vm972, 65537, 0
      %v1005 = vsel %vm973, 65537, 0
      %v1006 = vunpack.c.l.b16 %v974
      %v1007 = vunpack.c.l.b16 %v975
      %v1008 = vunpack.c.l.b16 %v976
      %v1009 = vunpack.c.l.b16 %v977
      %v1010 = vunpack.c.l.b16 %v978
      %v1011 = vunpack.c.l.b16 %v979
      %v1012 = vunpack.c.l.b16 %v980
      %v1013 = vunpack.c.l.b16 %v981
      %v1014 = vunpack.c.l.b16 %v982
      %v1015 = vunpack.c.l.b16 %v983
      %v1016 = vunpack.c.l.b16 %v984
      %v1017 = vunpack.c.l.b16 %v985
      %v1018 = vunpack.c.l.b16 %v986
      %v1019 = vunpack.c.l.b16 %v987
      %v1020 = vunpack.c.l.b16 %v988
      %v1021 = vunpack.c.l.b16 %v989
      %v1022 = vunpack.c.l.b16 %v990
      %v1023 = vunpack.c.l.b16 %v991
      %v1024 = vunpack.c.l.b16 %v992
      %v1025 = vunpack.c.l.b16 %v993
      %v1026 = vunpack.c.l.b16 %v994
      %v1027 = vunpack.c.l.b16 %v995
      %v1028 = vunpack.c.l.b16 %v996
      %v1029 = vunpack.c.l.b16 %v997
      %v1030 = vunpack.c.l.b16 %v998
      %v1031 = vunpack.c.l.b16 %v999
      %v1032 = vunpack.c.l.b16 %v1000
      %v1033 = vunpack.c.l.b16 %v1001
      %v1034 = vunpack.c.l.b16 %v1002
      %v1035 = vunpack.c.l.b16 %v1003
      %v1036 = vunpack.c.l.b16 %v1004
      %v1037 = vunpack.c.l.b16 %v1005
      %v1038 = vpack.c.b16 %v1007, %v1006
      %v1039 = vpack.c.b16 %v1009, %v1008
      %v1040 = vpack.c.b16 %v1011, %v1010
      %v1041 = vpack.c.b16 %v1013, %v1012
      %v1042 = vpack.c.b16 %v1015, %v1014
      %v1043 = vpack.c.b16 %v1017, %v1016
      %v1044 = vpack.c.b16 %v1019, %v1018
      %v1045 = vpack.c.b16 %v1021, %v1020
      %v1046 = vpack.c.b16 %v1023, %v1022
      %v1047 = vpack.c.b16 %v1025, %v1024
      %v1048 = vpack.c.b16 %v1027, %v1026
      %v1049 = vpack.c.b16 %v1029, %v1028
      %v1050 = vpack.c.b16 %v1031, %v1030
      %v1051 = vpack.c.b16 %v1033, %v1032
      %v1052 = vpack.c.b16 %v1035, %v1034
      %v1053 = vpack.c.b16 %v1037, %v1036
      %vm1054 = vcmp.ne.s16.totalorder %v1038, 0
      %vm1055 = vcmp.ne.s16.totalorder %v1039, 0
      %vm1056 = vcmp.ne.s16.totalorder %v1040, 0
      %vm1057 = vcmp.ne.s16.totalorder %v1041, 0
      %vm1058 = vcmp.ne.s16.totalorder %v1042, 0
      %vm1059 = vcmp.ne.s16.totalorder %v1043, 0
      %vm1060 = vcmp.ne.s16.totalorder %v1044, 0
      %vm1061 = vcmp.ne.s16.totalorder %v1045, 0
      %vm1062 = vcmp.ne.s16.totalorder %v1046, 0
      %vm1063 = vcmp.ne.s16.totalorder %v1047, 0
      %vm1064 = vcmp.ne.s16.totalorder %v1048, 0
      %vm1065 = vcmp.ne.s16.totalorder %v1049, 0
      %vm1066 = vcmp.ne.s16.totalorder %v1050, 0
      %vm1067 = vcmp.ne.s16.totalorder %v1051, 0
      %vm1068 = vcmp.ne.s16.totalorder %v1052, 0
      %vm1069 = vcmp.ne.s16.totalorder %v1053, 0
      %v1070 = vsel %vm1054, 0, %v413
      %v1071 = vsel %vm1055, 0, %v414
      %v1072 = vsel %vm1056, 0, %v415
      %v1073 = vsel %vm1057, 0, %v416
      %v1074 = vsel %vm1058, 0, %v417
      %v1075 = vsel %vm1059, 0, %v418
      %v1076 = vsel %vm1060, 0, %v419
      %v1077 = vsel %vm1061, 0, %v420
      %v1078 = vsel %vm1062, 0, %v421
      %v1079 = vsel %vm1063, 0, %v422
      %v1080 = vsel %vm1064, 0, %v423
      %v1081 = vsel %vm1065, 0, %v424
      %v1082 = vsel %vm1066, 0, %v425
      %v1083 = vsel %vm1067, 0, %v426
      %v1084 = vsel %vm1068, 0, %v427
      %v1085 = vsel %vm1069, 0, %v428
      %vm1086 = vcmp.eq.s32.totalorder %v814, 15
      %vm1087 = vcmp.eq.s32.totalorder %v815, 15
      %vm1088 = vcmp.eq.s32.totalorder %v816, 15
      %vm1089 = vcmp.eq.s32.totalorder %v817, 15
      %vm1090 = vcmp.eq.s32.totalorder %v818, 15
      %vm1091 = vcmp.eq.s32.totalorder %v819, 15
      %vm1092 = vcmp.eq.s32.totalorder %v820, 15
      %vm1093 = vcmp.eq.s32.totalorder %v821, 15
      %vm1094 = vcmp.eq.s32.totalorder %v822, 15
      %vm1095 = vcmp.eq.s32.totalorder %v823, 15
      %vm1096 = vcmp.eq.s32.totalorder %v824, 15
      %vm1097 = vcmp.eq.s32.totalorder %v825, 15
      %vm1098 = vcmp.eq.s32.totalorder %v826, 15
      %vm1099 = vcmp.eq.s32.totalorder %v827, 15
      %vm1100 = vcmp.eq.s32.totalorder %v828, 15
      %vm1101 = vcmp.eq.s32.totalorder %v829, 15
      %vm1102 = vcmp.eq.s32.totalorder %v830, 15
      %vm1103 = vcmp.eq.s32.totalorder %v831, 15
      %vm1104 = vcmp.eq.s32.totalorder %v832, 15
      %vm1105 = vcmp.eq.s32.totalorder %v833, 15
      %vm1106 = vcmp.eq.s32.totalorder %v834, 15
      %vm1107 = vcmp.eq.s32.totalorder %v835, 15
      %vm1108 = vcmp.eq.s32.totalorder %v836, 15
      %vm1109 = vcmp.eq.s32.totalorder %v837, 15
      %vm1110 = vcmp.eq.s32.totalorder %v838, 15
      %vm1111 = vcmp.eq.s32.totalorder %v839, 15
      %vm1112 = vcmp.eq.s32.totalorder %v840, 15
      %vm1113 = vcmp.eq.s32.totalorder %v841, 15
      %vm1114 = vcmp.eq.s32.totalorder %v842, 15
      %vm1115 = vcmp.eq.s32.totalorder %v843, 15
      %vm1116 = vcmp.eq.s32.totalorder %v844, 15
      %vm1117 = vcmp.eq.s32.totalorder %v845, 15
      %v1118 = vsel %vm1086, 1, 0
      %v1119 = vsel %vm1087, 1, 0
      %v1120 = vsel %vm1088, 1, 0
      %v1121 = vsel %vm1089, 1, 0
      %v1122 = vsel %vm1090, 1, 0
      %v1123 = vsel %vm1091, 1, 0
      %v1124 = vsel %vm1092, 1, 0
      %v1125 = vsel %vm1093, 1, 0
      %v1126 = vsel %vm1094, 1, 0
      %v1127 = vsel %vm1095, 1, 0
      %v1128 = vsel %vm1096, 1, 0
      %v1129 = vsel %vm1097, 1, 0
      %v1130 = vsel %vm1098, 1, 0
      %v1131 = vsel %vm1099, 1, 0
      %v1132 = vsel %vm1100, 1, 0
      %v1133 = vsel %vm1101, 1, 0
      %v1134 = vsel %vm1102, 1, 0
      %v1135 = vsel %vm1103, 1, 0
      %v1136 = vsel %vm1104, 1, 0
      %v1137 = vsel %vm1105, 1, 0
      %v1138 = vsel %vm1106, 1, 0
      %v1139 = vsel %vm1107, 1, 0
      %v1140 = vsel %vm1108, 1, 0
      %v1141 = vsel %vm1109, 1, 0
      %v1142 = vsel %vm1110, 1, 0
      %v1143 = vsel %vm1111, 1, 0
      %v1144 = vsel %vm1112, 1, 0
      %v1145 = vsel %vm1113, 1, 0
      %v1146 = vsel %vm1114, 1, 0
      %v1147 = vsel %vm1115, 1, 0
      %v1148 = vsel %vm1116, 1, 0
      %v1149 = vsel %vm1117, 1, 0
      %vm1150 = vcmp.eq.s32.totalorder %v1118, 1
      %vm1151 = vcmp.eq.s32.totalorder %v1119, 1
      %vm1152 = vcmp.eq.s32.totalorder %v1120, 1
      %vm1153 = vcmp.eq.s32.totalorder %v1121, 1
      %vm1154 = vcmp.eq.s32.totalorder %v1122, 1
      %vm1155 = vcmp.eq.s32.totalorder %v1123, 1
      %vm1156 = vcmp.eq.s32.totalorder %v1124, 1
      %vm1157 = vcmp.eq.s32.totalorder %v1125, 1
      %vm1158 = vcmp.eq.s32.totalorder %v1126, 1
      %vm1159 = vcmp.eq.s32.totalorder %v1127, 1
      %vm1160 = vcmp.eq.s32.totalorder %v1128, 1
      %vm1161 = vcmp.eq.s32.totalorder %v1129, 1
      %vm1162 = vcmp.eq.s32.totalorder %v1130, 1
      %vm1163 = vcmp.eq.s32.totalorder %v1131, 1
      %vm1164 = vcmp.eq.s32.totalorder %v1132, 1
      %vm1165 = vcmp.eq.s32.totalorder %v1133, 1
      %vm1166 = vcmp.eq.s32.totalorder %v1134, 1
      %vm1167 = vcmp.eq.s32.totalorder %v1135, 1
      %vm1168 = vcmp.eq.s32.totalorder %v1136, 1
      %vm1169 = vcmp.eq.s32.totalorder %v1137, 1
      %vm1170 = vcmp.eq.s32.totalorder %v1138, 1
      %vm1171 = vcmp.eq.s32.totalorder %v1139, 1
      %vm1172 = vcmp.eq.s32.totalorder %v1140, 1
      %vm1173 = vcmp.eq.s32.totalorder %v1141, 1
      %vm1174 = vcmp.eq.s32.totalorder %v1142, 1
      %vm1175 = vcmp.eq.s32.totalorder %v1143, 1
      %vm1176 = vcmp.eq.s32.totalorder %v1144, 1
      %vm1177 = vcmp.eq.s32.totalorder %v1145, 1
      %vm1178 = vcmp.eq.s32.totalorder %v1146, 1
      %vm1179 = vcmp.eq.s32.totalorder %v1147, 1
      %vm1180 = vcmp.eq.s32.totalorder %v1148, 1
      %vm1181 = vcmp.eq.s32.totalorder %v1149, 1
      %vm1182 = vmpackc.low %vm1150, %vm1150
      %vm1183 = vmpackc.low %vm1151, %vm1151
      %vm1184 = vmpackc.low %vm1152, %vm1152
      %vm1185 = vmpackc.low %vm1153, %vm1153
      %vm1186 = vmpackc.low %vm1154, %vm1154
      %vm1187 = vmpackc.low %vm1155, %vm1155
      %vm1188 = vmpackc.low %vm1156, %vm1156
      %vm1189 = vmpackc.low %vm1157, %vm1157
      %vm1190 = vmpackc.low %vm1158, %vm1158
      %vm1191 = vmpackc.low %vm1159, %vm1159
      %vm1192 = vmpackc.low %vm1160, %vm1160
      %vm1193 = vmpackc.low %vm1161, %vm1161
      %vm1194 = vmpackc.low %vm1162, %vm1162
      %vm1195 = vmpackc.low %vm1163, %vm1163
      %vm1196 = vmpackc.low %vm1164, %vm1164
      %vm1197 = vmpackc.low %vm1165, %vm1165
      %vm1198 = vmpackc.low %vm1166, %vm1166
      %vm1199 = vmpackc.low %vm1167, %vm1167
      %vm1200 = vmpackc.low %vm1168, %vm1168
      %vm1201 = vmpackc.low %vm1169, %vm1169
      %vm1202 = vmpackc.low %vm1170, %vm1170
      %vm1203 = vmpackc.low %vm1171, %vm1171
      %vm1204 = vmpackc.low %vm1172, %vm1172
      %vm1205 = vmpackc.low %vm1173, %vm1173
      %vm1206 = vmpackc.low %vm1174, %vm1174
      %vm1207 = vmpackc.low %vm1175, %vm1175
      %vm1208 = vmpackc.low %vm1176, %vm1176
      %vm1209 = vmpackc.low %vm1177, %vm1177
      %vm1210 = vmpackc.low %vm1178, %vm1178
      %vm1211 = vmpackc.low %vm1179, %vm1179
      %vm1212 = vmpackc.low %vm1180, %vm1180
      %vm1213 = vmpackc.low %vm1181, %vm1181
      %v1214 = vsel %vm1182, 65537, 0
      %v1215 = vsel %vm1183, 65537, 0
      %v1216 = vsel %vm1184, 65537, 0
      %v1217 = vsel %vm1185, 65537, 0
      %v1218 = vsel %vm1186, 65537, 0
      %v1219 = vsel %vm1187, 65537, 0
      %v1220 = vsel %vm1188, 65537, 0
      %v1221 = vsel %vm1189, 65537, 0
      %v1222 = vsel %vm1190, 65537, 0
      %v1223 = vsel %vm1191, 65537, 0
      %v1224 = vsel %vm1192, 65537, 0
      %v1225 = vsel %vm1193, 65537, 0
      %v1226 = vsel %vm1194, 65537, 0
      %v1227 = vsel %vm1195, 65537, 0
      %v1228 = vsel %vm1196, 65537, 0
      %v1229 = vsel %vm1197, 65537, 0
      %v1230 = vsel %vm1198, 65537, 0
      %v1231 = vsel %vm1199, 65537, 0
      %v1232 = vsel %vm1200, 65537, 0
      %v1233 = vsel %vm1201, 65537, 0
      %v1234 = vsel %vm1202, 65537, 0
      %v1235 = vsel %vm1203, 65537, 0
      %v1236 = vsel %vm1204, 65537, 0
      %v1237 = vsel %vm1205, 65537, 0
      %v1238 = vsel %vm1206, 65537, 0
      %v1239 = vsel %vm1207, 65537, 0
      %v1240 = vsel %vm1208, 65537, 0
      %v1241 = vsel %vm1209, 65537, 0
      %v1242 = vsel %vm1210, 65537, 0
      %v1243 = vsel %vm1211, 65537, 0
      %v1244 = vsel %vm1212, 65537, 0
      %v1245 = vsel %vm1213, 65537, 0
      %v1246 = vunpack.c.l.b16 %v1214
      %v1247 = vunpack.c.l.b16 %v1215
      %v1248 = vunpack.c.l.b16 %v1216
      %v1249 = vunpack.c.l.b16 %v1217
      %v1250 = vunpack.c.l.b16 %v1218
      %v1251 = vunpack.c.l.b16 %v1219
      %v1252 = vunpack.c.l.b16 %v1220
      %v1253 = vunpack.c.l.b16 %v1221
      %v1254 = vunpack.c.l.b16 %v1222
      %v1255 = vunpack.c.l.b16 %v1223
      %v1256 = vunpack.c.l.b16 %v1224
      %v1257 = vunpack.c.l.b16 %v1225
      %v1258 = vunpack.c.l.b16 %v1226
      %v1259 = vunpack.c.l.b16 %v1227
      %v1260 = vunpack.c.l.b16 %v1228
      %v1261 = vunpack.c.l.b16 %v1229
      %v1262 = vunpack.c.l.b16 %v1230
      %v1263 = vunpack.c.l.b16 %v1231
      %v1264 = vunpack.c.l.b16 %v1232
      %v1265 = vunpack.c.l.b16 %v1233
      %v1266 = vunpack.c.l.b16 %v1234
      %v1267 = vunpack.c.l.b16 %v1235
      %v1268 = vunpack.c.l.b16 %v1236
      %v1269 = vunpack.c.l.b16 %v1237
      %v1270 = vunpack.c.l.b16 %v1238
      %v1271 = vunpack.c.l.b16 %v1239
      %v1272 = vunpack.c.l.b16 %v1240
      %v1273 = vunpack.c.l.b16 %v1241
      %v1274 = vunpack.c.l.b16 %v1242
      %v1275 = vunpack.c.l.b16 %v1243
      %v1276 = vunpack.c.l.b16 %v1244
      %v1277 = vunpack.c.l.b16 %v1245
      %v1278 = vpack.c.b16 %v1247, %v1246
      %v1279 = vpack.c.b16 %v1249, %v1248
      %v1280 = vpack.c.b16 %v1251, %v1250
      %v1281 = vpack.c.b16 %v1253, %v1252
      %v1282 = vpack.c.b16 %v1255, %v1254
      %v1283 = vpack.c.b16 %v1257, %v1256
      %v1284 = vpack.c.b16 %v1259, %v1258
      %v1285 = vpack.c.b16 %v1261, %v1260
      %v1286 = vpack.c.b16 %v1263, %v1262
      %v1287 = vpack.c.b16 %v1265, %v1264
      %v1288 = vpack.c.b16 %v1267, %v1266
      %v1289 = vpack.c.b16 %v1269, %v1268
      %v1290 = vpack.c.b16 %v1271, %v1270
      %v1291 = vpack.c.b16 %v1273, %v1272
      %v1292 = vpack.c.b16 %v1275, %v1274
      %v1293 = vpack.c.b16 %v1277, %v1276
      %vm1294 = vcmp.ne.s16.totalorder %v1278, 0
      %vm1295 = vcmp.ne.s16.totalorder %v1279, 0
      %vm1296 = vcmp.ne.s16.totalorder %v1280, 0
      %vm1297 = vcmp.ne.s16.totalorder %v1281, 0
      %vm1298 = vcmp.ne.s16.totalorder %v1282, 0
      %vm1299 = vcmp.ne.s16.totalorder %v1283, 0
      %vm1300 = vcmp.ne.s16.totalorder %v1284, 0
      %vm1301 = vcmp.ne.s16.totalorder %v1285, 0
      %vm1302 = vcmp.ne.s16.totalorder %v1286, 0
      %vm1303 = vcmp.ne.s16.totalorder %v1287, 0
      %vm1304 = vcmp.ne.s16.totalorder %v1288, 0
      %vm1305 = vcmp.ne.s16.totalorder %v1289, 0
      %vm1306 = vcmp.ne.s16.totalorder %v1290, 0
      %vm1307 = vcmp.ne.s16.totalorder %v1291, 0
      %vm1308 = vcmp.ne.s16.totalorder %v1292, 0
      %vm1309 = vcmp.ne.s16.totalorder %v1293, 0
      %v1310 = vsel %vm1294, 0, %v413
      %v1311 = vsel %vm1295, 0, %v414
      %v1312 = vsel %vm1296, 0, %v415
      %v1313 = vsel %vm1297, 0, %v416
      %v1314 = vsel %vm1298, 0, %v417
      %v1315 = vsel %vm1299, 0, %v418
      %v1316 = vsel %vm1300, 0, %v419
      %v1317 = vsel %vm1301, 0, %v420
      %v1318 = vsel %vm1302, 0, %v421
      %v1319 = vsel %vm1303, 0, %v422
      %v1320 = vsel %vm1304, 0, %v423
      %v1321 = vsel %vm1305, 0, %v424
      %v1322 = vsel %vm1306, 0, %v425
      %v1323 = vsel %vm1307, 0, %v426
      %v1324 = vsel %vm1308, 0, %v427
      %v1325 = vsel %vm1309, 0, %v428
      %vm1326 = vsmask.f32 256
      %v1328 = vshrl.u32 %v1310, 16
      %v1330 = vrot.slane %v1328, 7
      %v1331 = vshll.u32 %v1310, 16
      %v1333 = vor.u32 %v1330, %v1331
      %v1335 = vshrl.u32 %v1311, 16
      %v1337 = vrot.slane %v1335, 7
      %v1338 = vshll.u32 %v1311, 16
      %v1340 = vor.u32 %v1337, %v1338
      %v1341 = vsel %vm1326, %v1330, %v1340
      %v1343 = vshrl.u32 %v1312, 16
      %v1345 = vrot.slane %v1343, 7
      %v1346 = vshll.u32 %v1312, 16
      %v1348 = vor.u32 %v1345, %v1346
      %v1349 = vsel %vm1326, %v1337, %v1348
      %v1351 = vshrl.u32 %v1313, 16
      %v1353 = vrot.slane %v1351, 7
      %v1354 = vshll.u32 %v1313, 16
      %v1356 = vor.u32 %v1353, %v1354
      %v1357 = vsel %vm1326, %v1345, %v1356
      %v1359 = vshrl.u32 %v1314, 16
      %v1361 = vrot.slane %v1359, 7
      %v1362 = vshll.u32 %v1314, 16
      %v1364 = vor.u32 %v1361, %v1362
      %v1365 = vsel %vm1326, %v1353, %v1364
      %v1367 = vshrl.u32 %v1315, 16
      %v1369 = vrot.slane %v1367, 7
      %v1370 = vshll.u32 %v1315, 16
      %v1372 = vor.u32 %v1369, %v1370
      %v1373 = vsel %vm1326, %v1361, %v1372
      %v1375 = vshrl.u32 %v1316, 16
      %v1377 = vrot.slane %v1375, 7
      %v1378 = vshll.u32 %v1316, 16
      %v1380 = vor.u32 %v1377, %v1378
      %v1381 = vsel %vm1326, %v1369, %v1380
      %v1383 = vshrl.u32 %v1317, 16
      %v1385 = vrot.slane %v1383, 7
      %v1386 = vshll.u32 %v1317, 16
      %v1388 = vor.u32 %v1385, %v1386
      %v1389 = vsel %vm1326, %v1377, %v1388
      %v1391 = vshrl.u32 %v1318, 16
      %v1393 = vrot.slane %v1391, 7
      %v1394 = vshll.u32 %v1318, 16
      %v1396 = vor.u32 %v1393, %v1394
      %v1397 = vsel %vm1326, %v1385, %v1396
      %v1399 = vshrl.u32 %v1319, 16
      %v1401 = vrot.slane %v1399, 7
      %v1402 = vshll.u32 %v1319, 16
      %v1404 = vor.u32 %v1401, %v1402
      %v1405 = vsel %vm1326, %v1393, %v1404
      %v1407 = vshrl.u32 %v1320, 16
      %v1409 = vrot.slane %v1407, 7
      %v1410 = vshll.u32 %v1320, 16
      %v1412 = vor.u32 %v1409, %v1410
      %v1413 = vsel %vm1326, %v1401, %v1412
      %v1415 = vshrl.u32 %v1321, 16
      %v1417 = vrot.slane %v1415, 7
      %v1418 = vshll.u32 %v1321, 16
      %v1420 = vor.u32 %v1417, %v1418
      %v1421 = vsel %vm1326, %v1409, %v1420
      %v1423 = vshrl.u32 %v1322, 16
      %v1425 = vrot.slane %v1423, 7
      %v1426 = vshll.u32 %v1322, 16
      %v1428 = vor.u32 %v1425, %v1426
      %v1429 = vsel %vm1326, %v1417, %v1428
      %v1431 = vshrl.u32 %v1323, 16
      %v1433 = vrot.slane %v1431, 7
      %v1434 = vshll.u32 %v1323, 16
      %v1436 = vor.u32 %v1433, %v1434
      %v1437 = vsel %vm1326, %v1425, %v1436
      %v1439 = vshrl.u32 %v1324, 16
      %v1441 = vrot.slane %v1439, 7
      %v1442 = vshll.u32 %v1324, 16
      %v1444 = vor.u32 %v1441, %v1442
      %v1445 = vsel %vm1326, %v1433, %v1444
      %vm1461 = vcmask 1040384
      %vm1462 = vmand %vm1461, %vm1326
      %v1463 = vsel %vm1462, 0, %v1333
      %vm1464 = vsmask.f32 7424
      %v1466 = vshll.u32 %v1070, 16
      %v1468 = vrot.slane %v1466, 1
      %v1469 = vshrl.u32 %v1070, 16
      %v1471 = vor.u32 %v1469, %v1468
      %v1473 = vshll.u32 %v1071, 16
      %v1475 = vrot.slane %v1473, 1
      %v1476 = vsel %vm1464, %v1471, %v1475
      %v1477 = vshrl.u32 %v1071, 16
      %v1479 = vor.u32 %v1477, %v1475
      %v1481 = vshll.u32 %v1072, 16
      %v1483 = vrot.slane %v1481, 1
      %v1484 = vsel %vm1464, %v1479, %v1483
      %v1485 = vshrl.u32 %v1072, 16
      %v1487 = vor.u32 %v1485, %v1483
      %v1489 = vshll.u32 %v1073, 16
      %v1491 = vrot.slane %v1489, 1
      %v1492 = vsel %vm1464, %v1487, %v1491
      %v1493 = vshrl.u32 %v1073, 16
      %v1495 = vor.u32 %v1493, %v1491
      %v1497 = vshll.u32 %v1074, 16
      %v1499 = vrot.slane %v1497, 1
      %v1500 = vsel %vm1464, %v1495, %v1499
      %v1501 = vshrl.u32 %v1074, 16
      %v1503 = vor.u32 %v1501, %v1499
      %v1505 = vshll.u32 %v1075, 16
      %v1507 = vrot.slane %v1505, 1
      %v1508 = vsel %vm1464, %v1503, %v1507
      %v1509 = vshrl.u32 %v1075, 16
      %v1511 = vor.u32 %v1509, %v1507
      %v1513 = vshll.u32 %v1076, 16
      %v1515 = vrot.slane %v1513, 1
      %v1516 = vsel %vm1464, %v1511, %v1515
      %v1517 = vshrl.u32 %v1076, 16
      %v1519 = vor.u32 %v1517, %v1515
      %v1521 = vshll.u32 %v1077, 16
      %v1523 = vrot.slane %v1521, 1
      %v1524 = vsel %vm1464, %v1519, %v1523
      %v1525 = vshrl.u32 %v1077, 16
      %v1527 = vor.u32 %v1525, %v1523
      %v1529 = vshll.u32 %v1078, 16
      %v1531 = vrot.slane %v1529, 1
      %v1532 = vsel %vm1464, %v1527, %v1531
      %v1533 = vshrl.u32 %v1078, 16
      %v1535 = vor.u32 %v1533, %v1531
      %v1537 = vshll.u32 %v1079, 16
      %v1539 = vrot.slane %v1537, 1
      %v1540 = vsel %vm1464, %v1535, %v1539
      %v1541 = vshrl.u32 %v1079, 16
      %v1543 = vor.u32 %v1541, %v1539
      %v1545 = vshll.u32 %v1080, 16
      %v1547 = vrot.slane %v1545, 1
      %v1548 = vsel %vm1464, %v1543, %v1547
      %v1549 = vshrl.u32 %v1080, 16
      %v1551 = vor.u32 %v1549, %v1547
      %v1553 = vshll.u32 %v1081, 16
      %v1555 = vrot.slane %v1553, 1
      %v1556 = vsel %vm1464, %v1551, %v1555
      %v1557 = vshrl.u32 %v1081, 16
      %v1559 = vor.u32 %v1557, %v1555
      %v1561 = vshll.u32 %v1082, 16
      %v1563 = vrot.slane %v1561, 1
      %v1564 = vsel %vm1464, %v1559, %v1563
      %v1565 = vshrl.u32 %v1082, 16
      %v1567 = vor.u32 %v1565, %v1563
      %v1569 = vshll.u32 %v1083, 16
      %v1571 = vrot.slane %v1569, 1
      %v1572 = vsel %vm1464, %v1567, %v1571
      %v1573 = vshrl.u32 %v1083, 16
      %v1575 = vor.u32 %v1573, %v1571
      %v1577 = vshll.u32 %v1084, 16
      %v1579 = vrot.slane %v1577, 1
      %v1580 = vsel %vm1464, %v1575, %v1579
      %v1581 = vshrl.u32 %v1084, 16
      %v1583 = vor.u32 %v1581, %v1579
      %v1585 = vshll.u32 %v1085, 16
      %v1587 = vrot.slane %v1585, 1
      %v1588 = vsel %vm1464, %v1583, %v1587
      %vm1605 = vcmask 1047552
      %vm1606 = vmand %vm1605, %vm1464
      %v1607 = vsel %vm1606, 0, %v1468
      %v1608 = vld [vmem:[%s3] sm:$0xf]
      %v1609 = vld [vmem:[%s3 + $0x4] sm:$0xf]
      %v1610 = vld [vmem:[%s3 + $0x8] sm:$0xf]
      %v1611 = vld [vmem:[%s3 + $0xc] sm:$0xf]
      %v1612 = vld [vmem:[%s3 + $0x10] sm:$0xf]
      %v1613 = vld [vmem:[%s3 + $0x14] sm:$0xf]
      %v1614 = vld [vmem:[%s3 + $0x18] sm:$0xf]
      %v1615 = vld [vmem:[%s3 + $0x1c] sm:$0xf]
      %v1616 = vld [vmem:[%s3 + $0x20] sm:$0xf]
      %v1617 = vld [vmem:[%s3 + $0x24] sm:$0xf]
      %v1618 = vld [vmem:[%s3 + $0x28] sm:$0xf]
      %v1619 = vld [vmem:[%s3 + $0x2c] sm:$0xf]
      %v1620 = vld [vmem:[%s3 + $0x30] sm:$0xf]
      %v1621 = vld [vmem:[%s3 + $0x34] sm:$0xf]
      %v1622 = vld [vmem:[%s3 + $0x38] sm:$0xf]
      %v1623 = vld [vmem:[%s3 + $0x3c] sm:$0xf]
      %v1624 = vld [vmem:[%s3 + $0x40] sm:$0xf]
      %v1625 = vld [vmem:[%s3 + $0x44] sm:$0xf]
      %v1626 = vld [vmem:[%s3 + $0x48] sm:$0xf]
      %v1627 = vld [vmem:[%s3 + $0x4c] sm:$0xf]
      %v1628 = vld [vmem:[%s3 + $0x50] sm:$0xf]
      %v1629 = vld [vmem:[%s3 + $0x54] sm:$0xf]
      %v1630 = vld [vmem:[%s3 + $0x58] sm:$0xf]
      %v1631 = vld [vmem:[%s3 + $0x5c] sm:$0xf]
      %v1632 = vld [vmem:[%s3 + $0x60] sm:$0xf]
      %v1633 = vld [vmem:[%s3 + $0x64] sm:$0xf]
      %v1634 = vld [vmem:[%s3 + $0x68] sm:$0xf]
      %v1635 = vld [vmem:[%s3 + $0x6c] sm:$0xf]
      %v1636 = vld [vmem:[%s3 + $0x70] sm:$0xf]
      %v1637 = vld [vmem:[%s3 + $0x74] sm:$0xf]
      %v1638 = vld [vmem:[%s3 + $0x78] sm:$0xf]
      %v1639 = vld [vmem:[%s3 + $0x7c] sm:$0xf]
      %v1640 = vld [vmem:[%s3 + $0x80] sm:$0xf]
      %v1641 = vld [vmem:[%s3 + $0x84] sm:$0xf]
      %v1642 = vld [vmem:[%s3 + $0x88] sm:$0xf]
      %v1643 = vld [vmem:[%s3 + $0x8c] sm:$0xf]
      %v1644 = vld [vmem:[%s3 + $0x90] sm:$0xf]
      %v1645 = vld [vmem:[%s3 + $0x94] sm:$0xf]
      %v1646 = vld [vmem:[%s3 + $0x98] sm:$0xf]
      %v1647 = vld [vmem:[%s3 + $0x9c] sm:$0xf]
      %v1648 = vld [vmem:[%s3 + $0xa0] sm:$0xf]
      %v1649 = vld [vmem:[%s3 + $0xa4] sm:$0xf]
      %v1650 = vld [vmem:[%s3 + $0xa8] sm:$0xf]
      %v1651 = vld [vmem:[%s3 + $0xac] sm:$0xf]
      %v1652 = vld [vmem:[%s3 + $0xb0] sm:$0xf]
      %v1653 = vld [vmem:[%s3 + $0xb4] sm:$0xf]
      %v1654 = vld [vmem:[%s3 + $0xb8] sm:$0xf]
      %v1655 = vld [vmem:[%s3 + $0xbc] sm:$0xf]
      %v1657 = vshrl.u32 %v1325, 16
      %v1659 = vrot.slane %v1657, 7
      %v1660 = vshll.u32 %v1325, 16
      %v1662 = vor.u32 %v1659, %v1660
      %v1663 = vsel %vm1326, %v1441, %v1662
      %v1665 = vshrl.u32 %v1085, 16
      %v1667 = vor.u32 %v1665, %v1587
      %v1669 = vsel %vm1606, %v1667, 0
      %s1670 = scalar_lea.vmem %s3, 192
      %v1671 = vld [vmem:[%s1670] sm:$0xf]
      %v1672 = vld [vmem:[%s1670 + $0x4] sm:$0xf]
      %v1673 = vld [vmem:[%s1670 + $0x8] sm:$0xf]
      %v1674 = vld [vmem:[%s1670 + $0xc] sm:$0xf]
      %v1675 = vld [vmem:[%s1670 + $0x10] sm:$0xf]
      %v1676 = vld [vmem:[%s1670 + $0x14] sm:$0xf]
      %v1677 = vld [vmem:[%s1670 + $0x18] sm:$0xf]
      %v1678 = vld [vmem:[%s1670 + $0x1c] sm:$0xf]
      %v1679 = vld [vmem:[%s1670 + $0x20] sm:$0xf]
      %v1680 = vld [vmem:[%s1670 + $0x24] sm:$0xf]
      %v1681 = vld [vmem:[%s1670 + $0x28] sm:$0xf]
      %v1682 = vld [vmem:[%s1670 + $0x2c] sm:$0xf]
      %v1683 = vld [vmem:[%s1670 + $0x30] sm:$0xf]
      %v1684 = vld [vmem:[%s1670 + $0x34] sm:$0xf]
      %v1685 = vld [vmem:[%s1670 + $0x38] sm:$0xf]
      %v1686 = vld [vmem:[%s1670 + $0x3c] sm:$0xf]
      %v1687 = vld [vmem:[%s1670 + $0x40] sm:$0xf]
      %v1688 = vld [vmem:[%s1670 + $0x44] sm:$0xf]
      %v1689 = vld [vmem:[%s1670 + $0x48] sm:$0xf]
      %v1690 = vld [vmem:[%s1670 + $0x4c] sm:$0xf]
      %v1691 = vld [vmem:[%s1670 + $0x50] sm:$0xf]
      %v1692 = vld [vmem:[%s1670 + $0x54] sm:$0xf]
      %v1693 = vld [vmem:[%s1670 + $0x58] sm:$0xf]
      %v1694 = vld [vmem:[%s1670 + $0x5c] sm:$0xf]
      %v1695 = vld [vmem:[%s1670 + $0x60] sm:$0xf]
      %v1696 = vld [vmem:[%s1670 + $0x64] sm:$0xf]
      %v1697 = vld [vmem:[%s1670 + $0x68] sm:$0xf]
      %v1698 = vld [vmem:[%s1670 + $0x6c] sm:$0xf]
      %v1699 = vld [vmem:[%s1670 + $0x70] sm:$0xf]
      %v1700 = vld [vmem:[%s1670 + $0x74] sm:$0xf]
      %v1701 = vld [vmem:[%s1670 + $0x78] sm:$0xf]
      %v1702 = vld [vmem:[%s1670 + $0x7c] sm:$0xf]
      %v1703 = vld [vmem:[%s1670 + $0x80] sm:$0xf]
      %v1704 = vld [vmem:[%s1670 + $0x84] sm:$0xf]
      %v1705 = vld [vmem:[%s1670 + $0x88] sm:$0xf]
      %v1706 = vld [vmem:[%s1670 + $0x8c] sm:$0xf]
      %v1707 = vld [vmem:[%s1670 + $0x90] sm:$0xf]
      %v1708 = vld [vmem:[%s1670 + $0x94] sm:$0xf]
      %v1709 = vld [vmem:[%s1670 + $0x98] sm:$0xf]
      %v1710 = vld [vmem:[%s1670 + $0x9c] sm:$0xf]
      %v1711 = vld [vmem:[%s1670 + $0xa0] sm:$0xf]
      %v1712 = vld [vmem:[%s1670 + $0xa4] sm:$0xf]
      %v1713 = vld [vmem:[%s1670 + $0xa8] sm:$0xf]
      %v1714 = vld [vmem:[%s1670 + $0xac] sm:$0xf]
      %v1715 = vld [vmem:[%s1670 + $0xb0] sm:$0xf]
      %v1716 = vld [vmem:[%s1670 + $0xb4] sm:$0xf]
      %v1717 = vld [vmem:[%s1670 + $0xb8] sm:$0xf]
      %v1718 = vld [vmem:[%s1670 + $0xbc] sm:$0xf]
      %v1767 = vunpack.c.l.b16 %v1671
      %v1768 = vunpack.c.l.b16 %v1672
      %v1769 = vunpack.c.l.b16 %v1673
      %v1770 = vunpack.c.l.b16 %v1674
      %v1771 = vunpack.c.l.b16 %v1675
      %v1772 = vunpack.c.l.b16 %v1676
      %v1773 = vunpack.c.l.b16 %v1677
      %v1774 = vunpack.c.l.b16 %v1678
      %v1775 = vunpack.c.l.b16 %v1679
      %v1776 = vunpack.c.l.b16 %v1680
      %v1777 = vunpack.c.l.b16 %v1681
      %v1778 = vunpack.c.l.b16 %v1682
      %v1779 = vunpack.c.l.b16 %v1683
      %v1780 = vunpack.c.l.b16 %v1684
      %v1781 = vunpack.c.l.b16 %v1685
      %v1782 = vunpack.c.l.b16 %v1686
      %v1783 = vunpack.c.l.b16 %v1687
      %v1784 = vunpack.c.l.b16 %v1688
      %v1785 = vunpack.c.l.b16 %v1689
      %v1786 = vunpack.c.l.b16 %v1690
      %v1787 = vunpack.c.l.b16 %v1691
      %v1788 = vunpack.c.l.b16 %v1692
      %v1789 = vunpack.c.l.b16 %v1693
      %v1790 = vunpack.c.l.b16 %v1694
      %v1791 = vunpack.c.l.b16 %v1695
      %v1792 = vunpack.c.l.b16 %v1696
      %v1793 = vunpack.c.l.b16 %v1697
      %v1794 = vunpack.c.l.b16 %v1698
      %v1795 = vunpack.c.l.b16 %v1699
      %v1796 = vunpack.c.l.b16 %v1700
      %v1797 = vunpack.c.l.b16 %v1701
      %v1798 = vunpack.c.l.b16 %v1702
      %v1799 = vunpack.c.l.b16 %v1703
      %v1800 = vunpack.c.l.b16 %v1704
      %v1801 = vunpack.c.l.b16 %v1705
      %v1802 = vunpack.c.l.b16 %v1706
      %v1803 = vunpack.c.l.b16 %v1707
      %v1804 = vunpack.c.l.b16 %v1708
      %v1805 = vunpack.c.l.b16 %v1709
      %v1806 = vunpack.c.l.b16 %v1710
      %v1807 = vunpack.c.l.b16 %v1711
      %v1808 = vunpack.c.l.b16 %v1712
      %v1809 = vunpack.c.l.b16 %v1713
      %v1810 = vunpack.c.l.b16 %v1714
      %v1811 = vunpack.c.l.b16 %v1715
      %v1812 = vunpack.c.l.b16 %v1716
      %v1813 = vunpack.c.l.b16 %v1717
      %v1814 = vunpack.c.l.b16 %v1718
      %v1815 = vpack.c.b16 %v1768, %v1767
      %v1816 = vpack.c.b16 %v1770, %v1769
      %v1817 = vpack.c.b16 %v1772, %v1771
      %v1818 = vpack.c.b16 %v1774, %v1773
      %v1819 = vpack.c.b16 %v1776, %v1775
      %v1820 = vpack.c.b16 %v1778, %v1777
      %v1821 = vpack.c.b16 %v1780, %v1779
      %v1822 = vpack.c.b16 %v1782, %v1781
      %v1823 = vpack.c.b16 %v1784, %v1783
      %v1824 = vpack.c.b16 %v1786, %v1785
      %v1825 = vpack.c.b16 %v1788, %v1787
      %v1826 = vpack.c.b16 %v1790, %v1789
      %v1827 = vpack.c.b16 %v1792, %v1791
      %v1828 = vpack.c.b16 %v1794, %v1793
      %v1829 = vpack.c.b16 %v1796, %v1795
      %v1830 = vpack.c.b16 %v1798, %v1797
      %v1831 = vpack.c.b16 %v1800, %v1799
      %v1832 = vpack.c.b16 %v1802, %v1801
      %v1833 = vpack.c.b16 %v1804, %v1803
      %v1834 = vpack.c.b16 %v1806, %v1805
      %v1835 = vpack.c.b16 %v1808, %v1807
      %v1836 = vpack.c.b16 %v1810, %v1809
      %v1837 = vpack.c.b16 %v1812, %v1811
      %v1838 = vpack.c.b16 %v1814, %v1813
      %1863 = vmatprep.subr.bf16.mxu0 0
      %1864 = vmatpush1.bf16.msra.mxu0 %v1822
      %1865 = vmatprep.subr.bf16.mxu0 0
      %1866 = vmatpush1.bf16.msra.mxu0 %v1821
      %1867 = vmatprep.subr.bf16.mxu0 0
      %1868 = vmatpush1.bf16.msra.mxu0 %v1820
      %1869 = vmatprep.subr.bf16.mxu0 0
      %1870 = vmatpush1.bf16.msra.mxu0 %v1819
      %1871 = vmatprep.subr.bf16.mxu0 0
      %1872 = vmatpush1.bf16.msra.mxu0 %v1818
      %1873 = vmatprep.subr.bf16.mxu0 0
      %1874 = vmatpush1.bf16.msra.mxu0 %v1817
      %1875 = vmatprep.subr.bf16.mxu0 0
      %1876 = vmatpush1.bf16.msra.mxu0 %v1816
      %1877 = vmatprep.subr.bf16.mxu0 0
      %1878 = vmatpush1.bf16.msra.mxu0 %v1815
      %1879 = vmatprep.subr.bf16.mxu0 0
      %1880 = vmatpush2.bf16.msra.mxu0 %v1830
      %1881 = vmatprep.subr.bf16.mxu0 0
      %1882 = vmatpush2.bf16.msra.mxu0 %v1829
      %1883 = vmatprep.subr.bf16.mxu0 0
      %1884 = vmatpush2.bf16.msra.mxu0 %v1828
      %1885 = vmatprep.subr.bf16.mxu0 0
      %1886 = vmatpush2.bf16.msra.mxu0 %v1827
      %1887 = vmatprep.subr.bf16.mxu0 0
      %1888 = vmatpush2.bf16.msra.mxu0 %v1826
      %1889 = vmatprep.subr.bf16.mxu0 0
      %1890 = vmatpush2.bf16.msra.mxu0 %v1825
      %1891 = vmatprep.subr.bf16.mxu0 0
      %1892 = vmatpush2.bf16.msra.mxu0 %v1824
      %1893 = vmatprep.subr.bf16.mxu0 0
      %1894 = vmatpush2.bf16.msra.mxu0 %v1823
      %1895 = vmatprep.mubr.bf16.mxu0 %v413
      %1896 = vmatmul.mubr.bf16.gmra.mxu0 %v1463
      %v1897 = vpop.f32.mrf.mxu0
      %v1898 = vadd.f32 0.0, %v1897
      %v1899 = vpop.f32.mrf.mxu0
      %v1900 = vpop.f32.mrf.mxu0
      %v1901 = vadd.f32 0.0, %v1900
      %v1902 = vpop.f32.mrf.mxu0
      %1903 = vmatprep.mubr.bf16.mxu0 %v414
      %1904 = vmatmul.mubr.bf16.gmra.mxu0 %v1341
      %v1905 = vpop.f32.mrf.mxu0
      %v1906 = vadd.f32 0.0, %v1905
      %v1907 = vpop.f32.mrf.mxu0
      %v1908 = vpop.f32.mrf.mxu0
      %v1909 = vadd.f32 0.0, %v1908
      %v1910 = vpop.f32.mrf.mxu0
      %1911 = vmatprep.mubr.bf16.mxu0 %v415
      %1912 = vmatmul.mubr.bf16.gmra.mxu0 %v1349
      %v1913 = vpop.f32.mrf.mxu0
      %v1914 = vadd.f32 0.0, %v1913
      %v1915 = vpop.f32.mrf.mxu0
      %v1916 = vpop.f32.mrf.mxu0
      %v1917 = vadd.f32 0.0, %v1916
      %v1918 = vpop.f32.mrf.mxu0
      %1919 = vmatprep.mubr.bf16.mxu0 %v416
      %1920 = vmatmul.mubr.bf16.gmra.mxu0 %v1357
      %v1921 = vpop.f32.mrf.mxu0
      %v1922 = vadd.f32 0.0, %v1921
      %v1923 = vpop.f32.mrf.mxu0
      %v1924 = vpop.f32.mrf.mxu0
      %v1925 = vadd.f32 0.0, %v1924
      %v1926 = vpop.f32.mrf.mxu0
      %1927 = vmatprep.mubr.bf16.mxu0 %v417
      %1928 = vmatmul.mubr.bf16.gmra.mxu0 %v1365
      %v1929 = vpop.f32.mrf.mxu0
      %v1930 = vadd.f32 0.0, %v1929
      %v1931 = vpop.f32.mrf.mxu0
      %v1932 = vpop.f32.mrf.mxu0
      %v1933 = vadd.f32 0.0, %v1932
      %v1934 = vpop.f32.mrf.mxu0
      %1935 = vmatprep.mubr.bf16.mxu0 %v418
      %1936 = vmatmul.mubr.bf16.gmra.mxu0 %v1373
      %v1937 = vpop.f32.mrf.mxu0
      %v1938 = vadd.f32 0.0, %v1937
      %v1939 = vpop.f32.mrf.mxu0
      %v1940 = vpop.f32.mrf.mxu0
      %v1941 = vadd.f32 0.0, %v1940
      %v1942 = vpop.f32.mrf.mxu0
      %1943 = vmatprep.mubr.bf16.mxu0 %v419
      %1944 = vmatmul.mubr.bf16.gmra.mxu0 %v1381
      %v1945 = vpop.f32.mrf.mxu0
      %v1946 = vadd.f32 0.0, %v1945
      %v1947 = vpop.f32.mrf.mxu0
      %v1948 = vpop.f32.mrf.mxu0
      %v1949 = vadd.f32 0.0, %v1948
      %v1950 = vpop.f32.mrf.mxu0
      %1951 = vmatprep.mubr.bf16.mxu0 %v420
      %1952 = vmatmul.mubr.bf16.gmra.mxu0 %v1389
      %v1953 = vpop.f32.mrf.mxu0
      %v1954 = vadd.f32 0.0, %v1953
      %v1955 = vpop.f32.mrf.mxu0
      %v1956 = vpop.f32.mrf.mxu0
      %v1957 = vadd.f32 0.0, %v1956
      %v1958 = vpop.f32.mrf.mxu0
      %1959 = vmatprep.mubr.bf16.mxu0 %v421
      %1960 = vmatmul.mubr.bf16.gmra.mxu0 %v1397
      %v1961 = vpop.f32.mrf.mxu0
      %v1962 = vadd.f32 0.0, %v1961
      %v1963 = vpop.f32.mrf.mxu0
      %v1964 = vpop.f32.mrf.mxu0
      %v1965 = vadd.f32 0.0, %v1964
      %v1966 = vpop.f32.mrf.mxu0
      %1967 = vmatprep.mubr.bf16.mxu0 %v422
      %1968 = vmatmul.mubr.bf16.gmra.mxu0 %v1405
      %v1969 = vpop.f32.mrf.mxu0
      %v1970 = vadd.f32 0.0, %v1969
      %v1971 = vpop.f32.mrf.mxu0
      %v1972 = vpop.f32.mrf.mxu0
      %v1973 = vadd.f32 0.0, %v1972
      %v1974 = vpop.f32.mrf.mxu0
      %1975 = vmatprep.mubr.bf16.mxu0 %v423
      %1976 = vmatmul.mubr.bf16.gmra.mxu0 %v1413
      %v1977 = vpop.f32.mrf.mxu0
      %v1978 = vadd.f32 0.0, %v1977
      %v1979 = vpop.f32.mrf.mxu0
      %v1980 = vpop.f32.mrf.mxu0
      %v1981 = vadd.f32 0.0, %v1980
      %v1982 = vpop.f32.mrf.mxu0
      %1983 = vmatprep.mubr.bf16.mxu0 %v424
      %1984 = vmatmul.mubr.bf16.gmra.mxu0 %v1421
      %v1985 = vpop.f32.mrf.mxu0
      %v1986 = vadd.f32 0.0, %v1985
      %v1987 = vpop.f32.mrf.mxu0
      %v1988 = vpop.f32.mrf.mxu0
      %v1989 = vadd.f32 0.0, %v1988
      %v1990 = vpop.f32.mrf.mxu0
      %1991 = vmatprep.mubr.bf16.mxu0 %v425
      %1992 = vmatmul.mubr.bf16.gmra.mxu0 %v1429
      %v1993 = vpop.f32.mrf.mxu0
      %v1994 = vadd.f32 0.0, %v1993
      %v1995 = vpop.f32.mrf.mxu0
      %v1996 = vpop.f32.mrf.mxu0
      %v1997 = vadd.f32 0.0, %v1996
      %v1998 = vpop.f32.mrf.mxu0
      %1999 = vmatprep.mubr.bf16.mxu0 %v426
      %2000 = vmatmul.mubr.bf16.gmra.mxu0 %v1437
      %v2001 = vpop.f32.mrf.mxu0
      %v2002 = vadd.f32 0.0, %v2001
      %v2003 = vpop.f32.mrf.mxu0
      %v2004 = vpop.f32.mrf.mxu0
      %v2005 = vadd.f32 0.0, %v2004
      %v2006 = vpop.f32.mrf.mxu0
      %2007 = vmatprep.mubr.bf16.mxu0 %v427
      %2008 = vmatmul.mubr.bf16.gmra.mxu0 %v1445
      %v2009 = vpop.f32.mrf.mxu0
      %v2010 = vadd.f32 0.0, %v2009
      %v2011 = vpop.f32.mrf.mxu0
      %v2012 = vpop.f32.mrf.mxu0
      %v2013 = vadd.f32 0.0, %v2012
      %v2014 = vpop.f32.mrf.mxu0
      %2015 = vmatprep.mubr.bf16.mxu0 %v428
      %2016 = vmatmul.mubr.bf16.gmra.mxu0 %v1663
      %v2017 = vpop.f32.mrf.mxu0
      %v2018 = vadd.f32 0.0, %v2017
      %v2019 = vpop.f32.mrf.mxu0
      %v2020 = vpop.f32.mrf.mxu0
      %v2021 = vadd.f32 0.0, %v2020
      %v2022 = vpop.f32.mrf.mxu0
      %2023 = vdwg.mxu0
      %2024 = vmatprep.subr.bf16.mxu0 0
      %2025 = vmatpush1.bf16.msra.mxu0 %v1838
      %2026 = vmatprep.subr.bf16.mxu0 0
      %2027 = vmatpush1.bf16.msra.mxu0 %v1837
      %2028 = vmatprep.subr.bf16.mxu0 0
      %2029 = vmatpush1.bf16.msra.mxu0 %v1836
      %2030 = vmatprep.subr.bf16.mxu0 0
      %2031 = vmatpush1.bf16.msra.mxu0 %v1835
      %2032 = vmatprep.subr.bf16.mxu0 0
      %2033 = vmatpush1.bf16.msra.mxu0 %v1834
      %2034 = vmatprep.subr.bf16.mxu0 0
      %2035 = vmatpush1.bf16.msra.mxu0 %v1833
      %2036 = vmatprep.subr.bf16.mxu0 0
      %2037 = vmatpush1.bf16.msra.mxu0 %v1832
      %2038 = vmatprep.subr.bf16.mxu0 0
      %2039 = vmatpush1.bf16.msra.mxu0 %v1831
      %2040 = vmatprep.subr.bf16.mxu0 0
      %2041 = vmatpush2.bf16.msra.mxu0 0
      %2042 = vmatprep.subr.bf16.mxu0 0
      %2043 = vmatpush2.bf16.msra.mxu0 0
      %2044 = vmatprep.subr.bf16.mxu0 0
      %2045 = vmatpush2.bf16.msra.mxu0 0
      %2046 = vmatprep.subr.bf16.mxu0 0
      %2047 = vmatpush2.bf16.msra.mxu0 0
      %2048 = vmatprep.subr.bf16.mxu0 0
      %2049 = vmatpush2.bf16.msra.mxu0 0
      %2050 = vmatprep.subr.bf16.mxu0 0
      %2051 = vmatpush2.bf16.msra.mxu0 0
      %2052 = vmatprep.subr.bf16.mxu0 0
      %2053 = vmatpush2.bf16.msra.mxu0 0
      %2054 = vmatprep.subr.bf16.mxu0 0
      %2055 = vmatpush2.bf16.msra.mxu0 0
      %2056 = vmatprep.mubr.bf16.mxu0 0
      %2057 = vmatmul.mubr.bf16.gmra.mxu0 %v1476
      %v2058 = vpop.f32.mrf.mxu0
      %v2059 = vadd.f32 %v1898, %v2058
      %v2060 = vpop.f32.mrf.mxu0
      %v2061 = vpop.f32.mrf.mxu0
      %v2062 = vadd.f32 %v1901, %v2061
      %v2063 = vpop.f32.mrf.mxu0
      %2064 = vmatprep.mubr.bf16.mxu0 0
      %2065 = vmatmul.mubr.bf16.gmra.mxu0 %v1484
      %v2066 = vpop.f32.mrf.mxu0
      %v2067 = vadd.f32 %v1906, %v2066
      %v2068 = vpop.f32.mrf.mxu0
      %v2069 = vpop.f32.mrf.mxu0
      %v2070 = vadd.f32 %v1909, %v2069
      %v2071 = vpop.f32.mrf.mxu0
      %2072 = vmatprep.mubr.bf16.mxu0 0
      %2073 = vmatmul.mubr.bf16.gmra.mxu0 %v1492
      %v2074 = vpop.f32.mrf.mxu0
      %v2075 = vadd.f32 %v1914, %v2074
      %v2076 = vpop.f32.mrf.mxu0
      %v2077 = vpop.f32.mrf.mxu0
      %v2078 = vadd.f32 %v1917, %v2077
      %v2079 = vpop.f32.mrf.mxu0
      %2080 = vmatprep.mubr.bf16.mxu0 0
      %2081 = vmatmul.mubr.bf16.gmra.mxu0 %v1500
      %v2082 = vpop.f32.mrf.mxu0
      %v2083 = vadd.f32 %v1922, %v2082
      %v2084 = vpop.f32.mrf.mxu0
      %v2085 = vpop.f32.mrf.mxu0
      %v2086 = vadd.f32 %v1925, %v2085
      %v2087 = vpop.f32.mrf.mxu0
      %2088 = vmatprep.mubr.bf16.mxu0 0
      %2089 = vmatmul.mubr.bf16.gmra.mxu0 %v1508
      %v2090 = vpop.f32.mrf.mxu0
      %v2091 = vadd.f32 %v1930, %v2090
      %v2092 = vpop.f32.mrf.mxu0
      %v2093 = vpop.f32.mrf.mxu0
      %v2094 = vadd.f32 %v1933, %v2093
      %v2095 = vpop.f32.mrf.mxu0
      %2096 = vmatprep.mubr.bf16.mxu0 0
      %2097 = vmatmul.mubr.bf16.gmra.mxu0 %v1516
      %v2098 = vpop.f32.mrf.mxu0
      %v2099 = vadd.f32 %v1938, %v2098
      %v2100 = vpop.f32.mrf.mxu0
      %v2101 = vpop.f32.mrf.mxu0
      %v2102 = vadd.f32 %v1941, %v2101
      %v2103 = vpop.f32.mrf.mxu0
      %2104 = vmatprep.mubr.bf16.mxu0 0
      %2105 = vmatmul.mubr.bf16.gmra.mxu0 %v1524
      %v2106 = vpop.f32.mrf.mxu0
      %v2107 = vadd.f32 %v1946, %v2106
      %v2108 = vpop.f32.mrf.mxu0
      %v2109 = vpop.f32.mrf.mxu0
      %v2110 = vadd.f32 %v1949, %v2109
      %v2111 = vpop.f32.mrf.mxu0
      %2112 = vmatprep.mubr.bf16.mxu0 0
      %2113 = vmatmul.mubr.bf16.gmra.mxu0 %v1532
      %v2114 = vpop.f32.mrf.mxu0
      %v2115 = vadd.f32 %v1954, %v2114
      %v2116 = vpop.f32.mrf.mxu0
      %v2117 = vpop.f32.mrf.mxu0
      %v2118 = vadd.f32 %v1957, %v2117
      %v2119 = vpop.f32.mrf.mxu0
      %2120 = vmatprep.mubr.bf16.mxu0 0
      %2121 = vmatmul.mubr.bf16.gmra.mxu0 %v1540
      %v2122 = vpop.f32.mrf.mxu0
      %v2123 = vadd.f32 %v1962, %v2122
      %v2124 = vpop.f32.mrf.mxu0
      %v2125 = vpop.f32.mrf.mxu0
      %v2126 = vadd.f32 %v1965, %v2125
      %v2127 = vpop.f32.mrf.mxu0
      %2128 = vmatprep.mubr.bf16.mxu0 0
      %2129 = vmatmul.mubr.bf16.gmra.mxu0 %v1548
      %v2130 = vpop.f32.mrf.mxu0
      %v2131 = vadd.f32 %v1970, %v2130
      %v2132 = vpop.f32.mrf.mxu0
      %v2133 = vpop.f32.mrf.mxu0
      %v2134 = vadd.f32 %v1973, %v2133
      %v2135 = vpop.f32.mrf.mxu0
      %2136 = vmatprep.mubr.bf16.mxu0 0
      %2137 = vmatmul.mubr.bf16.gmra.mxu0 %v1556
      %v2138 = vpop.f32.mrf.mxu0
      %v2139 = vadd.f32 %v1978, %v2138
      %v2140 = vpop.f32.mrf.mxu0
      %v2141 = vpop.f32.mrf.mxu0
      %v2142 = vadd.f32 %v1981, %v2141
      %v2143 = vpop.f32.mrf.mxu0
      %2144 = vmatprep.mubr.bf16.mxu0 0
      %2145 = vmatmul.mubr.bf16.gmra.mxu0 %v1564
      %v2146 = vpop.f32.mrf.mxu0
      %v2147 = vadd.f32 %v1986, %v2146
      %v2148 = vpop.f32.mrf.mxu0
      %v2149 = vpop.f32.mrf.mxu0
      %v2150 = vadd.f32 %v1989, %v2149
      %v2151 = vpop.f32.mrf.mxu0
      %2152 = vmatprep.mubr.bf16.mxu0 0
      %2153 = vmatmul.mubr.bf16.gmra.mxu0 %v1572
      %v2154 = vpop.f32.mrf.mxu0
      %v2155 = vadd.f32 %v1994, %v2154
      %v2156 = vpop.f32.mrf.mxu0
      %v2157 = vpop.f32.mrf.mxu0
      %v2158 = vadd.f32 %v1997, %v2157
      %v2159 = vpop.f32.mrf.mxu0
      %2160 = vmatprep.mubr.bf16.mxu0 0
      %2161 = vmatmul.mubr.bf16.gmra.mxu0 %v1580
      %v2162 = vpop.f32.mrf.mxu0
      %v2163 = vadd.f32 %v2002, %v2162
      %v2164 = vpop.f32.mrf.mxu0
      %v2165 = vpop.f32.mrf.mxu0
      %v2166 = vadd.f32 %v2005, %v2165
      %v2167 = vpop.f32.mrf.mxu0
      %2168 = vmatprep.mubr.bf16.mxu0 0
      %2169 = vmatmul.mubr.bf16.gmra.mxu0 %v1588
      %v2170 = vpop.f32.mrf.mxu0
      %v2171 = vadd.f32 %v2010, %v2170
      %v2172 = vpop.f32.mrf.mxu0
      %v2173 = vpop.f32.mrf.mxu0
      %v2174 = vadd.f32 %v2013, %v2173
      %v2175 = vpop.f32.mrf.mxu0
      %2176 = vmatprep.mubr.bf16.mxu0 0
      %2177 = vmatmul.mubr.bf16.gmra.mxu0 %v1669
      %v2178 = vpop.f32.mrf.mxu0
      %v2179 = vadd.f32 %v2018, %v2178
      %v2180 = vpop.f32.mrf.mxu0
      %v2181 = vpop.f32.mrf.mxu0
      %v2182 = vadd.f32 %v2021, %v2181
      %v2183 = vpop.f32.mrf.mxu0
      %2184 = vdwg.mxu0
      %v2233 = vunpack.c.l.b16 %v1608
      %v2234 = vunpack.c.l.b16 %v1609
      %v2235 = vunpack.c.l.b16 %v1610
      %v2236 = vunpack.c.l.b16 %v1611
      %v2237 = vunpack.c.l.b16 %v1612
      %v2238 = vunpack.c.l.b16 %v1613
      %v2239 = vunpack.c.l.b16 %v1614
      %v2240 = vunpack.c.l.b16 %v1615
      %v2241 = vunpack.c.l.b16 %v1616
      %v2242 = vunpack.c.l.b16 %v1617
      %v2243 = vunpack.c.l.b16 %v1618
      %v2244 = vunpack.c.l.b16 %v1619
      %v2245 = vunpack.c.l.b16 %v1620
      %v2246 = vunpack.c.l.b16 %v1621
      %v2247 = vunpack.c.l.b16 %v1622
      %v2248 = vunpack.c.l.b16 %v1623
      %v2249 = vunpack.c.l.b16 %v1624
      %v2250 = vunpack.c.l.b16 %v1625
      %v2251 = vunpack.c.l.b16 %v1626
      %v2252 = vunpack.c.l.b16 %v1627
      %v2253 = vunpack.c.l.b16 %v1628
      %v2254 = vunpack.c.l.b16 %v1629
      %v2255 = vunpack.c.l.b16 %v1630
      %v2256 = vunpack.c.l.b16 %v1631
      %v2257 = vunpack.c.l.b16 %v1632
      %v2258 = vunpack.c.l.b16 %v1633
      %v2259 = vunpack.c.l.b16 %v1634
      %v2260 = vunpack.c.l.b16 %v1635
      %v2261 = vunpack.c.l.b16 %v1636
      %v2262 = vunpack.c.l.b16 %v1637
      %v2263 = vunpack.c.l.b16 %v1638
      %v2264 = vunpack.c.l.b16 %v1639
      %v2265 = vunpack.c.l.b16 %v1640
      %v2266 = vunpack.c.l.b16 %v1641
      %v2267 = vunpack.c.l.b16 %v1642
      %v2268 = vunpack.c.l.b16 %v1643
      %v2269 = vunpack.c.l.b16 %v1644
      %v2270 = vunpack.c.l.b16 %v1645
      %v2271 = vunpack.c.l.b16 %v1646
      %v2272 = vunpack.c.l.b16 %v1647
      %v2273 = vunpack.c.l.b16 %v1648
      %v2274 = vunpack.c.l.b16 %v1649
      %v2275 = vunpack.c.l.b16 %v1650
      %v2276 = vunpack.c.l.b16 %v1651
      %v2277 = vunpack.c.l.b16 %v1652
      %v2278 = vunpack.c.l.b16 %v1653
      %v2279 = vunpack.c.l.b16 %v1654
      %v2280 = vunpack.c.l.b16 %v1655
      %v2281 = vpack.c.b16 %v2234, %v2233
      %v2282 = vpack.c.b16 %v2236, %v2235
      %v2283 = vpack.c.b16 %v2238, %v2237
      %v2284 = vpack.c.b16 %v2240, %v2239
      %v2285 = vpack.c.b16 %v2242, %v2241
      %v2286 = vpack.c.b16 %v2244, %v2243
      %v2287 = vpack.c.b16 %v2246, %v2245
      %v2288 = vpack.c.b16 %v2248, %v2247
      %v2289 = vpack.c.b16 %v2250, %v2249
      %v2290 = vpack.c.b16 %v2252, %v2251
      %v2291 = vpack.c.b16 %v2254, %v2253
      %v2292 = vpack.c.b16 %v2256, %v2255
      %v2293 = vpack.c.b16 %v2258, %v2257
      %v2294 = vpack.c.b16 %v2260, %v2259
      %v2295 = vpack.c.b16 %v2262, %v2261
      %v2296 = vpack.c.b16 %v2264, %v2263
      %v2297 = vpack.c.b16 %v2266, %v2265
      %v2298 = vpack.c.b16 %v2268, %v2267
      %v2299 = vpack.c.b16 %v2270, %v2269
      %v2300 = vpack.c.b16 %v2272, %v2271
      %v2301 = vpack.c.b16 %v2274, %v2273
      %v2302 = vpack.c.b16 %v2276, %v2275
      %v2303 = vpack.c.b16 %v2278, %v2277
      %v2304 = vpack.c.b16 %v2280, %v2279
      %2329 = vmatprep.subr.bf16.mxu0 0
      %2330 = vmatpush1.bf16.msra.mxu0 %v2288
      %2331 = vmatprep.subr.bf16.mxu0 0
      %2332 = vmatpush1.bf16.msra.mxu0 %v2287
      %2333 = vmatprep.subr.bf16.mxu0 0
      %2334 = vmatpush1.bf16.msra.mxu0 %v2286
      %2335 = vmatprep.subr.bf16.mxu0 0
      %2336 = vmatpush1.bf16.msra.mxu0 %v2285
      %2337 = vmatprep.subr.bf16.mxu0 0
      %2338 = vmatpush1.bf16.msra.mxu0 %v2284
      %2339 = vmatprep.subr.bf16.mxu0 0
      %2340 = vmatpush1.bf16.msra.mxu0 %v2283
      %2341 = vmatprep.subr.bf16.mxu0 0
      %2342 = vmatpush1.bf16.msra.mxu0 %v2282
      %2343 = vmatprep.subr.bf16.mxu0 0
      %2344 = vmatpush1.bf16.msra.mxu0 %v2281
      %2345 = vmatprep.subr.bf16.mxu0 0
      %2346 = vmatpush2.bf16.msra.mxu0 %v2296
      %2347 = vmatprep.subr.bf16.mxu0 0
      %2348 = vmatpush2.bf16.msra.mxu0 %v2295
      %2349 = vmatprep.subr.bf16.mxu0 0
      %2350 = vmatpush2.bf16.msra.mxu0 %v2294
      %2351 = vmatprep.subr.bf16.mxu0 0
      %2352 = vmatpush2.bf16.msra.mxu0 %v2293
      %2353 = vmatprep.subr.bf16.mxu0 0
      %2354 = vmatpush2.bf16.msra.mxu0 %v2292
      %2355 = vmatprep.subr.bf16.mxu0 0
      %2356 = vmatpush2.bf16.msra.mxu0 %v2291
      %2357 = vmatprep.subr.bf16.mxu0 0
      %2358 = vmatpush2.bf16.msra.mxu0 %v2290
      %2359 = vmatprep.subr.bf16.mxu0 0
      %2360 = vmatpush2.bf16.msra.mxu0 %v2289
      %2361 = vmatprep.mubr.bf16.mxu0 0
      %2362 = vmatmul.mubr.bf16.gmra.mxu0 0
      %v2363 = vpop.f32.mrf.mxu0
      %v2364 = vadd.f32 %v2059, %v2363
      %v2365 = vpop.f32.mrf.mxu0
      %v2366 = vpop.f32.mrf.mxu0
      %v2367 = vadd.f32 %v2062, %v2366
      %v2368 = vpop.f32.mrf.mxu0
      %2369 = vmatprep.mubr.bf16.mxu0 %v413
      %2370 = vmatmul.mubr.bf16.gmra.mxu0 %v1463
      %v2371 = vpop.f32.mrf.mxu0
      %v2372 = vadd.f32 %v2067, %v2371
      %v2373 = vpop.f32.mrf.mxu0
      %v2374 = vpop.f32.mrf.mxu0
      %v2375 = vadd.f32 %v2070, %v2374
      %v2376 = vpop.f32.mrf.mxu0
      %2377 = vmatprep.mubr.bf16.mxu0 %v414
      %2378 = vmatmul.mubr.bf16.gmra.mxu0 %v1341
      %v2379 = vpop.f32.mrf.mxu0
      %v2380 = vadd.f32 %v2075, %v2379
      %v2381 = vpop.f32.mrf.mxu0
      %v2382 = vpop.f32.mrf.mxu0
      %v2383 = vadd.f32 %v2078, %v2382
      %v2384 = vpop.f32.mrf.mxu0
      %2385 = vmatprep.mubr.bf16.mxu0 %v415
      %2386 = vmatmul.mubr.bf16.gmra.mxu0 %v1349
      %v2387 = vpop.f32.mrf.mxu0
      %v2388 = vadd.f32 %v2083, %v2387
      %v2389 = vpop.f32.mrf.mxu0
      %v2390 = vpop.f32.mrf.mxu0
      %v2391 = vadd.f32 %v2086, %v2390
      %v2392 = vpop.f32.mrf.mxu0
      %2393 = vmatprep.mubr.bf16.mxu0 %v416
      %2394 = vmatmul.mubr.bf16.gmra.mxu0 %v1357
      %v2395 = vpop.f32.mrf.mxu0
      %v2396 = vadd.f32 %v2091, %v2395
      %v2397 = vpop.f32.mrf.mxu0
      %v2398 = vpop.f32.mrf.mxu0
      %v2399 = vadd.f32 %v2094, %v2398
      %v2400 = vpop.f32.mrf.mxu0
      %2401 = vmatprep.mubr.bf16.mxu0 %v417
      %2402 = vmatmul.mubr.bf16.gmra.mxu0 %v1365
      %v2403 = vpop.f32.mrf.mxu0
      %v2404 = vadd.f32 %v2099, %v2403
      %v2405 = vpop.f32.mrf.mxu0
      %v2406 = vpop.f32.mrf.mxu0
      %v2407 = vadd.f32 %v2102, %v2406
      %v2408 = vpop.f32.mrf.mxu0
      %2409 = vmatprep.mubr.bf16.mxu0 %v418
      %2410 = vmatmul.mubr.bf16.gmra.mxu0 %v1373
      %v2411 = vpop.f32.mrf.mxu0
      %v2412 = vadd.f32 %v2107, %v2411
      %v2413 = vpop.f32.mrf.mxu0
      %v2414 = vpop.f32.mrf.mxu0
      %v2415 = vadd.f32 %v2110, %v2414
      %v2416 = vpop.f32.mrf.mxu0
      %2417 = vmatprep.mubr.bf16.mxu0 %v419
      %2418 = vmatmul.mubr.bf16.gmra.mxu0 %v1381
      %v2419 = vpop.f32.mrf.mxu0
      %v2420 = vadd.f32 %v2115, %v2419
      %v2421 = vpop.f32.mrf.mxu0
      %v2422 = vpop.f32.mrf.mxu0
      %v2423 = vadd.f32 %v2118, %v2422
      %v2424 = vpop.f32.mrf.mxu0
      %2425 = vmatprep.mubr.bf16.mxu0 %v420
      %2426 = vmatmul.mubr.bf16.gmra.mxu0 %v1389
      %v2427 = vpop.f32.mrf.mxu0
      %v2428 = vadd.f32 %v2123, %v2427
      %v2429 = vpop.f32.mrf.mxu0
      %v2430 = vpop.f32.mrf.mxu0
      %v2431 = vadd.f32 %v2126, %v2430
      %v2432 = vpop.f32.mrf.mxu0
      %2433 = vmatprep.mubr.bf16.mxu0 %v421
      %2434 = vmatmul.mubr.bf16.gmra.mxu0 %v1397
      %v2435 = vpop.f32.mrf.mxu0
      %v2436 = vadd.f32 %v2131, %v2435
      %v2437 = vpop.f32.mrf.mxu0
      %v2438 = vpop.f32.mrf.mxu0
      %v2439 = vadd.f32 %v2134, %v2438
      %v2440 = vpop.f32.mrf.mxu0
      %2441 = vmatprep.mubr.bf16.mxu0 %v422
      %2442 = vmatmul.mubr.bf16.gmra.mxu0 %v1405
      %v2443 = vpop.f32.mrf.mxu0
      %v2444 = vadd.f32 %v2139, %v2443
      %v2445 = vpop.f32.mrf.mxu0
      %v2446 = vpop.f32.mrf.mxu0
      %v2447 = vadd.f32 %v2142, %v2446
      %v2448 = vpop.f32.mrf.mxu0
      %2449 = vmatprep.mubr.bf16.mxu0 %v423
      %2450 = vmatmul.mubr.bf16.gmra.mxu0 %v1413
      %v2451 = vpop.f32.mrf.mxu0
      %v2452 = vadd.f32 %v2147, %v2451
      %v2453 = vpop.f32.mrf.mxu0
      %v2454 = vpop.f32.mrf.mxu0
      %v2455 = vadd.f32 %v2150, %v2454
      %v2456 = vpop.f32.mrf.mxu0
      %2457 = vmatprep.mubr.bf16.mxu0 %v424
      %2458 = vmatmul.mubr.bf16.gmra.mxu0 %v1421
      %v2459 = vpop.f32.mrf.mxu0
      %v2460 = vadd.f32 %v2155, %v2459
      %v2461 = vpop.f32.mrf.mxu0
      %v2462 = vpop.f32.mrf.mxu0
      %v2463 = vadd.f32 %v2158, %v2462
      %v2464 = vpop.f32.mrf.mxu0
      %2465 = vmatprep.mubr.bf16.mxu0 %v425
      %2466 = vmatmul.mubr.bf16.gmra.mxu0 %v1429
      %v2467 = vpop.f32.mrf.mxu0
      %v2468 = vadd.f32 %v2163, %v2467
      %v2469 = vpop.f32.mrf.mxu0
      %v2470 = vpop.f32.mrf.mxu0
      %v2471 = vadd.f32 %v2166, %v2470
      %v2472 = vpop.f32.mrf.mxu0
      %2473 = vmatprep.mubr.bf16.mxu0 %v426
      %2474 = vmatmul.mubr.bf16.gmra.mxu0 %v1437
      %v2475 = vpop.f32.mrf.mxu0
      %v2476 = vadd.f32 %v2171, %v2475
      %v2477 = vpop.f32.mrf.mxu0
      %v2478 = vpop.f32.mrf.mxu0
      %v2479 = vadd.f32 %v2174, %v2478
      %v2480 = vpop.f32.mrf.mxu0
      %2481 = vmatprep.mubr.bf16.mxu0 %v427
      %2482 = vmatmul.mubr.bf16.gmra.mxu0 %v1445
      %v2483 = vpop.f32.mrf.mxu0
      %v2484 = vadd.f32 %v2179, %v2483
      %v2485 = vpop.f32.mrf.mxu0
      %v2486 = vpop.f32.mrf.mxu0
      %v2487 = vadd.f32 %v2182, %v2486
      %v2488 = vpop.f32.mrf.mxu0
      %2489 = vdwg.mxu0
      %2490 = vmatprep.subr.bf16.mxu0 0
      %2491 = vmatpush1.bf16.msra.mxu0 %v2304
      %2492 = vmatprep.subr.bf16.mxu0 0
      %2493 = vmatpush1.bf16.msra.mxu0 %v2303
      %2494 = vmatprep.subr.bf16.mxu0 0
      %2495 = vmatpush1.bf16.msra.mxu0 %v2302
      %2496 = vmatprep.subr.bf16.mxu0 0
      %2497 = vmatpush1.bf16.msra.mxu0 %v2301
      %2498 = vmatprep.subr.bf16.mxu0 0
      %2499 = vmatpush1.bf16.msra.mxu0 %v2300
      %2500 = vmatprep.subr.bf16.mxu0 0
      %2501 = vmatpush1.bf16.msra.mxu0 %v2299
      %2502 = vmatprep.subr.bf16.mxu0 0
      %2503 = vmatpush1.bf16.msra.mxu0 %v2298
      %2504 = vmatprep.subr.bf16.mxu0 0
      %2505 = vmatpush1.bf16.msra.mxu0 %v2297
      %2506 = vmatprep.subr.bf16.mxu0 0
      %2507 = vmatpush2.bf16.msra.mxu0 0
      %2508 = vmatprep.subr.bf16.mxu0 0
      %2509 = vmatpush2.bf16.msra.mxu0 0
      %2510 = vmatprep.subr.bf16.mxu0 0
      %2511 = vmatpush2.bf16.msra.mxu0 0
      %2512 = vmatprep.subr.bf16.mxu0 0
      %2513 = vmatpush2.bf16.msra.mxu0 0
      %2514 = vmatprep.subr.bf16.mxu0 0
      %2515 = vmatpush2.bf16.msra.mxu0 0
      %2516 = vmatprep.subr.bf16.mxu0 0
      %2517 = vmatpush2.bf16.msra.mxu0 0
      %2518 = vmatprep.subr.bf16.mxu0 0
      %2519 = vmatpush2.bf16.msra.mxu0 0
      %2520 = vmatprep.subr.bf16.mxu0 0
      %2521 = vmatpush2.bf16.msra.mxu0 0
      %2522 = vmatprep.mubr.bf16.mxu0 0
      %2523 = vmatmul.mubr.bf16.gmra.mxu0 %v1607
      %v2524 = vpop.f32.mrf.mxu0
      %v2525 = vadd.f32 %v2364, %v2524
      %v2526 = vpop.f32.mrf.mxu0
      %v2527 = vpop.f32.mrf.mxu0
      %v2528 = vadd.f32 %v2367, %v2527
      %v2529 = vpop.f32.mrf.mxu0
      %2530 = vmatprep.mubr.bf16.mxu0 0
      %2531 = vmatmul.mubr.bf16.gmra.mxu0 %v1476
      %v2532 = vpop.f32.mrf.mxu0
      %v2533 = vadd.f32 %v2372, %v2532
      %v2534 = vpop.f32.mrf.mxu0
      %v2535 = vpop.f32.mrf.mxu0
      %v2536 = vadd.f32 %v2375, %v2535
      %v2537 = vpop.f32.mrf.mxu0
      %2538 = vmatprep.mubr.bf16.mxu0 0
      %2539 = vmatmul.mubr.bf16.gmra.mxu0 %v1484
      %v2540 = vpop.f32.mrf.mxu0
      %v2541 = vadd.f32 %v2380, %v2540
      %v2542 = vpop.f32.mrf.mxu0
      %v2543 = vpop.f32.mrf.mxu0
      %v2544 = vadd.f32 %v2383, %v2543
      %v2545 = vpop.f32.mrf.mxu0
      %2546 = vmatprep.mubr.bf16.mxu0 0
      %2547 = vmatmul.mubr.bf16.gmra.mxu0 %v1492
      %v2548 = vpop.f32.mrf.mxu0
      %v2549 = vadd.f32 %v2388, %v2548
      %v2550 = vpop.f32.mrf.mxu0
      %v2551 = vpop.f32.mrf.mxu0
      %v2552 = vadd.f32 %v2391, %v2551
      %v2553 = vpop.f32.mrf.mxu0
      %2554 = vmatprep.mubr.bf16.mxu0 0
      %2555 = vmatmul.mubr.bf16.gmra.mxu0 %v1500
      %v2556 = vpop.f32.mrf.mxu0
      %v2557 = vadd.f32 %v2396, %v2556
      %v2558 = vpop.f32.mrf.mxu0
      %v2559 = vpop.f32.mrf.mxu0
      %v2560 = vadd.f32 %v2399, %v2559
      %v2561 = vpop.f32.mrf.mxu0
      %2562 = vmatprep.mubr.bf16.mxu0 0
      %2563 = vmatmul.mubr.bf16.gmra.mxu0 %v1508
      %v2564 = vpop.f32.mrf.mxu0
      %v2565 = vadd.f32 %v2404, %v2564
      %v2566 = vpop.f32.mrf.mxu0
      %v2567 = vpop.f32.mrf.mxu0
      %v2568 = vadd.f32 %v2407, %v2567
      %v2569 = vpop.f32.mrf.mxu0
      %2570 = vmatprep.mubr.bf16.mxu0 0
      %2571 = vmatmul.mubr.bf16.gmra.mxu0 %v1516
      %v2572 = vpop.f32.mrf.mxu0
      %v2573 = vadd.f32 %v2412, %v2572
      %v2574 = vpop.f32.mrf.mxu0
      %v2575 = vpop.f32.mrf.mxu0
      %v2576 = vadd.f32 %v2415, %v2575
      %v2577 = vpop.f32.mrf.mxu0
      %2578 = vmatprep.mubr.bf16.mxu0 0
      %2579 = vmatmul.mubr.bf16.gmra.mxu0 %v1524
      %v2580 = vpop.f32.mrf.mxu0
      %v2581 = vadd.f32 %v2420, %v2580
      %v2582 = vpop.f32.mrf.mxu0
      %v2583 = vpop.f32.mrf.mxu0
      %v2584 = vadd.f32 %v2423, %v2583
      %v2585 = vpop.f32.mrf.mxu0
      %2586 = vmatprep.mubr.bf16.mxu0 0
      %2587 = vmatmul.mubr.bf16.gmra.mxu0 %v1532
      %v2588 = vpop.f32.mrf.mxu0
      %v2589 = vadd.f32 %v2428, %v2588
      %v2590 = vpop.f32.mrf.mxu0
      %v2591 = vpop.f32.mrf.mxu0
      %v2592 = vadd.f32 %v2431, %v2591
      %v2593 = vpop.f32.mrf.mxu0
      %2594 = vmatprep.mubr.bf16.mxu0 0
      %2595 = vmatmul.mubr.bf16.gmra.mxu0 %v1540
      %v2596 = vpop.f32.mrf.mxu0
      %v2597 = vadd.f32 %v2436, %v2596
      %v2598 = vpop.f32.mrf.mxu0
      %v2599 = vpop.f32.mrf.mxu0
      %v2600 = vadd.f32 %v2439, %v2599
      %v2601 = vpop.f32.mrf.mxu0
      %2602 = vmatprep.mubr.bf16.mxu0 0
      %2603 = vmatmul.mubr.bf16.gmra.mxu0 %v1548
      %v2604 = vpop.f32.mrf.mxu0
      %v2605 = vadd.f32 %v2444, %v2604
      %v2606 = vpop.f32.mrf.mxu0
      %v2607 = vpop.f32.mrf.mxu0
      %v2608 = vadd.f32 %v2447, %v2607
      %v2609 = vpop.f32.mrf.mxu0
      %2610 = vmatprep.mubr.bf16.mxu0 0
      %2611 = vmatmul.mubr.bf16.gmra.mxu0 %v1556
      %v2612 = vpop.f32.mrf.mxu0
      %v2613 = vadd.f32 %v2452, %v2612
      %v2614 = vpop.f32.mrf.mxu0
      %v2615 = vpop.f32.mrf.mxu0
      %v2616 = vadd.f32 %v2455, %v2615
      %v2617 = vpop.f32.mrf.mxu0
      %2618 = vmatprep.mubr.bf16.mxu0 0
      %2619 = vmatmul.mubr.bf16.gmra.mxu0 %v1564
      %v2620 = vpop.f32.mrf.mxu0
      %v2621 = vadd.f32 %v2460, %v2620
      %v2622 = vpop.f32.mrf.mxu0
      %v2623 = vpop.f32.mrf.mxu0
      %v2624 = vadd.f32 %v2463, %v2623
      %v2625 = vpop.f32.mrf.mxu0
      %2626 = vmatprep.mubr.bf16.mxu0 0
      %2627 = vmatmul.mubr.bf16.gmra.mxu0 %v1572
      %v2628 = vpop.f32.mrf.mxu0
      %v2629 = vadd.f32 %v2468, %v2628
      %v2630 = vpop.f32.mrf.mxu0
      %v2631 = vpop.f32.mrf.mxu0
      %v2632 = vadd.f32 %v2471, %v2631
      %v2633 = vpop.f32.mrf.mxu0
      %2634 = vmatprep.mubr.bf16.mxu0 0
      %2635 = vmatmul.mubr.bf16.gmra.mxu0 %v1580
      %v2636 = vpop.f32.mrf.mxu0
      %v2637 = vadd.f32 %v2476, %v2636
      %v2638 = vpop.f32.mrf.mxu0
      %v2639 = vpop.f32.mrf.mxu0
      %v2640 = vadd.f32 %v2479, %v2639
      %v2641 = vpop.f32.mrf.mxu0
      %2642 = vmatprep.mubr.bf16.mxu0 0
      %2643 = vmatmul.mubr.bf16.gmra.mxu0 %v1588
      %v2644 = vpop.f32.mrf.mxu0
      %v2645 = vadd.f32 %v2484, %v2644
      %v2646 = vpop.f32.mrf.mxu0
      %v2647 = vpop.f32.mrf.mxu0
      %v2648 = vadd.f32 %v2487, %v2647
      %v2649 = vpop.f32.mrf.mxu0
      %2650 = vdwg.mxu0
      %v2652 = vsel %vm1462, %v1659, 0
      %s2653 = scalar_lea.vmem %s3, 384
      %v2654 = vld [vmem:[%s2653] sm:$0xf]
      %v2655 = vld [vmem:[%s2653 + $0x4] sm:$0xf]
      %v2656 = vld [vmem:[%s2653 + $0x8] sm:$0xf]
      %v2657 = vld [vmem:[%s2653 + $0xc] sm:$0xf]
      %v2658 = vld [vmem:[%s2653 + $0x10] sm:$0xf]
      %v2659 = vld [vmem:[%s2653 + $0x14] sm:$0xf]
      %v2660 = vld [vmem:[%s2653 + $0x18] sm:$0xf]
      %v2661 = vld [vmem:[%s2653 + $0x1c] sm:$0xf]
      %v2662 = vld [vmem:[%s2653 + $0x20] sm:$0xf]
      %v2663 = vld [vmem:[%s2653 + $0x24] sm:$0xf]
      %v2664 = vld [vmem:[%s2653 + $0x28] sm:$0xf]
      %v2665 = vld [vmem:[%s2653 + $0x2c] sm:$0xf]
      %v2666 = vld [vmem:[%s2653 + $0x30] sm:$0xf]
      %v2667 = vld [vmem:[%s2653 + $0x34] sm:$0xf]
      %v2668 = vld [vmem:[%s2653 + $0x38] sm:$0xf]
      %v2669 = vld [vmem:[%s2653 + $0x3c] sm:$0xf]
      %v2670 = vld [vmem:[%s2653 + $0x40] sm:$0xf]
      %v2671 = vld [vmem:[%s2653 + $0x44] sm:$0xf]
      %v2672 = vld [vmem:[%s2653 + $0x48] sm:$0xf]
      %v2673 = vld [vmem:[%s2653 + $0x4c] sm:$0xf]
      %v2674 = vld [vmem:[%s2653 + $0x50] sm:$0xf]
      %v2675 = vld [vmem:[%s2653 + $0x54] sm:$0xf]
      %v2676 = vld [vmem:[%s2653 + $0x58] sm:$0xf]
      %v2677 = vld [vmem:[%s2653 + $0x5c] sm:$0xf]
      %v2678 = vld [vmem:[%s2653 + $0x60] sm:$0xf]
      %v2679 = vld [vmem:[%s2653 + $0x64] sm:$0xf]
      %v2680 = vld [vmem:[%s2653 + $0x68] sm:$0xf]
      %v2681 = vld [vmem:[%s2653 + $0x6c] sm:$0xf]
      %v2682 = vld [vmem:[%s2653 + $0x70] sm:$0xf]
      %v2683 = vld [vmem:[%s2653 + $0x74] sm:$0xf]
      %v2684 = vld [vmem:[%s2653 + $0x78] sm:$0xf]
      %v2685 = vld [vmem:[%s2653 + $0x7c] sm:$0xf]
      %v2686 = vld [vmem:[%s2653 + $0x80] sm:$0xf]
      %v2687 = vld [vmem:[%s2653 + $0x84] sm:$0xf]
      %v2688 = vld [vmem:[%s2653 + $0x88] sm:$0xf]
      %v2689 = vld [vmem:[%s2653 + $0x8c] sm:$0xf]
      %v2690 = vld [vmem:[%s2653 + $0x90] sm:$0xf]
      %v2691 = vld [vmem:[%s2653 + $0x94] sm:$0xf]
      %v2692 = vld [vmem:[%s2653 + $0x98] sm:$0xf]
      %v2693 = vld [vmem:[%s2653 + $0x9c] sm:$0xf]
      %v2694 = vld [vmem:[%s2653 + $0xa0] sm:$0xf]
      %v2695 = vld [vmem:[%s2653 + $0xa4] sm:$0xf]
      %v2696 = vld [vmem:[%s2653 + $0xa8] sm:$0xf]
      %v2697 = vld [vmem:[%s2653 + $0xac] sm:$0xf]
      %v2698 = vld [vmem:[%s2653 + $0xb0] sm:$0xf]
      %v2699 = vld [vmem:[%s2653 + $0xb4] sm:$0xf]
      %v2700 = vld [vmem:[%s2653 + $0xb8] sm:$0xf]
      %v2701 = vld [vmem:[%s2653 + $0xbc] sm:$0xf]
      %v2750 = vunpack.c.l.b16 %v2654
      %v2751 = vunpack.c.l.b16 %v2655
      %v2752 = vunpack.c.l.b16 %v2656
      %v2753 = vunpack.c.l.b16 %v2657
      %v2754 = vunpack.c.l.b16 %v2658
      %v2755 = vunpack.c.l.b16 %v2659
      %v2756 = vunpack.c.l.b16 %v2660
      %v2757 = vunpack.c.l.b16 %v2661
      %v2758 = vunpack.c.l.b16 %v2662
      %v2759 = vunpack.c.l.b16 %v2663
      %v2760 = vunpack.c.l.b16 %v2664
      %v2761 = vunpack.c.l.b16 %v2665
      %v2762 = vunpack.c.l.b16 %v2666
      %v2763 = vunpack.c.l.b16 %v2667
      %v2764 = vunpack.c.l.b16 %v2668
      %v2765 = vunpack.c.l.b16 %v2669
      %v2766 = vunpack.c.l.b16 %v2670
      %v2767 = vunpack.c.l.b16 %v2671
      %v2768 = vunpack.c.l.b16 %v2672
      %v2769 = vunpack.c.l.b16 %v2673
      %v2770 = vunpack.c.l.b16 %v2674
      %v2771 = vunpack.c.l.b16 %v2675
      %v2772 = vunpack.c.l.b16 %v2676
      %v2773 = vunpack.c.l.b16 %v2677
      %v2774 = vunpack.c.l.b16 %v2678
      %v2775 = vunpack.c.l.b16 %v2679
      %v2776 = vunpack.c.l.b16 %v2680
      %v2777 = vunpack.c.l.b16 %v2681
      %v2778 = vunpack.c.l.b16 %v2682
      %v2779 = vunpack.c.l.b16 %v2683
      %v2780 = vunpack.c.l.b16 %v2684
      %v2781 = vunpack.c.l.b16 %v2685
      %v2782 = vunpack.c.l.b16 %v2686
      %v2783 = vunpack.c.l.b16 %v2687
      %v2784 = vunpack.c.l.b16 %v2688
      %v2785 = vunpack.c.l.b16 %v2689
      %v2786 = vunpack.c.l.b16 %v2690
      %v2787 = vunpack.c.l.b16 %v2691
      %v2788 = vunpack.c.l.b16 %v2692
      %v2789 = vunpack.c.l.b16 %v2693
      %v2790 = vunpack.c.l.b16 %v2694
      %v2791 = vunpack.c.l.b16 %v2695
      %v2792 = vunpack.c.l.b16 %v2696
      %v2793 = vunpack.c.l.b16 %v2697
      %v2794 = vunpack.c.l.b16 %v2698
      %v2795 = vunpack.c.l.b16 %v2699
      %v2796 = vunpack.c.l.b16 %v2700
      %v2797 = vunpack.c.l.b16 %v2701
      %v2798 = vpack.c.b16 %v2751, %v2750
      %v2799 = vpack.c.b16 %v2753, %v2752
      %v2800 = vpack.c.b16 %v2755, %v2754
      %v2801 = vpack.c.b16 %v2757, %v2756
      %v2802 = vpack.c.b16 %v2759, %v2758
      %v2803 = vpack.c.b16 %v2761, %v2760
      %v2804 = vpack.c.b16 %v2763, %v2762
      %v2805 = vpack.c.b16 %v2765, %v2764
      %v2806 = vpack.c.b16 %v2767, %v2766
      %v2807 = vpack.c.b16 %v2769, %v2768
      %v2808 = vpack.c.b16 %v2771, %v2770
      %v2809 = vpack.c.b16 %v2773, %v2772
      %v2810 = vpack.c.b16 %v2775, %v2774
      %v2811 = vpack.c.b16 %v2777, %v2776
      %v2812 = vpack.c.b16 %v2779, %v2778
      %v2813 = vpack.c.b16 %v2781, %v2780
      %v2814 = vpack.c.b16 %v2783, %v2782
      %v2815 = vpack.c.b16 %v2785, %v2784
      %v2816 = vpack.c.b16 %v2787, %v2786
      %v2817 = vpack.c.b16 %v2789, %v2788
      %v2818 = vpack.c.b16 %v2791, %v2790
      %v2819 = vpack.c.b16 %v2793, %v2792
      %v2820 = vpack.c.b16 %v2795, %v2794
      %v2821 = vpack.c.b16 %v2797, %v2796
      %2846 = vmatprep.subr.bf16.mxu0 0
      %2847 = vmatpush1.bf16.msra.mxu0 %v2805
      %2848 = vmatprep.subr.bf16.mxu0 0
      %2849 = vmatpush1.bf16.msra.mxu0 %v2804
      %2850 = vmatprep.subr.bf16.mxu0 0
      %2851 = vmatpush1.bf16.msra.mxu0 %v2803
      %2852 = vmatprep.subr.bf16.mxu0 0
      %2853 = vmatpush1.bf16.msra.mxu0 %v2802
      %2854 = vmatprep.subr.bf16.mxu0 0
      %2855 = vmatpush1.bf16.msra.mxu0 %v2801
      %2856 = vmatprep.subr.bf16.mxu0 0
      %2857 = vmatpush1.bf16.msra.mxu0 %v2800
      %2858 = vmatprep.subr.bf16.mxu0 0
      %2859 = vmatpush1.bf16.msra.mxu0 %v2799
      %2860 = vmatprep.subr.bf16.mxu0 0
      %2861 = vmatpush1.bf16.msra.mxu0 %v2798
      %2862 = vmatprep.subr.bf16.mxu0 0
      %2863 = vmatpush2.bf16.msra.mxu0 %v2813
      %2864 = vmatprep.subr.bf16.mxu0 0
      %2865 = vmatpush2.bf16.msra.mxu0 %v2812
      %2866 = vmatprep.subr.bf16.mxu0 0
      %2867 = vmatpush2.bf16.msra.mxu0 %v2811
      %2868 = vmatprep.subr.bf16.mxu0 0
      %2869 = vmatpush2.bf16.msra.mxu0 %v2810
      %2870 = vmatprep.subr.bf16.mxu0 0
      %2871 = vmatpush2.bf16.msra.mxu0 %v2809
      %2872 = vmatprep.subr.bf16.mxu0 0
      %2873 = vmatpush2.bf16.msra.mxu0 %v2808
      %2874 = vmatprep.subr.bf16.mxu0 0
      %2875 = vmatpush2.bf16.msra.mxu0 %v2807
      %2876 = vmatprep.subr.bf16.mxu0 0
      %2877 = vmatpush2.bf16.msra.mxu0 %v2806
      %2878 = vmatprep.mubr.bf16.mxu0 %v414
      %2879 = vmatmul.mubr.bf16.gmra.mxu0 %v1341
      %v2880 = vpop.f32.mrf.mxu0
      %v2881 = vadd.f32 0.0, %v2880
      %v2882 = vpop.f32.mrf.mxu0
      %v2883 = vpop.f32.mrf.mxu0
      %v2884 = vadd.f32 0.0, %v2883
      %v2885 = vpop.f32.mrf.mxu0
      %2886 = vmatprep.mubr.bf16.mxu0 %v415
      %2887 = vmatmul.mubr.bf16.gmra.mxu0 %v1349
      %v2888 = vpop.f32.mrf.mxu0
      %v2889 = vadd.f32 0.0, %v2888
      %v2890 = vpop.f32.mrf.mxu0
      %v2891 = vpop.f32.mrf.mxu0
      %v2892 = vadd.f32 0.0, %v2891
      %v2893 = vpop.f32.mrf.mxu0
      %2894 = vmatprep.mubr.bf16.mxu0 %v416
      %2895 = vmatmul.mubr.bf16.gmra.mxu0 %v1357
      %v2896 = vpop.f32.mrf.mxu0
      %v2897 = vadd.f32 0.0, %v2896
      %v2898 = vpop.f32.mrf.mxu0
      %v2899 = vpop.f32.mrf.mxu0
      %v2900 = vadd.f32 0.0, %v2899
      %v2901 = vpop.f32.mrf.mxu0
      %2902 = vmatprep.mubr.bf16.mxu0 %v417
      %2903 = vmatmul.mubr.bf16.gmra.mxu0 %v1365
      %v2904 = vpop.f32.mrf.mxu0
      %v2905 = vadd.f32 0.0, %v2904
      %v2906 = vpop.f32.mrf.mxu0
      %v2907 = vpop.f32.mrf.mxu0
      %v2908 = vadd.f32 0.0, %v2907
      %v2909 = vpop.f32.mrf.mxu0
      %2910 = vmatprep.mubr.bf16.mxu0 %v418
      %2911 = vmatmul.mubr.bf16.gmra.mxu0 %v1373
      %v2912 = vpop.f32.mrf.mxu0
      %v2913 = vadd.f32 0.0, %v2912
      %v2914 = vpop.f32.mrf.mxu0
      %v2915 = vpop.f32.mrf.mxu0
      %v2916 = vadd.f32 0.0, %v2915
      %v2917 = vpop.f32.mrf.mxu0
      %2918 = vmatprep.mubr.bf16.mxu0 %v419
      %2919 = vmatmul.mubr.bf16.gmra.mxu0 %v1381
      %v2920 = vpop.f32.mrf.mxu0
      %v2921 = vadd.f32 0.0, %v2920
      %v2922 = vpop.f32.mrf.mxu0
      %v2923 = vpop.f32.mrf.mxu0
      %v2924 = vadd.f32 0.0, %v2923
      %v2925 = vpop.f32.mrf.mxu0
      %2926 = vmatprep.mubr.bf16.mxu0 %v420
      %2927 = vmatmul.mubr.bf16.gmra.mxu0 %v1389
      %v2928 = vpop.f32.mrf.mxu0
      %v2929 = vadd.f32 0.0, %v2928
      %v2930 = vpop.f32.mrf.mxu0
      %v2931 = vpop.f32.mrf.mxu0
      %v2932 = vadd.f32 0.0, %v2931
      %v2933 = vpop.f32.mrf.mxu0
      %2934 = vmatprep.mubr.bf16.mxu0 %v421
      %2935 = vmatmul.mubr.bf16.gmra.mxu0 %v1397
      %v2936 = vpop.f32.mrf.mxu0
      %v2937 = vadd.f32 0.0, %v2936
      %v2938 = vpop.f32.mrf.mxu0
      %v2939 = vpop.f32.mrf.mxu0
      %v2940 = vadd.f32 0.0, %v2939
      %v2941 = vpop.f32.mrf.mxu0
      %2942 = vmatprep.mubr.bf16.mxu0 %v422
      %2943 = vmatmul.mubr.bf16.gmra.mxu0 %v1405
      %v2944 = vpop.f32.mrf.mxu0
      %v2945 = vadd.f32 0.0, %v2944
      %v2946 = vpop.f32.mrf.mxu0
      %v2947 = vpop.f32.mrf.mxu0
      %v2948 = vadd.f32 0.0, %v2947
      %v2949 = vpop.f32.mrf.mxu0
      %2950 = vmatprep.mubr.bf16.mxu0 %v423
      %2951 = vmatmul.mubr.bf16.gmra.mxu0 %v1413
      %v2952 = vpop.f32.mrf.mxu0
      %v2953 = vadd.f32 0.0, %v2952
      %v2954 = vpop.f32.mrf.mxu0
      %v2955 = vpop.f32.mrf.mxu0
      %v2956 = vadd.f32 0.0, %v2955
      %v2957 = vpop.f32.mrf.mxu0
      %2958 = vmatprep.mubr.bf16.mxu0 %v424
      %2959 = vmatmul.mubr.bf16.gmra.mxu0 %v1421
      %v2960 = vpop.f32.mrf.mxu0
      %v2961 = vadd.f32 0.0, %v2960
      %v2962 = vpop.f32.mrf.mxu0
      %v2963 = vpop.f32.mrf.mxu0
      %v2964 = vadd.f32 0.0, %v2963
      %v2965 = vpop.f32.mrf.mxu0
      %2966 = vmatprep.mubr.bf16.mxu0 %v425
      %2967 = vmatmul.mubr.bf16.gmra.mxu0 %v1429
      %v2968 = vpop.f32.mrf.mxu0
      %v2969 = vadd.f32 0.0, %v2968
      %v2970 = vpop.f32.mrf.mxu0
      %v2971 = vpop.f32.mrf.mxu0
      %v2972 = vadd.f32 0.0, %v2971
      %v2973 = vpop.f32.mrf.mxu0
      %2974 = vmatprep.mubr.bf16.mxu0 %v426
      %2975 = vmatmul.mubr.bf16.gmra.mxu0 %v1437
      %v2976 = vpop.f32.mrf.mxu0
      %v2977 = vadd.f32 0.0, %v2976
      %v2978 = vpop.f32.mrf.mxu0
      %v2979 = vpop.f32.mrf.mxu0
      %v2980 = vadd.f32 0.0, %v2979
      %v2981 = vpop.f32.mrf.mxu0
      %2982 = vmatprep.mubr.bf16.mxu0 %v427
      %2983 = vmatmul.mubr.bf16.gmra.mxu0 %v1445
      %v2984 = vpop.f32.mrf.mxu0
      %v2985 = vadd.f32 0.0, %v2984
      %v2986 = vpop.f32.mrf.mxu0
      %v2987 = vpop.f32.mrf.mxu0
      %v2988 = vadd.f32 0.0, %v2987
      %v2989 = vpop.f32.mrf.mxu0
      %2990 = vmatprep.mubr.bf16.mxu0 %v428
      %2991 = vmatmul.mubr.bf16.gmra.mxu0 %v1663
      %v2992 = vpop.f32.mrf.mxu0
      %v2993 = vadd.f32 0.0, %v2992
      %v2994 = vpop.f32.mrf.mxu0
      %v2995 = vpop.f32.mrf.mxu0
      %v2996 = vadd.f32 0.0, %v2995
      %v2997 = vpop.f32.mrf.mxu0
      %2998 = vmatprep.mubr.bf16.mxu0 0
      %2999 = vmatmul.mubr.bf16.gmra.mxu0 %v2652
      %v3000 = vpop.f32.mrf.mxu0
      %v3001 = vadd.f32 0.0, %v3000
      %v3002 = vpop.f32.mrf.mxu0
      %v3003 = vpop.f32.mrf.mxu0
      %v3004 = vadd.f32 0.0, %v3003
      %v3005 = vpop.f32.mrf.mxu0
      %3006 = vdwg.mxu0
      %3007 = vmatprep.subr.bf16.mxu0 0
      %3008 = vmatpush1.bf16.msra.mxu0 %v2821
      %3009 = vmatprep.subr.bf16.mxu0 0
      %3010 = vmatpush1.bf16.msra.mxu0 %v2820
      %3011 = vmatprep.subr.bf16.mxu0 0
      %3012 = vmatpush1.bf16.msra.mxu0 %v2819
      %3013 = vmatprep.subr.bf16.mxu0 0
      %3014 = vmatpush1.bf16.msra.mxu0 %v2818
      %3015 = vmatprep.subr.bf16.mxu0 0
      %3016 = vmatpush1.bf16.msra.mxu0 %v2817
      %3017 = vmatprep.subr.bf16.mxu0 0
      %3018 = vmatpush1.bf16.msra.mxu0 %v2816
      %3019 = vmatprep.subr.bf16.mxu0 0
      %3020 = vmatpush1.bf16.msra.mxu0 %v2815
      %3021 = vmatprep.subr.bf16.mxu0 0
      %3022 = vmatpush1.bf16.msra.mxu0 %v2814
      %3023 = vmatprep.subr.bf16.mxu0 0
      %3024 = vmatpush2.bf16.msra.mxu0 0
      %3025 = vmatprep.subr.bf16.mxu0 0
      %3026 = vmatpush2.bf16.msra.mxu0 0
      %3027 = vmatprep.subr.bf16.mxu0 0
      %3028 = vmatpush2.bf16.msra.mxu0 0
      %3029 = vmatprep.subr.bf16.mxu0 0
      %3030 = vmatpush2.bf16.msra.mxu0 0
      %3031 = vmatprep.subr.bf16.mxu0 0
      %3032 = vmatpush2.bf16.msra.mxu0 0
      %3033 = vmatprep.subr.bf16.mxu0 0
      %3034 = vmatpush2.bf16.msra.mxu0 0
      %3035 = vmatprep.subr.bf16.mxu0 0
      %3036 = vmatpush2.bf16.msra.mxu0 0
      %3037 = vmatprep.subr.bf16.mxu0 0
      %3038 = vmatpush2.bf16.msra.mxu0 0
      %3039 = vmatprep.mubr.bf16.mxu0 0
      %3040 = vmatmul.mubr.bf16.gmra.mxu0 %v1484
      %v3041 = vpop.f32.mrf.mxu0
      %v3042 = vadd.f32 %v2881, %v3041
      %v3043 = vpop.f32.mrf.mxu0
      %v3044 = vpop.f32.mrf.mxu0
      %v3045 = vadd.f32 %v2884, %v3044
      %v3046 = vpop.f32.mrf.mxu0
      %3047 = vmatprep.mubr.bf16.mxu0 0
      %3048 = vmatmul.mubr.bf16.gmra.mxu0 %v1492
      %v3049 = vpop.f32.mrf.mxu0
      %v3050 = vadd.f32 %v2889, %v3049
      %v3051 = vpop.f32.mrf.mxu0
      %v3052 = vpop.f32.mrf.mxu0
      %v3053 = vadd.f32 %v2892, %v3052
      %v3054 = vpop.f32.mrf.mxu0
      %3055 = vmatprep.mubr.bf16.mxu0 0
      %3056 = vmatmul.mubr.bf16.gmra.mxu0 %v1500
      %v3057 = vpop.f32.mrf.mxu0
      %v3058 = vadd.f32 %v2897, %v3057
      %v3059 = vpop.f32.mrf.mxu0
      %v3060 = vpop.f32.mrf.mxu0
      %v3061 = vadd.f32 %v2900, %v3060
      %v3062 = vpop.f32.mrf.mxu0
      %3063 = vmatprep.mubr.bf16.mxu0 0
      %3064 = vmatmul.mubr.bf16.gmra.mxu0 %v1508
      %v3065 = vpop.f32.mrf.mxu0
      %v3066 = vadd.f32 %v2905, %v3065
      %v3067 = vpop.f32.mrf.mxu0
      %v3068 = vpop.f32.mrf.mxu0
      %v3069 = vadd.f32 %v2908, %v3068
      %v3070 = vpop.f32.mrf.mxu0
      %3071 = vmatprep.mubr.bf16.mxu0 0
      %3072 = vmatmul.mubr.bf16.gmra.mxu0 %v1516
      %v3073 = vpop.f32.mrf.mxu0
      %v3074 = vadd.f32 %v2913, %v3073
      %v3075 = vpop.f32.mrf.mxu0
      %v3076 = vpop.f32.mrf.mxu0
      %v3077 = vadd.f32 %v2916, %v3076
      %v3078 = vpop.f32.mrf.mxu0
      %3079 = vmatprep.mubr.bf16.mxu0 0
      %3080 = vmatmul.mubr.bf16.gmra.mxu0 %v1524
      %v3081 = vpop.f32.mrf.mxu0
      %v3082 = vadd.f32 %v2921, %v3081
      %v3083 = vpop.f32.mrf.mxu0
      %v3084 = vpop.f32.mrf.mxu0
      %v3085 = vadd.f32 %v2924, %v3084
      %v3086 = vpop.f32.mrf.mxu0
      %3087 = vmatprep.mubr.bf16.mxu0 0
      %3088 = vmatmul.mubr.bf16.gmra.mxu0 %v1532
      %v3089 = vpop.f32.mrf.mxu0
      %v3090 = vadd.f32 %v2929, %v3089
      %v3091 = vpop.f32.mrf.mxu0
      %v3092 = vpop.f32.mrf.mxu0
      %v3093 = vadd.f32 %v2932, %v3092
      %v3094 = vpop.f32.mrf.mxu0
      %3095 = vmatprep.mubr.bf16.mxu0 0
      %3096 = vmatmul.mubr.bf16.gmra.mxu0 %v1540
      %v3097 = vpop.f32.mrf.mxu0
      %v3098 = vadd.f32 %v2937, %v3097
      %v3099 = vpop.f32.mrf.mxu0
      %v3100 = vpop.f32.mrf.mxu0
      %v3101 = vadd.f32 %v2940, %v3100
      %v3102 = vpop.f32.mrf.mxu0
      %3103 = vmatprep.mubr.bf16.mxu0 0
      %3104 = vmatmul.mubr.bf16.gmra.mxu0 %v1548
      %v3105 = vpop.f32.mrf.mxu0
      %v3106 = vadd.f32 %v2945, %v3105
      %v3107 = vpop.f32.mrf.mxu0
      %v3108 = vpop.f32.mrf.mxu0
      %v3109 = vadd.f32 %v2948, %v3108
      %v3110 = vpop.f32.mrf.mxu0
      %3111 = vmatprep.mubr.bf16.mxu0 0
      %3112 = vmatmul.mubr.bf16.gmra.mxu0 %v1556
      %v3113 = vpop.f32.mrf.mxu0
      %v3114 = vadd.f32 %v2953, %v3113
      %v3115 = vpop.f32.mrf.mxu0
      %v3116 = vpop.f32.mrf.mxu0
      %v3117 = vadd.f32 %v2956, %v3116
      %v3118 = vpop.f32.mrf.mxu0
      %3119 = vmatprep.mubr.bf16.mxu0 0
      %3120 = vmatmul.mubr.bf16.gmra.mxu0 %v1564
      %v3121 = vpop.f32.mrf.mxu0
      %v3122 = vadd.f32 %v2961, %v3121
      %v3123 = vpop.f32.mrf.mxu0
      %v3124 = vpop.f32.mrf.mxu0
      %v3125 = vadd.f32 %v2964, %v3124
      %v3126 = vpop.f32.mrf.mxu0
      %3127 = vmatprep.mubr.bf16.mxu0 0
      %3128 = vmatmul.mubr.bf16.gmra.mxu0 %v1572
      %v3129 = vpop.f32.mrf.mxu0
      %v3130 = vadd.f32 %v2969, %v3129
      %v3131 = vpop.f32.mrf.mxu0
      %v3132 = vpop.f32.mrf.mxu0
      %v3133 = vadd.f32 %v2972, %v3132
      %v3134 = vpop.f32.mrf.mxu0
      %3135 = vmatprep.mubr.bf16.mxu0 0
      %3136 = vmatmul.mubr.bf16.gmra.mxu0 %v1580
      %v3137 = vpop.f32.mrf.mxu0
      %v3138 = vadd.f32 %v2977, %v3137
      %v3139 = vpop.f32.mrf.mxu0
      %v3140 = vpop.f32.mrf.mxu0
      %v3141 = vadd.f32 %v2980, %v3140
      %v3142 = vpop.f32.mrf.mxu0
      %3143 = vmatprep.mubr.bf16.mxu0 0
      %3144 = vmatmul.mubr.bf16.gmra.mxu0 %v1588
      %v3145 = vpop.f32.mrf.mxu0
      %v3146 = vadd.f32 %v2985, %v3145
      %v3147 = vpop.f32.mrf.mxu0
      %v3148 = vpop.f32.mrf.mxu0
      %v3149 = vadd.f32 %v2988, %v3148
      %v3150 = vpop.f32.mrf.mxu0
      %3151 = vmatprep.mubr.bf16.mxu0 0
      %3152 = vmatmul.mubr.bf16.gmra.mxu0 %v1669
      %v3153 = vpop.f32.mrf.mxu0
      %v3154 = vadd.f32 %v2993, %v3153
      %v3155 = vpop.f32.mrf.mxu0
      %v3156 = vpop.f32.mrf.mxu0
      %v3157 = vadd.f32 %v2996, %v3156
      %v3158 = vpop.f32.mrf.mxu0
      %3159 = vmatprep.mubr.bf16.mxu0 0
      %3160 = vmatmul.mubr.bf16.gmra.mxu0 0
      %v3161 = vpop.f32.mrf.mxu0
      %v3162 = vadd.f32 %v3001, %v3161
      %v3163 = vpop.f32.mrf.mxu0
      %v3164 = vpop.f32.mrf.mxu0
      %v3165 = vadd.f32 %v3004, %v3164
      %v3166 = vpop.f32.mrf.mxu0
      %3167 = vdwg.mxu0
      %v3168 = vadd.f32 %v2525, %v3042
      %v3169 = vadd.f32 %v2528, %v3045
      %v3170 = vadd.f32 %v2533, %v3050
      %v3171 = vadd.f32 %v2536, %v3053
      %v3172 = vadd.f32 %v2541, %v3058
      %v3173 = vadd.f32 %v2544, %v3061
      %v3174 = vadd.f32 %v2549, %v3066
      %v3175 = vadd.f32 %v2552, %v3069
      %v3176 = vadd.f32 %v2557, %v3074
      %v3177 = vadd.f32 %v2560, %v3077
      %v3178 = vadd.f32 %v2565, %v3082
      %v3179 = vadd.f32 %v2568, %v3085
      %v3180 = vadd.f32 %v2573, %v3090
      %v3181 = vadd.f32 %v2576, %v3093
      %v3182 = vadd.f32 %v2581, %v3098
      %v3183 = vadd.f32 %v2584, %v3101
      %v3184 = vadd.f32 %v2589, %v3106
      %v3185 = vadd.f32 %v2592, %v3109
      %v3186 = vadd.f32 %v2597, %v3114
      %v3187 = vadd.f32 %v2600, %v3117
      %v3188 = vadd.f32 %v2605, %v3122
      %v3189 = vadd.f32 %v2608, %v3125
      %v3190 = vadd.f32 %v2613, %v3130
      %v3191 = vadd.f32 %v2616, %v3133
      %v3192 = vadd.f32 %v2621, %v3138
      %v3193 = vadd.f32 %v2624, %v3141
      %v3194 = vadd.f32 %v2629, %v3146
      %v3195 = vadd.f32 %v2632, %v3149
      %v3196 = vadd.f32 %v2637, %v3154
      %v3197 = vadd.f32 %v2640, %v3157
      %v3198 = vadd.f32 %v2645, %v3162
      %v3199 = vadd.f32 %v2648, %v3165
      %v3200 = vpack.c.bf16 %v3169, %v3168
      %v3201 = vpack.c.bf16 %v3171, %v3170
      %v3202 = vpack.c.bf16 %v3173, %v3172
      %v3203 = vpack.c.bf16 %v3175, %v3174
      %v3204 = vpack.c.bf16 %v3177, %v3176
      %v3205 = vpack.c.bf16 %v3179, %v3178
      %v3206 = vpack.c.bf16 %v3181, %v3180
      %v3207 = vpack.c.bf16 %v3183, %v3182
      %v3208 = vpack.c.bf16 %v3185, %v3184
      %v3209 = vpack.c.bf16 %v3187, %v3186
      %v3210 = vpack.c.bf16 %v3189, %v3188
      %v3211 = vpack.c.bf16 %v3191, %v3190
      %v3212 = vpack.c.bf16 %v3193, %v3192
      %v3213 = vpack.c.bf16 %v3195, %v3194
      %v3214 = vpack.c.bf16 %v3197, %v3196
      %v3215 = vpack.c.bf16 %v3199, %v3198
      %v3232 = vunpack.c.l.b16 %v3200
      %v3233 = vunpack.c.h.b16 %v3200
      %v3234 = vunpack.c.l.b16 %v3201
      %v3235 = vunpack.c.h.b16 %v3201
      %v3236 = vunpack.c.l.b16 %v3202
      %v3237 = vunpack.c.h.b16 %v3202
      %v3238 = vunpack.c.l.b16 %v3203
      %v3239 = vunpack.c.h.b16 %v3203
      %v3240 = vunpack.c.l.b16 %v3204
      %v3241 = vunpack.c.h.b16 %v3204
      %v3242 = vunpack.c.l.b16 %v3205
      %v3243 = vunpack.c.h.b16 %v3205
      %v3244 = vunpack.c.l.b16 %v3206
      %v3245 = vunpack.c.h.b16 %v3206
      %v3246 = vunpack.c.l.b16 %v3207
      %v3247 = vunpack.c.h.b16 %v3207
      %v3248 = vunpack.c.l.b16 %v3208
      %v3249 = vunpack.c.h.b16 %v3208
      %v3250 = vunpack.c.l.b16 %v3209
      %v3251 = vunpack.c.h.b16 %v3209
      %v3252 = vunpack.c.l.b16 %v3210
      %v3253 = vunpack.c.h.b16 %v3210
      %v3254 = vunpack.c.l.b16 %v3211
      %v3255 = vunpack.c.h.b16 %v3211
      %v3256 = vunpack.c.l.b16 %v3212
      %v3257 = vunpack.c.h.b16 %v3212
      %v3258 = vunpack.c.l.b16 %v3213
      %v3259 = vunpack.c.h.b16 %v3213
      %v3260 = vunpack.c.l.b16 %v3214
      %v3261 = vunpack.c.h.b16 %v3214
      %v3262 = vunpack.c.l.b16 %v3215
      %v3263 = vunpack.c.h.b16 %v3215
      %v3264 = vpack.c.b16 %v3232, %v3232
      %v3265 = vpack.c.b16 %v3233, %v3233
      %v3266 = vpack.c.b16 %v3234, %v3234
      %v3267 = vpack.c.b16 %v3235, %v3235
      %v3268 = vpack.c.b16 %v3236, %v3236
      %v3269 = vpack.c.b16 %v3237, %v3237
      %v3270 = vpack.c.b16 %v3238, %v3238
      %v3271 = vpack.c.b16 %v3239, %v3239
      %v3272 = vpack.c.b16 %v3240, %v3240
      %v3273 = vpack.c.b16 %v3241, %v3241
      %v3274 = vpack.c.b16 %v3242, %v3242
      %v3275 = vpack.c.b16 %v3243, %v3243
      %v3276 = vpack.c.b16 %v3244, %v3244
      %v3277 = vpack.c.b16 %v3245, %v3245
      %v3278 = vpack.c.b16 %v3246, %v3246
      %v3279 = vpack.c.b16 %v3247, %v3247
      %v3280 = vpack.c.b16 %v3248, %v3248
      %v3281 = vpack.c.b16 %v3249, %v3249
      %v3282 = vpack.c.b16 %v3250, %v3250
      %v3283 = vpack.c.b16 %v3251, %v3251
      %v3284 = vpack.c.b16 %v3252, %v3252
      %v3285 = vpack.c.b16 %v3253, %v3253
      %v3286 = vpack.c.b16 %v3254, %v3254
      %v3287 = vpack.c.b16 %v3255, %v3255
      %v3288 = vpack.c.b16 %v3256, %v3256
      %v3289 = vpack.c.b16 %v3257, %v3257
      %v3290 = vpack.c.b16 %v3258, %v3258
      %v3291 = vpack.c.b16 %v3259, %v3259
      %v3292 = vpack.c.b16 %v3260, %v3260
      %v3293 = vpack.c.b16 %v3261, %v3261
      %v3294 = vpack.c.b16 %v3262, %v3262
      %v3295 = vpack.c.b16 %v3263, %v3263
      %3328 = vst [vmem:[%s231] sm:$0xf] %v3264
      %3329 = vst [vmem:[%s231 + $0x4] sm:$0xf] %v3265
      %3330 = vst [vmem:[%s231 + $0x8] sm:$0xf] %v3266
      %3331 = vst [vmem:[%s231 + $0xc] sm:$0xf] %v3267
      %3332 = vst [vmem:[%s231 + $0x10] sm:$0xf] %v3268
      %3333 = vst [vmem:[%s231 + $0x14] sm:$0xf] %v3269
      %3334 = vst [vmem:[%s231 + $0x18] sm:$0xf] %v3270
      %3335 = vst [vmem:[%s231 + $0x1c] sm:$0xf] %v3271
      %3336 = vst [vmem:[%s231 + $0x20] sm:$0xf] %v3272
      %3337 = vst [vmem:[%s231 + $0x24] sm:$0xf] %v3273
      %3338 = vst [vmem:[%s231 + $0x28] sm:$0xf] %v3274
      %3339 = vst [vmem:[%s231 + $0x2c] sm:$0xf] %v3275
      %3340 = vst [vmem:[%s231 + $0x30] sm:$0xf] %v3276
      %3341 = vst [vmem:[%s231 + $0x34] sm:$0xf] %v3277
      %3342 = vst [vmem:[%s231 + $0x38] sm:$0xf] %v3278
      %3343 = vst [vmem:[%s231 + $0x3c] sm:$0xf] %v3279
      %3344 = vst [vmem:[%s231 + $0x40] sm:$0xf] %v3280
      %3345 = vst [vmem:[%s231 + $0x44] sm:$0xf] %v3281
      %3346 = vst [vmem:[%s231 + $0x48] sm:$0xf] %v3282
      %3347 = vst [vmem:[%s231 + $0x4c] sm:$0xf] %v3283
      %3348 = vst [vmem:[%s231 + $0x50] sm:$0xf] %v3284
      %3349 = vst [vmem:[%s231 + $0x54] sm:$0xf] %v3285
      %3350 = vst [vmem:[%s231 + $0x58] sm:$0xf] %v3286
      %3351 = vst [vmem:[%s231 + $0x5c] sm:$0xf] %v3287
      %3352 = vst [vmem:[%s231 + $0x60] sm:$0xf] %v3288
      %3353 = vst [vmem:[%s231 + $0x64] sm:$0xf] %v3289
      %3354 = vst [vmem:[%s231 + $0x68] sm:$0xf] %v3290
      %3355 = vst [vmem:[%s231 + $0x6c] sm:$0xf] %v3291
      %3356 = vst [vmem:[%s231 + $0x70] sm:$0xf] %v3292
      %3357 = vst [vmem:[%s231 + $0x74] sm:$0xf] %v3293
      %3358 = vst [vmem:[%s231 + $0x78] sm:$0xf] %v3294
      %3359 = vst [vmem:[%s231 + $0x7c] sm:$0xf] %v3295
      %v3360 = vadd.f32 %v3168, %v3169
      %v3361 = vadd.f32 %v3360, %v3170
      %v3362 = vadd.f32 %v3361, %v3171
      %v3363 = vadd.f32 %v3362, %v3172
      %v3364 = vadd.f32 %v3363, %v3173
      %v3365 = vadd.f32 %v3364, %v3174
      %v3366 = vadd.f32 %v3365, %v3175
      %v3367 = vadd.f32 %v3366, %v3176
      %v3368 = vadd.f32 %v3367, %v3177
      %v3369 = vadd.f32 %v3368, %v3178
      %v3370 = vadd.f32 %v3369, %v3179
      %v3371 = vadd.f32 %v3370, %v3180
      %v3372 = vadd.f32 %v3371, %v3181
      %v3373 = vadd.f32 %v3372, %v3182
      %v3374 = vadd.f32 %v3373, %v3183
      %v3375 = vadd.f32 %v3374, %v3184
      %v3376 = vadd.f32 %v3375, %v3185
      %v3377 = vadd.f32 %v3376, %v3186
      %v3378 = vadd.f32 %v3377, %v3187
      %v3379 = vadd.f32 %v3378, %v3188
      %v3380 = vadd.f32 %v3379, %v3189
      %v3381 = vadd.f32 %v3380, %v3190
      %v3382 = vadd.f32 %v3381, %v3191
      %v3383 = vadd.f32 %v3382, %v3192
      %v3384 = vadd.f32 %v3383, %v3193
      %v3385 = vadd.f32 %v3384, %v3194
      %v3386 = vadd.f32 %v3385, %v3195
      %v3387 = vadd.f32 %v3386, %v3196
      %v3388 = vadd.f32 %v3387, %v3197
      %v3389 = vadd.f32 %v3388, %v3198
      %v3390 = vadd.f32 %v3389, %v3199
      %v3391 = vrot.slane %v3390, 4
      %v3392 = vadd.f32 %v3390, %v3391
      %v3393 = vrot.slane %v3392, 2
      %v3394 = vadd.f32 %v3392, %v3393
      %v3395 = vrot.slane %v3394, 1
      %v3396 = vadd.f32 %v3394, %v3395
      %v3397 = vmul.f32 %v3168, %v3168
      %v3398 = vmul.f32 %v3169, %v3169
      %v3399 = vmul.f32 %v3170, %v3170
      %v3400 = vmul.f32 %v3171, %v3171
      %v3401 = vmul.f32 %v3172, %v3172
      %v3402 = vmul.f32 %v3173, %v3173
      %v3403 = vmul.f32 %v3174, %v3174
      %v3404 = vmul.f32 %v3175, %v3175
      %v3405 = vmul.f32 %v3176, %v3176
      %v3406 = vmul.f32 %v3177, %v3177
      %v3407 = vmul.f32 %v3178, %v3178
      %v3408 = vmul.f32 %v3179, %v3179
      %v3409 = vmul.f32 %v3180, %v3180
      %v3410 = vmul.f32 %v3181, %v3181
      %v3411 = vmul.f32 %v3182, %v3182
      %v3412 = vmul.f32 %v3183, %v3183
      %v3413 = vmul.f32 %v3184, %v3184
      %v3414 = vmul.f32 %v3185, %v3185
      %v3415 = vmul.f32 %v3186, %v3186
      %v3416 = vmul.f32 %v3187, %v3187
      %v3417 = vmul.f32 %v3188, %v3188
      %v3418 = vmul.f32 %v3189, %v3189
      %v3419 = vmul.f32 %v3190, %v3190
      %v3420 = vmul.f32 %v3191, %v3191
      %v3421 = vmul.f32 %v3192, %v3192
      %v3422 = vmul.f32 %v3193, %v3193
      %v3423 = vmul.f32 %v3194, %v3194
      %v3424 = vmul.f32 %v3195, %v3195
      %v3425 = vmul.f32 %v3196, %v3196
      %v3426 = vmul.f32 %v3197, %v3197
      %v3427 = vmul.f32 %v3198, %v3198
      %v3428 = vmul.f32 %v3199, %v3199
      %v3429 = vadd.f32 %v3397, %v3398
      %v3430 = vadd.f32 %v3429, %v3399
      %v3431 = vadd.f32 %v3430, %v3400
      %v3432 = vadd.f32 %v3431, %v3401
      %v3433 = vadd.f32 %v3432, %v3402
      %v3434 = vadd.f32 %v3433, %v3403
      %v3435 = vadd.f32 %v3434, %v3404
      %v3436 = vadd.f32 %v3435, %v3405
      %v3437 = vadd.f32 %v3436, %v3406
      %v3438 = vadd.f32 %v3437, %v3407
      %v3439 = vadd.f32 %v3438, %v3408
      %v3440 = vadd.f32 %v3439, %v3409
      %v3441 = vadd.f32 %v3440, %v3410
      %v3442 = vadd.f32 %v3441, %v3411
      %v3443 = vadd.f32 %v3442, %v3412
      %v3444 = vadd.f32 %v3443, %v3413
      %v3445 = vadd.f32 %v3444, %v3414
      %v3446 = vadd.f32 %v3445, %v3415
      %v3447 = vadd.f32 %v3446, %v3416
      %v3448 = vadd.f32 %v3447, %v3417
      %v3449 = vadd.f32 %v3448, %v3418
      %v3450 = vadd.f32 %v3449, %v3419
      %v3451 = vadd.f32 %v3450, %v3420
      %v3452 = vadd.f32 %v3451, %v3421
      %v3453 = vadd.f32 %v3452, %v3422
      %v3454 = vadd.f32 %v3453, %v3423
      %v3455 = vadd.f32 %v3454, %v3424
      %v3456 = vadd.f32 %v3455, %v3425
      %v3457 = vadd.f32 %v3456, %v3426
      %v3458 = vadd.f32 %v3457, %v3427
      %v3459 = vadd.f32 %v3458, %v3428
      %v3460 = vrot.slane %v3459, 4
      %v3461 = vadd.f32 %v3459, %v3460
      %v3462 = vrot.slane %v3461, 2
      %v3463 = vadd.f32 %v3461, %v3462
      %v3464 = vrot.slane %v3463, 1
      %v3465 = vadd.f32 %v3463, %v3464
      %vm3466 = vcmask 1040384
      %v3467 = vsel %vm3466, %v3396, %v3465
      %3468 = vst [vmem:[%s235] sm:$0x3] %v3467
      %p3469 = scmp.lt.s32.totalorder %s17, 1
      %s3470 = scalar_select %p3469, %s17, 1
      %s3471 = smul.addr %s3470, 32
      %s3472 = smul.addr %s3471, 4
      %s3473 = scalar_lea.vmem %s4, %s3472
      %p3474 = scmp.lt.s32.totalorder %s17, 1
      %s3475 = scalar_select %p3474, %s17, 1
      %s3476 = smul.addr %s3475, 2
      %s3477 = scalar_lea.vmem %s5, %s3476
      // Predicated region
      $region37: #{_bottleneck_jit.5} parent=35 // pred_check
        %p3478 = pneg %p124
      $region38: #{_bottleneck_jit.5} parent=35 // pred_check_branch
        %3480 = sbr.rel (%p3478) target = $region40
      $region39: #{_bottleneck_jit.5} parent=35 // pred_region
        _
      $region40: #{_bottleneck_jit.5} parent=35 // pred_fallthru
        _
      // Predicated region
      $region41: #{_bottleneck_jit.5} parent=35 // pred_check
        %p3481 = pneg %p150
      $region42: #{_bottleneck_jit.5} parent=35 // pred_check_branch
        %3483 = sbr.rel (%p3481) target = $region44
      $region43: #{_bottleneck_jit.5} parent=35 // pred_region
        _
      $region44: #{_bottleneck_jit.5} parent=35 // pred_fallthru
        _
    $region36: #{_bottleneck_jit.5} parent=5 // pred_fallthru
      _
    %p3484 = scmp.le.s32.totalorder 2, %s12
    // Predicated region
    $region45: #{_bottleneck_jit.5} parent=5 // pred_check
      %p3485 = pneg %p3484
    $region46: #{_bottleneck_jit.5} parent=5 // pred_check_branch
      %3487 = sbr.rel (%p3485) target = $region48
    $region47: #{_bottleneck_jit.5} parent=5 // pred_region
      %s3488 = ssub.s32 %s12, 2
      // Predicated region
      $region49: #{_bottleneck_jit.5} parent=47 // pred_check
        %p3489 = pneg %p130
      $region50: #{_bottleneck_jit.5} parent=47 // pred_check_branch
        %3491 = sbr.rel (%p3489) target = $region52
      $region51: #{_bottleneck_jit.5} parent=47 // pred_region
        %p3492 = scmp.lt.s32.totalorder %s18, 1
        %s3493 = scalar_select %p3492, %s18, 1
        %s3494 = smul.addr %s3493, 32
        %s3495 = smul.addr %s3494, 4
        %s3496 = scalar_lea.vmem %s4, %s3495
      $region52: #{_bottleneck_jit.5} parent=47 // pred_fallthru
        _
      // Predicated region
      $region53: #{_bottleneck_jit.5} parent=47 // pred_check
        %p3497 = pneg %p156
      $region54: #{_bottleneck_jit.5} parent=47 // pred_check_branch
        %3499 = sbr.rel (%p3497) target = $region56
      $region55: #{_bottleneck_jit.5} parent=47 // pred_region
        %p3500 = scmp.lt.s32.totalorder %s18, 1
        %s3501 = scalar_select %p3500, %s18, 1
        %s3502 = smul.addr %s3501, 2
        %s3503 = scalar_lea.vmem %s5, %s3502
      $region56: #{_bottleneck_jit.5} parent=47 // pred_fallthru
        _
    $region48: #{_bottleneck_jit.5} parent=5 // pred_fallthru
      _
  $region6: #{_bottleneck_jit.5} parent=0 // loop_footer
    %s16 = sadd.s32 1, %s12
  $region7: #{_bottleneck_jit.5} parent=0 // loop_footer_branch
    %11 = sbr.rel target = $region3
  $region8: #{_bottleneck_jit.5} parent=0 // loop_exit
    _

</llo_original>
